<compile_context>
chip_gen: v6e
topology: v6e:2x2x1
jax: 0.10.0
libtpu: 0.0.40
codegen_flags: <defaults>
</compile_context>

<pallas_src>
import functools

import numpy as np
import jax
import jax.numpy as jnp
from jax import lax
from jax.experimental import pallas as pl
from jax.experimental.pallas import tpu as pltpu

# ----- RQS layer constants (defaults of RQSAutoregressiveLayer, tails=None) -----
NUM_BINS = 10
MIN_BIN_WIDTH = 1e-3
MIN_BIN_HEIGHT = 1e-3
MIN_DERIVATIVE = 1e-3
MULT = 3 * NUM_BINS + 1          # output_dim_multiplier for tails=None

# (nb+1, nb) lower-strict-triangular cumsum matrix: row i = sum of widths[:i].
_CSUM_MAT = jnp.asarray(
    (np.arange(NUM_BINS)[None, :] < np.arange(NUM_BINS + 1)[:, None]).astype(np.float32)
)


# --------------------------------------------------------------------------------
# Kernel 1: MADE conditioner  (x @ (mask1*W1) -> ReLU -> @ (mask2*W2)), tiled
# --------------------------------------------------------------------------------
def made_kernel(x_ref, w1_ref, b1_ref, w2_ref, b2_ref, out_ref):
    xb = x_ref[...].astype(jnp.bfloat16)
    h = jnp.dot(xb, w1_ref[...], preferred_element_type=jnp.float32) + b1_ref[...]
    h = jnp.maximum(h, 0.0).astype(jnp.bfloat16)
    out_ref[...] = (
        jnp.dot(h, w2_ref[...], preferred_element_type=jnp.float32) + b2_ref[...]
    )


def made_forward(x, w1, b1, w2, b2, *, tb=8, tn=512):
    """x (B, F) f32, w1 (F, H) bf16, b1 (1, H) f32, w2 (H, N) bf16, b2 (1, N) f32."""
    B, F = x.shape
    H = w1.shape[1]
    N = w2.shape[1]
    B_pad = pl.cdiv(B, tb) * tb
    N_pad = pl.cdiv(N, tn) * tn

    x_p = jnp.pad(x, ((0, B_pad - B), (0, 0))) if B_pad != B else x
    w2_p = jnp.pad(w2, ((0, 0), (0, N_pad - N))) if N_pad != N else w2
    b2_p = jnp.pad(b2, ((0, 0), (0, N_pad - N))) if N_pad != N else b2

    out = pl.pallas_call(
        made_kernel,
        out_shape=jax.ShapeDtypeStruct((B_pad, N_pad), jnp.float32),
        grid=(B_pad // tb, N_pad // tn),
        in_specs=[
            pl.BlockSpec((tb, F), lambda i, j: (i, 0)),    # x tile (resident over j)
            pl.BlockSpec((F, H), lambda i, j: (0, 0)),     # W1 (resident)
            pl.BlockSpec((1, H), lambda i, j: (0, 0)),     # b1 (resident)
            pl.BlockSpec((H, tn), lambda i, j: (0, j)),    # W2 column stream
            pl.BlockSpec((1, tn), lambda i, j: (0, j)),    # b2 column stream
        ],
        out_specs=pl.BlockSpec((tb, tn), lambda i, j: (i, j)),
        compiler_params=pltpu.CompilerParams(
            dimension_semantics=("parallel", "parallel")
        ),
    )(x_p, w1, b1, w2_p, b2_p)
    return out[:B, :N]


# --------------------------------------------------------------------------------
# Kernel 2: rational-quadratic spline (forward, tails=None), elements on lanes
# --------------------------------------------------------------------------------
def spline_kernel(csum_ref, x_ref, uw_ref, uh_ref, ud_ref, out_ref, lad_ref,
                  *, inv_sqrt_h):
    nb = NUM_BINS
    L = x_ref.shape[1]

    x = x_ref[...]                                   # (1, L), assumed in [0, 1]
    csum_mat = csum_ref[...]                         # (nb+1, nb)

    # PyTorch layer divides widths/heights (not derivatives) by sqrt(hidden_features)
    uw = uw_ref[...] * inv_sqrt_h                    # (nb, L)
    uh = uh_ref[...] * inv_sqrt_h                    # (nb, L)
    ud = ud_ref[...]                                 # (nb+1, L)

    def softmax_sublane(u):
        m = jnp.max(u, axis=0, keepdims=True)
        e = jnp.exp(u - m)
        return e / jnp.sum(e, axis=0, keepdims=True)

    widths = MIN_BIN_WIDTH + (1.0 - MIN_BIN_WIDTH * nb) * softmax_sublane(uw)
    heights = MIN_BIN_HEIGHT + (1.0 - MIN_BIN_HEIGHT * nb) * softmax_sublane(uh)

    # one triangular matmul computes both cumulative sums (lane-concatenated)
    wh = jnp.concatenate([widths, heights], axis=1)                 # (nb, 2L)
    cs = jnp.dot(csum_mat, wh, preferred_element_type=jnp.float32)  # (nb+1, 2L)
    cumwidths = cs[:, :L]
    cumheights = cs[:, L:]

    sub11 = lax.broadcasted_iota(jnp.int32, (nb + 1, L), 0)
    is_last = sub11 == nb
    cumwidths = jnp.where(is_last, 1.0, cumwidths)    # force right endpoint = 1
    cumheights = jnp.where(is_last, 1.0, cumheights)

    # softplus, written out explicitly for a clean Mosaic lowering
    softplus_ud = jnp.maximum(ud, 0.0) + jnp.log1p(jnp.exp(-jnp.abs(ud)))
    derivatives = MIN_DERIVATIVE + softplus_ud        # (nb+1, L)

    # searchsorted over cumwidths (forward direction), eps on the last bin edge
    bin_locations = jnp.where(is_last, cumwidths + 1e-6, cumwidths)
    bin_idx = (
        jnp.sum((x >= bin_locations).astype(jnp.int32), axis=0, keepdims=True) - 1
    )
    # clamp so out-of-domain / padded elements never produce an all-zero one-hot
    bin_idx = jnp.clip(bin_idx, 0, nb - 1)            # (1, L)

    onehot_lo = (sub11 == bin_idx).astype(jnp.float32)       # selects row k
    onehot_hi = (sub11 == bin_idx + 1).astype(jnp.float32)   # selects row k + 1

    def gather(a, oh):                                # (nb+1, L) -> (1, L)
        return jnp.sum(a * oh, axis=0, keepdims=True)

    input_cumwidths = gather(cumwidths, onehot_lo)
    cw_hi = gather(cumwidths, onehot_hi)
    input_bin_widths = cw_hi - input_cumwidths
    input_cumheights = gather(cumheights, onehot_lo)
    ch_hi = gather(cumheights, onehot_hi)
    input_heights = ch_hi - input_cumheights
    input_derivatives = gather(derivatives, onehot_lo)
    input_derivatives_p1 = gather(derivatives, onehot_hi)
    input_delta = input_heights / input_bin_widths

    theta = (x - input_cumwidths) / input_bin_widths
    t1mt = theta * (1.0 - theta)
    theta_sq = theta * theta
    numerator = input_heights * (input_delta * theta_sq + input_derivatives * t1mt)
    denominator = input_delta + (
        input_derivatives + input_derivatives_p1 - 2.0 * input_delta
    ) * t1mt
    inv_den = 1.0 / denominator

    out_ref[...] = input_cumheights + numerator * inv_den

    deriv_numerator = (input_delta * input_delta) * (
        input_derivatives_p1 * theta_sq
        + 2.0 * input_delta * t1mt
        + input_derivatives * (1.0 - theta) * (1.0 - theta)
    )
    lad_ref[...] = jnp.log(deriv_numerator * inv_den * inv_den)


def spline_forward(x_row, uw, uh, ud, hidden_features, *, lane_block=512):
    """x_row (1, R); uw/uh (nb, R); ud (nb+1, R). Returns outputs, logabsdet (1, R)."""
    R = x_row.shape[1]
    L = lane_block
    R_pad = pl.cdiv(R, L) * L
    pad = R_pad - R
    if pad:
        x_row = jnp.pad(x_row, ((0, 0), (0, pad)), constant_values=0.5)
        uw = jnp.pad(uw, ((0, 0), (0, pad)))
        uh = jnp.pad(uh, ((0, 0), (0, pad)))
        ud = jnp.pad(ud, ((0, 0), (0, pad)))

    kern = functools.partial(
        spline_kernel, inv_sqrt_h=float(1.0 / np.sqrt(hidden_features))
    )
    out, lad = pl.pallas_call(
        kern,
        out_shape=(
            jax.ShapeDtypeStruct((1, R_pad), jnp.float32),
            jax.ShapeDtypeStruct((1, R_pad), jnp.float32),
        ),
        grid=(R_pad // L,),
        in_specs=[
            pl.BlockSpec((NUM_BINS + 1, NUM_BINS), lambda i: (0, 0)),  # csum const
            pl.BlockSpec((1, L), lambda i: (0, i)),                    # x
            pl.BlockSpec((NUM_BINS, L), lambda i: (0, i)),             # unnorm widths
            pl.BlockSpec((NUM_BINS, L), lambda i: (0, i)),             # unnorm heights
            pl.BlockSpec((NUM_BINS + 1, L), lambda i: (0, i)),         # unnorm derivs
        ],
        out_specs=(
            pl.BlockSpec((1, L), lambda i: (0, i)),
            pl.BlockSpec((1, L), lambda i: (0, i)),
        ),
        compiler_params=pltpu.CompilerParams(dimension_semantics=("parallel",)),
    )(_CSUM_MAT, x_row, uw, uh, ud)
    return out[:, :R], lad[:, :R]


# --------------------------------------------------------------------------------
# Parameter / mask construction (plain JAX / numpy glue)
# --------------------------------------------------------------------------------
def build_made_masks(features, hidden):
    deg_in = np.arange(1, features + 1)
    deg_h = (np.arange(hidden) % max(features - 1, 1)) + 1
    mask1 = (deg_h[None, :] >= deg_in[:, None]).astype(np.float32)        # (F, H)
    deg_out = np.repeat(np.arange(1, features + 1), MULT)                 # (F*M,)
    mask2 = (deg_out[None, :] > deg_h[:, None]).astype(np.float32)        # (H, F*M)
    return np.asarray(mask1), np.asarray(mask2)


def init_layer(key, features, hidden):
    k1, k2, k3, k4 = jax.random.split(key, 4)
    w1 = jax.random.normal(k1, (features, hidden), jnp.float32) / np.sqrt(features)
    b1 = jax.random.normal(k2, (1, hidden), jnp.float32) * 0.01
    w2 = jax.random.normal(k3, (hidden, features * MULT), jnp.float32) / np.sqrt(hidden)
    b2 = jax.random.normal(k4, (1, features * MULT), jnp.float32) * 0.01
    m1, m2 = build_made_masks(features, hidden)
    return {
        "w1": (w1 * m1).astype(jnp.bfloat16),   # bf16 weight streaming
        "b1": b1,
        "w2": (w2 * m2).astype(jnp.bfloat16),
        "b2": b2,
        "hidden_features": hidden,
    }


# --------------------------------------------------------------------------------
# Module forward (glue): RQSAutoregressive.forward(x, context)
# --------------------------------------------------------------------------------
def rqs_layer_forward(x, layer_params):
    B, F = x.shape
    ar_params = made_forward(
        x, layer_params["w1"], layer_params["b1"],
        layer_params["w2"], layer_params["b2"],
    )                                                   # (B, F*M) f32

    # element-on-lane layout for the spline kernel
    p = ar_params.reshape(B * F, MULT)                  # == view(B, F, M) row-major
    uw = p[:, :NUM_BINS].T                              # (nb, B*F)
    uh = p[:, NUM_BINS:2 * NUM_BINS].T                  # (nb, B*F)
    ud = p[:, 2 * NUM_BINS:].T                          # (nb+1, B*F)
    x_row = x.reshape(1, B * F)

    out_row, lad_row = spline_forward(
        x_row, uw, uh, ud, layer_params["hidden_features"]
    )
    outputs = out_row.reshape(B, F)
    logabsdet = jnp.sum(lad_row.reshape(B, F), axis=1)  # sum_except_batch
    return outputs, logabsdet


def rqs_autoregressive_forward(x, context, layers):
    # context is unused: context_dim=0 default => conditioner built without context.
    B = x.shape[0]
    x = x.reshape(B, -1)
    log_det = jnp.zeros((B,), jnp.float32)
    for layer_params in layers:
        x, ld = rqs_layer_forward(x, layer_params)
        log_det = log_det + ld
    return x, log_det


# --------------------------------------------------------------------------------
if __name__ == "__main__":
    key = jax.random.PRNGKey(0)
    kx, kl1, kl2 = jax.random.split(key, 3)

    # Small shapes: x (B=2, C=4, 16, 16) -> flattened features F = 1024.
    # tails=None requires inputs in [0, 1]; the spline maps [0,1]->[0,1] so the
    # second layer's input stays in the domain.
    B, C, Hs, Ws = 2, 4, 16, 16
    x = jax.random.uniform(kx, (B, C, Hs, Ws), jnp.float32, minval=0.05, maxval=0.95)

    features = C * Hs * Ws
    hidden_features = 64            # (module default is 1000; small for this test)
    layers = [init_layer(kl1, features, hidden_features),
              init_layer(kl2, features, hidden_features)]

    fwd = jax.jit(lambda xx: rqs_autoregressive_forward(xx, None, layers))
    z, log_det = fwd(x)
    jax.block_until_ready((z, log_det))

    assert z.shape == (B, features)
    assert log_det.shape == (B,)
    assert bool(jnp.all(jnp.isfinite(z)))
    assert bool(jnp.all(jnp.isfinite(log_det)))
    assert bool(jnp.all(z >= -1e-4)) and bool(jnp.all(z <= 1.0 + 1e-4))
    print("KERNEL_OK")
</pallas_src>

<mosaic_0001>
module attributes {stable_mosaic.version = 11 : i64} {
  func.func @made_kernel(%arg0: i32, %arg1: i32, %arg2: memref<8x1024xf32, #tpu.memory_space<vmem>>, %arg3: memref<1024x64xbf16, #tpu.memory_space<vmem>>, %arg4: memref<1x64xf32, #tpu.memory_space<vmem>>, %arg5: memref<64x512xbf16, #tpu.memory_space<vmem>>, %arg6: memref<1x512xf32, #tpu.memory_space<vmem>>, %arg7: memref<8x512xf32, #tpu.memory_space<vmem>>) attributes {dimension_semantics = [#tpu.dimension_semantics<parallel>, #tpu.dimension_semantics<parallel>], iteration_bounds = array<i64: 1, 62>, scalar_prefetch = 0 : i64, scratch_operands = 0 : i64, tpu.core_type = #tpu.core_type<tc>, window_params = [{transform_indices = @transform_0, window_bounds = array<i64: 8, 1024>}, {pipeline_mode = #tpu.pipeline_mode<synchronous>, transform_indices = @transform_1, window_bounds = array<i64: 1024, 64>}, {pipeline_mode = #tpu.pipeline_mode<synchronous>, transform_indices = @transform_2, window_bounds = array<i64: 1, 64>}, {transform_indices = @transform_3, window_bounds = array<i64: 64, 512>}, {transform_indices = @transform_4, window_bounds = array<i64: 1, 512>}, {transform_indices = @transform_5, window_bounds = array<i64: 8, 512>}]} {
    %c0 = arith.constant 0 : index
    %c0_0 = arith.constant 0 : index
    %0 = vector.load %arg2[%c0, %c0_0] : memref<8x1024xf32, #tpu.memory_space<vmem>>, vector<8x1024xf32>
    %1 = arith.truncf %0 : vector<8x1024xf32> to vector<8x1024xbf16>
    %c0_1 = arith.constant 0 : index
    %c0_2 = arith.constant 0 : index
    %2 = vector.load %arg3[%c0_1, %c0_2] : memref<1024x64xbf16, #tpu.memory_space<vmem>>, vector<1024x64xbf16>
    %cst = arith.constant dense<0.000000e+00> : vector<8x64xf32>
    %3 = tpu.matmul %1, %2, %cst {dimension_numbers = #tpu.dot_dimension_numbers<[1], [0], [0], [1], [0, 0, 1, 1], [], []>} : vector<8x1024xbf16>, vector<1024x64xbf16>, vector<8x64xf32> -> vector<8x64xf32>
    %c0_3 = arith.constant 0 : index
    %c0_4 = arith.constant 0 : index
    %4 = vector.load %arg4[%c0_3, %c0_4] : memref<1x64xf32, #tpu.memory_space<vmem>>, vector<1x64xf32>
    %5 = vector.broadcast %4 : vector<1x64xf32> to vector<8x64xf32>
    %6 = arith.addf %3, %5 : vector<8x64xf32>
    %cst_5 = arith.constant 0.000000e+00 : f32
    %7 = vector.broadcast %cst_5 : f32 to vector<8x64xf32>
    %8 = arith.maximumf %6, %7 : vector<8x64xf32>
    %9 = arith.truncf %8 : vector<8x64xf32> to vector<8x64xbf16>
    %c0_6 = arith.constant 0 : index
    %c0_7 = arith.constant 0 : index
    %10 = vector.load %arg5[%c0_6, %c0_7] : memref<64x512xbf16, #tpu.memory_space<vmem>>, vector<64x512xbf16>
    %cst_8 = arith.constant dense<0.000000e+00> : vector<8x512xf32>
    %11 = tpu.matmul %9, %10, %cst_8 {dimension_numbers = #tpu.dot_dimension_numbers<[1], [0], [0], [1], [0, 0, 1, 1], [], []>} : vector<8x64xbf16>, vector<64x512xbf16>, vector<8x512xf32> -> vector<8x512xf32>
    %c0_9 = arith.constant 0 : index
    %c0_10 = arith.constant 0 : index
    %12 = vector.load %arg6[%c0_9, %c0_10] : memref<1x512xf32, #tpu.memory_space<vmem>>, vector<1x512xf32>
    %13 = vector.broadcast %12 : vector<1x512xf32> to vector<8x512xf32>
    %14 = arith.addf %11, %13 : vector<8x512xf32>
    %c0_11 = arith.constant 0 : index
    %c0_12 = arith.constant 0 : index
    %15 = vector.load %arg7[%c0_11, %c0_12] : memref<8x512xf32, #tpu.memory_space<vmem>>, vector<8x512xf32>
    tpu.vector_store %arg7[%c0_11, %c0_12], %14 {strides = array<i32>} : memref<8x512xf32, #tpu.memory_space<vmem>>, vector<8x512xf32>,
    return
  }
  func.func @transform_0(%arg0: i32, %arg1: i32) -> (i32, i32) {
    %c0_i32 = arith.constant 0 : i32
    %c0_i32_0 = arith.constant 0 : i32
    return %arg0, %c0_i32 : i32, i32
  }
  func.func @transform_1(%arg0: i32, %arg1: i32) -> (i32, i32) {
    %c0_i32 = arith.constant 0 : i32
    %c0_i32_0 = arith.constant 0 : i32
    %c0_i32_1 = arith.constant 0 : i32
    return %c0_i32, %c0_i32_0 : i32, i32
  }
  func.func @transform_2(%arg0: i32, %arg1: i32) -> (i32, i32) {
    %c0_i32 = arith.constant 0 : i32
    %c0_i32_0 = arith.constant 0 : i32
    %c0_i32_1 = arith.constant 0 : i32
    return %c0_i32, %c0_i32_0 : i32, i32
  }
  func.func @transform_3(%arg0: i32, %arg1: i32) -> (i32, i32) {
    %c0_i32 = arith.constant 0 : i32
    %c0_i32_0 = arith.constant 0 : i32
    return %c0_i32, %arg1 : i32, i32
  }
  func.func @transform_4(%arg0: i32, %arg1: i32) -> (i32, i32) {
    %c0_i32 = arith.constant 0 : i32
    %c0_i32_0 = arith.constant 0 : i32
    return %c0_i32, %arg1 : i32, i32
  }
  func.func @transform_5(%arg0: i32, %arg1: i32) -> (i32, i32) {
    %c0_i32 = arith.constant 0 : i32
    return %arg0, %arg1 : i32, i32
  }
}

module attributes {stable_mosaic.version = 11 : i64} {
  func.func @spline_kernel(%arg0: i32, %arg1: memref<11x10xf32, #tpu.memory_space<vmem>>, %arg2: memref<1x512xf32, #tpu.memory_space<vmem>>, %arg3: memref<10x512xf32, #tpu.memory_space<vmem>>, %arg4: memref<10x512xf32, #tpu.memory_space<vmem>>, %arg5: memref<11x512xf32, #tpu.memory_space<vmem>>, %arg6: memref<1x512xf32, #tpu.memory_space<vmem>>, %arg7: memref<1x512xf32, #tpu.memory_space<vmem>>) attributes {dimension_semantics = [#tpu.dimension_semantics<parallel>], iteration_bounds = array<i64: 4>, scalar_prefetch = 0 : i64, scratch_operands = 0 : i64, tpu.core_type = #tpu.core_type<tc>, window_params = [{pipeline_mode = #tpu.pipeline_mode<synchronous>, transform_indices = @transform_0, window_bounds = array<i64: 11, 10>}, {transform_indices = @transform_1, window_bounds = array<i64: 1, 512>}, {transform_indices = @transform_2, window_bounds = array<i64: 10, 512>}, {transform_indices = @transform_3, window_bounds = array<i64: 10, 512>}, {transform_indices = @transform_4, window_bounds = array<i64: 11, 512>}, {transform_indices = @transform_5, window_bounds = array<i64: 1, 512>}, {transform_indices = @transform_6, window_bounds = array<i64: 1, 512>}]} {
    %c0 = arith.constant 0 : index
    %c0_0 = arith.constant 0 : index
    %0 = vector.load %arg2[%c0, %c0_0] : memref<1x512xf32, #tpu.memory_space<vmem>>, vector<1x512xf32>
    %c0_1 = arith.constant 0 : index
    %c0_2 = arith.constant 0 : index
    %1 = vector.load %arg1[%c0_1, %c0_2] : memref<11x10xf32, #tpu.memory_space<vmem>>, vector<11x10xf32>
    %c0_3 = arith.constant 0 : index
    %c0_4 = arith.constant 0 : index
    %2 = vector.load %arg3[%c0_3, %c0_4] : memref<10x512xf32, #tpu.memory_space<vmem>>, vector<10x512xf32>
    %cst = arith.constant 1.250000e-01 : f32
    %3 = vector.broadcast %cst : f32 to vector<10x512xf32>
    %4 = arith.mulf %2, %3 : vector<10x512xf32>
    %c0_5 = arith.constant 0 : index
    %c0_6 = arith.constant 0 : index
    %5 = vector.load %arg4[%c0_5, %c0_6] : memref<10x512xf32, #tpu.memory_space<vmem>>, vector<10x512xf32>
    %cst_7 = arith.constant 1.250000e-01 : f32
    %6 = vector.broadcast %cst_7 : f32 to vector<10x512xf32>
    %7 = arith.mulf %5, %6 : vector<10x512xf32>
    %c0_8 = arith.constant 0 : index
    %c0_9 = arith.constant 0 : index
    %8 = vector.load %arg5[%c0_8, %c0_9] : memref<11x512xf32, #tpu.memory_space<vmem>>, vector<11x512xf32>
    %cst_10 = arith.constant dense<0xFF800000> : vector<512xf32>
    %9 = vector.multi_reduction <maximumf>, %4, %cst_10 [0] : vector<10x512xf32> to vector<512xf32>
    %10 = vector.shape_cast %9 : vector<512xf32> to vector<1x512xf32>
    %11 = vector.broadcast %10 : vector<1x512xf32> to vector<10x512xf32>
    %12 = arith.subf %4, %11 : vector<10x512xf32>
    %13 = math.exp %12 : vector<10x512xf32>
    %cst_11 = arith.constant dense<0.000000e+00> : vector<512xf32>
    %14 = vector.multi_reduction <add>, %13, %cst_11 [0] : vector<10x512xf32> to vector<512xf32>
    %15 = vector.shape_cast %14 : vector<512xf32> to vector<1x512xf32>
    %16 = vector.broadcast %15 : vector<1x512xf32> to vector<10x512xf32>
    %17 = arith.divf %13, %16 : vector<10x512xf32>
    %cst_12 = arith.constant 9.900000e-01 : f32
    %18 = vector.broadcast %cst_12 : f32 to vector<10x512xf32>
    %19 = arith.mulf %18, %17 : vector<10x512xf32>
    %cst_13 = arith.constant 1.000000e-03 : f32
    %20 = vector.broadcast %cst_13 : f32 to vector<10x512xf32>
    %21 = arith.addf %20, %19 : vector<10x512xf32>
    %cst_14 = arith.constant dense<0xFF800000> : vector<512xf32>
    %22 = vector.multi_reduction <maximumf>, %7, %cst_14 [0] : vector<10x512xf32> to vector<512xf32>
    %23 = vector.shape_cast %22 : vector<512xf32> to vector<1x512xf32>
    %24 = vector.broadcast %23 : vector<1x512xf32> to vector<10x512xf32>
    %25 = arith.subf %7, %24 : vector<10x512xf32>
    %26 = math.exp %25 : vector<10x512xf32>
    %cst_15 = arith.constant dense<0.000000e+00> : vector<512xf32>
    %27 = vector.multi_reduction <add>, %26, %cst_15 [0] : vector<10x512xf32> to vector<512xf32>
    %28 = vector.shape_cast %27 : vector<512xf32> to vector<1x512xf32>
    %29 = vector.broadcast %28 : vector<1x512xf32> to vector<10x512xf32>
    %30 = arith.divf %26, %29 : vector<10x512xf32>
    %cst_16 = arith.constant 9.900000e-01 : f32
    %31 = vector.broadcast %cst_16 : f32 to vector<10x512xf32>
    %32 = arith.mulf %31, %30 : vector<10x512xf32>
    %cst_17 = arith.constant 1.000000e-03 : f32
    %33 = vector.broadcast %cst_17 : f32 to vector<10x512xf32>
    %34 = arith.addf %33, %32 : vector<10x512xf32>
    %35 = tpu.concatenate %21, %34 in 1 : vector<10x512xf32>, vector<10x512xf32> -> vector<10x1024xf32>
    %cst_18 = arith.constant dense<0.000000e+00> : vector<11x1024xf32>
    %36 = tpu.matmul %1, %35, %cst_18 {dimension_numbers = #tpu.dot_dimension_numbers<[1], [0], [0], [1], [0, 0, 1, 1], [], []>} : vector<11x10xf32>, vector<10x1024xf32>, vector<11x1024xf32> -> vector<11x1024xf32>
    %37 = vector.extract_strided_slice %36 {offsets = [0, 0], sizes = [11, 512], strides = [1, 1]} : vector<11x1024xf32> to vector<11x512xf32>
    %38 = vector.extract_strided_slice %36 {offsets = [0, 512], sizes = [11, 512], strides = [1, 1]} : vector<11x1024xf32> to vector<11x512xf32>
    %39 = tpu.iota {dimensions = array<i32: 0>} : vector<11x512xi32>
    %c10_i32 = arith.constant 10 : i32
    %40 = vector.broadcast %c10_i32 : i32 to vector<11x512xi32>
    %41 = arith.cmpi eq, %39, %40 : vector<11x512xi32>
    %cst_19 = arith.constant 1.000000e+00 : f32
    %42 = vector.broadcast %cst_19 : f32 to vector<11x512xf32>
    %43 = arith.select %41, %42, %37 : vector<11x512xi1>, vector<11x512xf32>
    %cst_20 = arith.constant 1.000000e+00 : f32
    %44 = vector.broadcast %cst_20 : f32 to vector<11x512xf32>
    %45 = arith.select %41, %44, %38 : vector<11x512xi1>, vector<11x512xf32>
    %cst_21 = arith.constant 0.000000e+00 : f32
    %46 = vector.broadcast %cst_21 : f32 to vector<11x512xf32>
    %47 = arith.maximumf %8, %46 : vector<11x512xf32>
    %48 = math.absf %8 : vector<11x512xf32>
    %cst_22 = arith.constant 0.000000e+00 : f32
    %49 = vector.broadcast %cst_22 : f32 to vector<11x512xf32>
    %50 = arith.subf %49, %48 : vector<11x512xf32>
    %51 = math.exp %50 : vector<11x512xf32>
    %52 = math.log1p %51 : vector<11x512xf32>
    %53 = arith.addf %47, %52 : vector<11x512xf32>
    %cst_23 = arith.constant 1.000000e-03 : f32
    %54 = vector.broadcast %cst_23 : f32 to vector<11x512xf32>
    %55 = arith.addf %54, %53 : vector<11x512xf32>
    %cst_24 = arith.constant 9.99999997E-7 : f32
    %56 = vector.broadcast %cst_24 : f32 to vector<11x512xf32>
    %57 = arith.addf %43, %56 : vector<11x512xf32>
    %58 = arith.select %41, %57, %43 : vector<11x512xi1>, vector<11x512xf32>
    %59 = vector.broadcast %0 : vector<1x512xf32> to vector<11x512xf32>
    %60 = arith.cmpf oge, %59, %58 : vector<11x512xf32>
    %61 = arith.extui %60 : vector<11x512xi1> to vector<11x512xi32>
    %cst_25 = arith.constant dense<0> : vector<512xi32>
    %62 = vector.multi_reduction <add>, %61, %cst_25 [0] : vector<11x512xi32> to vector<512xi32>
    %63 = vector.shape_cast %62 : vector<512xi32> to vector<1x512xi32>
    %c1_i32 = arith.constant 1 : i32
    %64 = vector.broadcast %c1_i32 : i32 to vector<1x512xi32>
    %65 = arith.subi %63, %64 : vector<1x512xi32>
    %c0_i32 = arith.constant 0 : i32
    %c9_i32 = arith.constant 9 : i32
    %66 = vector.broadcast %c0_i32 : i32 to vector<1x512xi32>
    %67 = arith.maxsi %66, %65 : vector<1x512xi32>
    %68 = vector.broadcast %c9_i32 : i32 to vector<1x512xi32>
    %69 = arith.minsi %68, %67 : vector<1x512xi32>
    %70 = vector.broadcast %69 : vector<1x512xi32> to vector<11x512xi32>
    %71 = arith.cmpi eq, %39, %70 : vector<11x512xi32>
    %72 = arith.extui %71 : vector<11x512xi1> to vector<11x512xi32>
    %73 = arith.sitofp %72 : vector<11x512xi32> to vector<11x512xf32>
    %c1_i32_26 = arith.constant 1 : i32
    %74 = vector.broadcast %c1_i32_26 : i32 to vector<1x512xi32>
    %75 = arith.addi %69, %74 : vector<1x512xi32>
    %76 = vector.broadcast %75 : vector<1x512xi32> to vector<11x512xi32>
    %77 = arith.cmpi eq, %39, %76 : vector<11x512xi32>
    %78 = arith.extui %77 : vector<11x512xi1> to vector<11x512xi32>
    %79 = arith.sitofp %78 : vector<11x512xi32> to vector<11x512xf32>
    %80 = arith.mulf %43, %73 : vector<11x512xf32>
    %cst_27 = arith.constant dense<0.000000e+00> : vector<512xf32>
    %81 = vector.multi_reduction <add>, %80, %cst_27 [0] : vector<11x512xf32> to vector<512xf32>
    %82 = vector.shape_cast %81 : vector<512xf32> to vector<1x512xf32>
    %83 = arith.mulf %43, %79 : vector<11x512xf32>
    %cst_28 = arith.constant dense<0.000000e+00> : vector<512xf32>
    %84 = vector.multi_reduction <add>, %83, %cst_28 [0] : vector<11x512xf32> to vector<512xf32>
    %85 = vector.shape_cast %84 : vector<512xf32> to vector<1x512xf32>
    %86 = arith.subf %85, %82 : vector<1x512xf32>
    %87 = arith.mulf %45, %73 : vector<11x512xf32>
    %cst_29 = arith.constant dense<0.000000e+00> : vector<512xf32>
    %88 = vector.multi_reduction <add>, %87, %cst_29 [0] : vector<11x512xf32> to vector<512xf32>
    %89 = vector.shape_cast %88 : vector<512xf32> to vector<1x512xf32>
    %90 = arith.mulf %45, %79 : vector<11x512xf32>
    %cst_30 = arith.constant dense<0.000000e+00> : vector<512xf32>
    %91 = vector.multi_reduction <add>, %90, %cst_30 [0] : vector<11x512xf32> to vector<512xf32>
    %92 = vector.shape_cast %91 : vector<512xf32> to vector<1x512xf32>
    %93 = arith.subf %92, %89 : vector<1x512xf32>
    %94 = arith.mulf %55, %73 : vector<11x512xf32>
    %cst_31 = arith.constant dense<0.000000e+00> : vector<512xf32>
    %95 = vector.multi_reduction <add>, %94, %cst_31 [0] : vector<11x512xf32> to vector<512xf32>
    %96 = vector.shape_cast %95 : vector<512xf32> to vector<1x512xf32>
    %97 = arith.mulf %55, %79 : vector<11x512xf32>
    %cst_32 = arith.constant dense<0.000000e+00> : vector<512xf32>
    %98 = vector.multi_reduction <add>, %97, %cst_32 [0] : vector<11x512xf32> to vector<512xf32>
    %99 = vector.shape_cast %98 : vector<512xf32> to vector<1x512xf32>
    %100 = arith.divf %93, %86 : vector<1x512xf32>
    %101 = arith.subf %0, %82 : vector<1x512xf32>
    %102 = arith.divf %101, %86 : vector<1x512xf32>
    %cst_33 = arith.constant 1.000000e+00 : f32
    %103 = vector.broadcast %cst_33 : f32 to vector<1x512xf32>
    %104 = arith.subf %103, %102 : vector<1x512xf32>
    %105 = arith.mulf %102, %104 : vector<1x512xf32>
    %106 = arith.mulf %102, %102 : vector<1x512xf32>
    %107 = arith.mulf %100, %106 : vector<1x512xf32>
    %108 = arith.mulf %96, %105 : vector<1x512xf32>
    %109 = arith.addf %107, %108 : vector<1x512xf32>
    %110 = arith.mulf %93, %109 : vector<1x512xf32>
    %111 = arith.addf %96, %99 : vector<1x512xf32>
    %cst_34 = arith.constant 2.000000e+00 : f32
    %112 = vector.broadcast %cst_34 : f32 to vector<1x512xf32>
    %113 = arith.mulf %112, %100 : vector<1x512xf32>
    %114 = arith.subf %111, %113 : vector<1x512xf32>
    %115 = arith.mulf %114, %105 : vector<1x512xf32>
    %116 = arith.addf %100, %115 : vector<1x512xf32>
    %cst_35 = arith.constant 1.000000e+00 : f32
    %117 = vector.broadcast %cst_35 : f32 to vector<1x512xf32>
    %118 = arith.divf %117, %116 : vector<1x512xf32>
    %119 = arith.mulf %110, %118 : vector<1x512xf32>
    %120 = arith.addf %89, %119 : vector<1x512xf32>
    %c0_36 = arith.constant 0 : index
    %c0_37 = arith.constant 0 : index
    %121 = vector.load %arg6[%c0_36, %c0_37] : memref<1x512xf32, #tpu.memory_space<vmem>>, vector<1x512xf32>
    tpu.vector_store %arg6[%c0_36, %c0_37], %120 {strides = array<i32>} : memref<1x512xf32, #tpu.memory_space<vmem>>, vector<1x512xf32>,
    %122 = arith.mulf %100, %100 : vector<1x512xf32>
    %123 = arith.mulf %99, %106 : vector<1x512xf32>
    %cst_38 = arith.constant 2.000000e+00 : f32
    %124 = vector.broadcast %cst_38 : f32 to vector<1x512xf32>
    %125 = arith.mulf %124, %100 : vector<1x512xf32>
    %126 = arith.mulf %125, %105 : vector<1x512xf32>
    %127 = arith.addf %123, %126 : vector<1x512xf32>
    %cst_39 = arith.constant 1.000000e+00 : f32
    %128 = vector.broadcast %cst_39 : f32 to vector<1x512xf32>
    %129 = arith.subf %128, %102 : vector<1x512xf32>
    %130 = arith.mulf %96, %129 : vector<1x512xf32>
    %cst_40 = arith.constant 1.000000e+00 : f32
    %131 = vector.broadcast %cst_40 : f32 to vector<1x512xf32>
    %132 = arith.subf %131, %102 : vector<1x512xf32>
    %133 = arith.mulf %130, %132 : vector<1x512xf32>
    %134 = arith.addf %127, %133 : vector<1x512xf32>
    %135 = arith.mulf %122, %134 : vector<1x512xf32>
    %136 = arith.mulf %135, %118 : vector<1x512xf32>
    %137 = arith.mulf %136, %118 : vector<1x512xf32>
    %138 = math.log %137 : vector<1x512xf32>
    %c0_41 = arith.constant 0 : index
    %c0_42 = arith.constant 0 : index
    %139 = vector.load %arg7[%c0_41, %c0_42] : memref<1x512xf32, #tpu.memory_space<vmem>>, vector<1x512xf32>
    tpu.vector_store %arg7[%c0_41, %c0_42], %138 {strides = array<i32>} : memref<1x512xf32, #tpu.memory_space<vmem>>, vector<1x512xf32>,
    return
  }
  func.func @transform_0(%arg0: i32) -> (i32, i32) {
    %c0_i32 = arith.constant 0 : i32
    %c0_i32_0 = arith.constant 0 : i32
    %c0_i32_1 = arith.constant 0 : i32
    return %c0_i32, %c0_i32_0 : i32, i32
  }
  func.func @transform_1(%arg0: i32) -> (i32, i32) {
    %c0_i32 = arith.constant 0 : i32
    %c0_i32_0 = arith.constant 0 : i32
    return %c0_i32, %arg0 : i32, i32
  }
  func.func @transform_2(%arg0: i32) -> (i32, i32) {
    %c0_i32 = arith.constant 0 : i32
    %c0_i32_0 = arith.constant 0 : i32
    return %c0_i32, %arg0 : i32, i32
  }
  func.func @transform_3(%arg0: i32) -> (i32, i32) {
    %c0_i32 = arith.constant 0 : i32
    %c0_i32_0 = arith.constant 0 : i32
    return %c0_i32, %arg0 : i32, i32
  }
  func.func @transform_4(%arg0: i32) -> (i32, i32) {
    %c0_i32 = arith.constant 0 : i32
    %c0_i32_0 = arith.constant 0 : i32
    return %c0_i32, %arg0 : i32, i32
  }
  func.func @transform_5(%arg0: i32) -> (i32, i32) {
    %c0_i32 = arith.constant 0 : i32
    %c0_i32_0 = arith.constant 0 : i32
    return %c0_i32, %arg0 : i32, i32
  }
  func.func @transform_6(%arg0: i32) -> (i32, i32) {
    %c0_i32 = arith.constant 0 : i32
    %c0_i32_0 = arith.constant 0 : i32
    return %c0_i32, %arg0 : i32, i32
  }
}

module attributes {stable_mosaic.version = 11 : i64} {
  func.func @made_kernel(%arg0: i32, %arg1: i32, %arg2: memref<8x1024xf32, #tpu.memory_space<vmem>>, %arg3: memref<1024x64xbf16, #tpu.memory_space<vmem>>, %arg4: memref<1x64xf32, #tpu.memory_space<vmem>>, %arg5: memref<64x512xbf16, #tpu.memory_space<vmem>>, %arg6: memref<1x512xf32, #tpu.memory_space<vmem>>, %arg7: memref<8x512xf32, #tpu.memory_space<vmem>>) attributes {dimension_semantics = [#tpu.dimension_semantics<parallel>, #tpu.dimension_semantics<parallel>], iteration_bounds = array<i64: 1, 62>, scalar_prefetch = 0 : i64, scratch_operands = 0 : i64, tpu.core_type = #tpu.core_type<tc>, window_params = [{transform_indices = @transform_0, window_bounds = array<i64: 8, 1024>}, {pipeline_mode = #tpu.pipeline_mode<synchronous>, transform_indices = @transform_1, window_bounds = array<i64: 1024, 64>}, {pipeline_mode = #tpu.pipeline_mode<synchronous>, transform_indices = @transform_2, window_bounds = array<i64: 1, 64>}, {transform_indices = @transform_3, window_bounds = array<i64: 64, 512>}, {transform_indices = @transform_4, window_bounds = array<i64: 1, 512>}, {transform_indices = @transform_5, window_bounds = array<i64: 8, 512>}]} {
    %c0 = arith.constant 0 : index
    %c0_0 = arith.constant 0 : index
    %0 = vector.load %arg2[%c0, %c0_0] : memref<8x1024xf32, #tpu.memory_space<vmem>>, vector<8x1024xf32>
    %1 = arith.truncf %0 : vector<8x1024xf32> to vector<8x1024xbf16>
    %c0_1 = arith.constant 0 : index
    %c0_2 = arith.constant 0 : index
    %2 = vector.load %arg3[%c0_1, %c0_2] : memref<1024x64xbf16, #tpu.memory_space<vmem>>, vector<1024x64xbf16>
    %cst = arith.constant dense<0.000000e+00> : vector<8x64xf32>
    %3 = tpu.matmul %1, %2, %cst {dimension_numbers = #tpu.dot_dimension_numbers<[1], [0], [0], [1], [0, 0, 1, 1], [], []>} : vector<8x1024xbf16>, vector<1024x64xbf16>, vector<8x64xf32> -> vector<8x64xf32>
    %c0_3 = arith.constant 0 : index
    %c0_4 = arith.constant 0 : index
    %4 = vector.load %arg4[%c0_3, %c0_4] : memref<1x64xf32, #tpu.memory_space<vmem>>, vector<1x64xf32>
    %5 = vector.broadcast %4 : vector<1x64xf32> to vector<8x64xf32>
    %6 = arith.addf %3, %5 : vector<8x64xf32>
    %cst_5 = arith.constant 0.000000e+00 : f32
    %7 = vector.broadcast %cst_5 : f32 to vector<8x64xf32>
    %8 = arith.maximumf %6, %7 : vector<8x64xf32>
    %9 = arith.truncf %8 : vector<8x64xf32> to vector<8x64xbf16>
    %c0_6 = arith.constant 0 : index
    %c0_7 = arith.constant 0 : index
    %10 = vector.load %arg5[%c0_6, %c0_7] : memref<64x512xbf16, #tpu.memory_space<vmem>>, vector<64x512xbf16>
    %cst_8 = arith.constant dense<0.000000e+00> : vector<8x512xf32>
    %11 = tpu.matmul %9, %10, %cst_8 {dimension_numbers = #tpu.dot_dimension_numbers<[1], [0], [0], [1], [0, 0, 1, 1], [], []>} : vector<8x64xbf16>, vector<64x512xbf16>, vector<8x512xf32> -> vector<8x512xf32>
    %c0_9 = arith.constant 0 : index
    %c0_10 = arith.constant 0 : index
    %12 = vector.load %arg6[%c0_9, %c0_10] : memref<1x512xf32, #tpu.memory_space<vmem>>, vector<1x512xf32>
    %13 = vector.broadcast %12 : vector<1x512xf32> to vector<8x512xf32>
    %14 = arith.addf %11, %13 : vector<8x512xf32>
    %c0_11 = arith.constant 0 : index
    %c0_12 = arith.constant 0 : index
    %15 = vector.load %arg7[%c0_11, %c0_12] : memref<8x512xf32, #tpu.memory_space<vmem>>, vector<8x512xf32>
    tpu.vector_store %arg7[%c0_11, %c0_12], %14 {strides = array<i32>} : memref<8x512xf32, #tpu.memory_space<vmem>>, vector<8x512xf32>,
    return
  }
  func.func @transform_0(%arg0: i32, %arg1: i32) -> (i32, i32) {
    %c0_i32 = arith.constant 0 : i32
    %c0_i32_0 = arith.constant 0 : i32
    return %arg0, %c0_i32 : i32, i32
  }
  func.func @transform_1(%arg0: i32, %arg1: i32) -> (i32, i32) {
    %c0_i32 = arith.constant 0 : i32
    %c0_i32_0 = arith.constant 0 : i32
    %c0_i32_1 = arith.constant 0 : i32
    return %c0_i32, %c0_i32_0 : i32, i32
  }
  func.func @transform_2(%arg0: i32, %arg1: i32) -> (i32, i32) {
    %c0_i32 = arith.constant 0 : i32
    %c0_i32_0 = arith.constant 0 : i32
    %c0_i32_1 = arith.constant 0 : i32
    return %c0_i32, %c0_i32_0 : i32, i32
  }
  func.func @transform_3(%arg0: i32, %arg1: i32) -> (i32, i32) {
    %c0_i32 = arith.constant 0 : i32
    %c0_i32_0 = arith.constant 0 : i32
    return %c0_i32, %arg1 : i32, i32
  }
  func.func @transform_4(%arg0: i32, %arg1: i32) -> (i32, i32) {
    %c0_i32 = arith.constant 0 : i32
    %c0_i32_0 = arith.constant 0 : i32
    return %c0_i32, %arg1 : i32, i32
  }
  func.func @transform_5(%arg0: i32, %arg1: i32) -> (i32, i32) {
    %c0_i32 = arith.constant 0 : i32
    return %arg0, %arg1 : i32, i32
  }
}

</mosaic_0001>

<llo_original>
// kernel: _lambda_.4
$region0: #{_lambda_.4}
  #allocation0 [shape = 'u32[]', space=smem, size = 0x4, offset = 0x4, fixed_abs, tag = 'smem constant byte address 0x4 - core index']
  #allocation1 [shape = 'u32[144,128]{1,0:T(1,128)}', space=vmem, size = 0x12000, scoped, tag = 'internal scratch']
  %s0 = inlined_call_operand.vmem [shape: f32[8,1024], index: 0, kind: input, shape index: {}]
  %s1 = inlined_call_operand.hbm [shape: bf16[1024,64], index: 1, kind: input, shape index: {}]
  %s2 = inlined_call_operand.hbm [shape: f32[1,64], index: 2, kind: input, shape index: {}]
  %s3 = inlined_call_operand.hbm [shape: bf16[64,31744], index: 3, kind: input, shape index: {}]
  %s4 = inlined_call_operand.hbm [shape: f32[1,31744], index: 4, kind: input, shape index: {}]
  %s5 = inlined_call_operand.vmem [shape: f32[8,31744], index: 5, kind: output, shape index: {}]
  %s6 = sld [smem:[#allocation0]]
  $region69: #{_lambda_.4} parent=0
    _
  %s8 = ssub.s32 1, %s6
  %s9 = scalar_select 0, %s8, %s6
  $region1: #{_lambda_.4} parent=0
    #allocation2 [shape = 'u8[262144]{0}', space=vmem, size = 0x40000, scoped, tag = 'input window, operand 1, single buffered']
    #allocation3 [shape = 's32[2]{0}', space=sflag, size = 0x8, scoped, tag = 'scoped memory for _lambda_.4']
    #allocation4 [shape = 'u8[512]{0}', space=vmem, size = 0x400, scoped, tag = 'input window, operand 2, single buffered']
    #allocation5 [shape = 's32[1]{0}', space=sflag, size = 0x4, scoped, tag = 'scoped memory for _lambda_.4']
    #allocation6 [shape = 'u8[131072]{0}', space=vmem, size = 0x20000, scoped, tag = 'input window, operand 3']
    #allocation7 [shape = 'u8[4096]{0}', space=vmem, size = 0x1000, scoped, tag = 'input window, operand 4']
    %10 = vsyncpa [#allocation3], 0
    %11 = vsyncpa [#allocation5], 0
    loop: start=0, step=1, limit=64
    $region2: #{_lambda_.4} parent=1 // loop_pre_header
      _
    $region3: #{_lambda_.4} parent=1 // loop_header
      %s13 = sphi 0, %s17
      %p14 = scmp.ge.s32.totalorder %s13, 64
      %s20 = sphi 0, %s32
      %s21 = sphi 0, %s28
      %s22 = sphi 0, %s20
      %s23 = sphi 0, %s21
      %s24 = sphi 0, %s22
      %s25 = sphi 0, %s23
      %s35 = sphi 0, %s37
      %s38 = sphi 0, %s35
      %s39 = sphi 0, %s38
      %s55 = sphi 0, %s39
      %s59 = sphi 0, %s59
      %s61 = sphi 0, %s59
      %s62 = sphi 0, %s61
      %s76 = sphi 0, %s62
      %s80 = sphi 0, %s80
      %s82 = sphi 0, %s80
      %s83 = sphi 0, %s82
      %s97 = sphi 0, %s83
      %s103 = sphi 0, %s105
      %s106 = sphi 0, %s103
      %s107 = sphi 0, %s106
      %s123 = sphi 0, %s107
      %s129 = sphi 0, %s131
      %s132 = sphi 0, %s129
      %s133 = sphi 0, %s132
      %s149 = sphi 0, %s133
      %s157 = sphi 0, %s159
      %s160 = sphi 0, %s157
      %s161 = sphi 0, %s160
      %s177 = sphi 0, %s161
    $region4: #{_lambda_.4} parent=1 // loop_header_branch
      %16 = sbr.rel (%p14) target = $region8
    $region5: #{_lambda_.4} parent=1 // loop_body
      %s18 = ssub.s32 %s13, 1
      %s19 = ssub.s32 %s13, 2
      %s26 = sadd.s32 1, %s21
      %p27 = scmp.ge.s32.totalorder %s26, 62
      %s28 = scalar_select %p27, 0, %s26
      %s29 = sadd.s32 1, %s20
      %s30 = scalar_select %p27, %s29, %s20
      %p31 = scmp.ge.s32.totalorder %s30, 1
      %s32 = scalar_select %p31, 0, %s30
      %s33 = ssub.s32 %s20, %s32
      %p34 = scmp.eq.s32.totalorder %s33, 0
      %s36 = sadd.s32 %s35, 1
      %s37 = scalar_select %p34, %s35, %s36
      %p40 = pneg %p34
      %p41 = scmp.eq.s32.totalorder %s13, 61
      %p42 = por %p40, %p41
      %p43 = scmp.ne.s32.totalorder %s35, %s38
      %p44 = scmp.eq.s32.totalorder %s13, 0
      %p45 = por %p43, %p44
      %p46 = scmp.ne.s32.totalorder %s35, %s38
      %p47 = scmp.eq.s32.totalorder %s18, 61
      %p48 = por %p46, %p47
      %p49 = scmp.ne.s32.totalorder %s38, %s39
      %p50 = scmp.eq.s32.totalorder %s18, 0
      %p51 = por %p49, %p50
      %p52 = scmp.ne.s32.totalorder %s38, %s39
      %p53 = scmp.eq.s32.totalorder %s19, 61
      %p54 = por %p52, %p53
      %p56 = scmp.ne.s32.totalorder %s39, %s55
      %p57 = scmp.eq.s32.totalorder %s19, 0
      %p58 = por %p56, %p57
      %s60 = sadd.s32 %s59, 1
      %p63 = scmp.eq.s32.totalorder %s13, 61
      %p64 = scmp.ne.s32.totalorder %s59, %s61
      %p65 = scmp.eq.s32.totalorder %s13, 0
      %p66 = por %p64, %p65
      %p67 = scmp.ne.s32.totalorder %s59, %s61
      %p68 = scmp.eq.s32.totalorder %s18, 61
      %p69 = por %p67, %p68
      %p70 = scmp.ne.s32.totalorder %s61, %s62
      %p71 = scmp.eq.s32.totalorder %s18, 0
      %p72 = por %p70, %p71
      %p73 = scmp.ne.s32.totalorder %s61, %s62
      %p74 = scmp.eq.s32.totalorder %s19, 61
      %p75 = por %p73, %p74
      %p77 = scmp.ne.s32.totalorder %s62, %s76
      %p78 = scmp.eq.s32.totalorder %s19, 0
      %p79 = por %p77, %p78
      %s81 = sadd.s32 %s80, 1
      %p84 = scmp.eq.s32.totalorder %s13, 61
      %p85 = scmp.ne.s32.totalorder %s80, %s82
      %p86 = scmp.eq.s32.totalorder %s13, 0
      %p87 = por %p85, %p86
      %p88 = scmp.ne.s32.totalorder %s80, %s82
      %p89 = scmp.eq.s32.totalorder %s18, 61
      %p90 = por %p88, %p89
      %p91 = scmp.ne.s32.totalorder %s82, %s83
      %p92 = scmp.eq.s32.totalorder %s18, 0
      %p93 = por %p91, %p92
      %p94 = scmp.ne.s32.totalorder %s82, %s83
      %p95 = scmp.eq.s32.totalorder %s19, 61
      %p96 = por %p94, %p95
      %p98 = scmp.ne.s32.totalorder %s83, %s97
      %p99 = scmp.eq.s32.totalorder %s19, 0
      %p100 = por %p98, %p99
      %s101 = ssub.s32 %s21, %s28
      %p102 = scmp.eq.s32.totalorder %s101, 0
      %s104 = sadd.s32 %s103, 1
      %s105 = scalar_select %p102, %s103, %s104
      %p108 = pneg %p102
      %p109 = scmp.eq.s32.totalorder %s13, 61
      %p110 = por %p108, %p109
      %p111 = scmp.ne.s32.totalorder %s103, %s106
      %p112 = scmp.eq.s32.totalorder %s13, 0
      %p113 = por %p111, %p112
      %p114 = scmp.ne.s32.totalorder %s103, %s106
      %p115 = scmp.eq.s32.totalorder %s18, 61
      %p116 = por %p114, %p115
      %p117 = scmp.ne.s32.totalorder %s106, %s107
      %p118 = scmp.eq.s32.totalorder %s18, 0
      %p119 = por %p117, %p118
      %p120 = scmp.ne.s32.totalorder %s106, %s107
      %p121 = scmp.eq.s32.totalorder %s19, 61
      %p122 = por %p120, %p121
      %p124 = scmp.ne.s32.totalorder %s107, %s123
      %p125 = scmp.eq.s32.totalorder %s19, 0
      %p126 = por %p124, %p125
      %s127 = ssub.s32 %s21, %s28
      %p128 = scmp.eq.s32.totalorder %s127, 0
      %s130 = sadd.s32 %s129, 1
      %s131 = scalar_select %p128, %s129, %s130
      %p134 = pneg %p128
      %p135 = scmp.eq.s32.totalorder %s13, 61
      %p136 = por %p134, %p135
      %p137 = scmp.ne.s32.totalorder %s129, %s132
      %p138 = scmp.eq.s32.totalorder %s13, 0
      %p139 = por %p137, %p138
      %p140 = scmp.ne.s32.totalorder %s129, %s132
      %p141 = scmp.eq.s32.totalorder %s18, 61
      %p142 = por %p140, %p141
      %p143 = scmp.ne.s32.totalorder %s132, %s133
      %p144 = scmp.eq.s32.totalorder %s18, 0
      %p145 = por %p143, %p144
      %p146 = scmp.ne.s32.totalorder %s132, %s133
      %p147 = scmp.eq.s32.totalorder %s19, 61
      %p148 = por %p146, %p147
      %p150 = scmp.ne.s32.totalorder %s133, %s149
      %p151 = scmp.eq.s32.totalorder %s19, 0
      %p152 = por %p150, %p151
      %s153 = ssub.s32 %s20, %s32
      %s154 = ssub.s32 %s21, %s28
      %s155 = sor.u32 %s153, %s154
      %p156 = scmp.eq.s32.totalorder %s155, 0
      %s158 = sadd.s32 %s157, 1
      %s159 = scalar_select %p156, %s157, %s158
      %p162 = pneg %p156
      %p163 = scmp.eq.s32.totalorder %s13, 61
      %p164 = por %p162, %p163
      %p165 = scmp.ne.s32.totalorder %s157, %s160
      %p166 = scmp.eq.s32.totalorder %s13, 0
      %p167 = por %p165, %p166
      %p168 = scmp.ne.s32.totalorder %s157, %s160
      %p169 = scmp.eq.s32.totalorder %s18, 61
      %p170 = por %p168, %p169
      %p171 = scmp.ne.s32.totalorder %s160, %s161
      %p172 = scmp.eq.s32.totalorder %s18, 0
      %p173 = por %p171, %p172
      %p174 = scmp.ne.s32.totalorder %s160, %s161
      %p175 = scmp.eq.s32.totalorder %s19, 61
      %p176 = por %p174, %p175
      %p178 = scmp.ne.s32.totalorder %s161, %s177
      %p179 = scmp.eq.s32.totalorder %s19, 0
      %p180 = por %p178, %p179
      %p181 = scmp.le.s32.totalorder 1, %s13
      %p182 = scmp.lt.s32.totalorder %s13, 63
      %p183 = pnand %p181, %p182
      %p184 = pneg %p183
      // Predicated region
      $region9: #{_lambda_.4} parent=5 // pred_check
        _
      $region10: #{_lambda_.4} parent=5 // pred_check_branch
        %186 = sbr.rel (%p183) target = $region12
      $region11: #{_lambda_.4} parent=5 // pred_region
        %s187 = ssub.s32 %s13, 1
        // Predicated region
        $region13: #{_lambda_.4} parent=11 // pred_check
          %p188 = pneg %p51
        $region14: #{_lambda_.4} parent=11 // pred_check_branch
          %190 = sbr.rel (%p188) target = $region16
        $region15: #{_lambda_.4} parent=11 // pred_region
          %p191 = scmp.lt.s32.totalorder %s22, 0
          %s192 = scalar_select %p191, %s22, 0
          %s193 = smul.addr %s192, 8
          %s194 = smul.addr %s193, 8
          %s195 = scalar_lea.vmem %s0, %s194
        $region16: #{_lambda_.4} parent=11 // pred_fallthru
          _
        // Predicated region
        $region17: #{_lambda_.4} parent=11 // pred_check
          %p196 = pneg %p72
        $region18: #{_lambda_.4} parent=11 // pred_check_branch
          %198 = sbr.rel (%p196) target = $region20
        $region19: #{_lambda_.4} parent=11 // pred_region
          %s200 = ssub.s32 8192, 8192
          %201 = vsyncadd [#allocation3], %s200
          %s202 = sshll.u32 [#allocation2], 4
          %s203 = int_to_ptr.vmem [resolvable:$true] %s202
          %208 = dma.hbm_to_vmem [thread:$0]  %s1, 8192, %s203, [#allocation3], 64, 64, 4
        $region20: #{_lambda_.4} parent=11 // pred_fallthru
          _
        // Predicated region
        $region21: #{_lambda_.4} parent=11 // pred_check
          %p209 = pneg %p93
        $region22: #{_lambda_.4} parent=11 // pred_check_branch
          %211 = sbr.rel (%p209) target = $region24
        $region23: #{_lambda_.4} parent=11 // pred_region
          %s213 = ssub.s32 16, 16
          %214 = vsyncadd [#allocation5], %s213
          %s216 = sshll.u32 [#allocation4], 4
          %s217 = int_to_ptr.vmem [resolvable:$true] %s216
          %219 = dma.hbm_to_vmem [thread:$0]  %s2, 16, %s217, [#allocation5]
        $region24: #{_lambda_.4} parent=11 // pred_fallthru
          _
      $region12: #{_lambda_.4} parent=5 // pred_fallthru
        _
      %p220 = scmp.lt.s32.totalorder %s13, 62
      // Predicated region
      $region25: #{_lambda_.4} parent=5 // pred_check
        %p221 = pneg %p220
      $region26: #{_lambda_.4} parent=5 // pred_check_branch
        %223 = sbr.rel (%p221) target = $region28
      $region27: #{_lambda_.4} parent=5 // pred_region
        // Predicated region
        $region29: #{_lambda_.4} parent=27 // pred_check
          %p224 = pneg %p113
        $region30: #{_lambda_.4} parent=27 // pred_check_branch
          %226 = sbr.rel (%p224) target = $region32
        $region31: #{_lambda_.4} parent=27 // pred_region
          %s227 = sand.u32 %s13, 1
          %s228 = scalar_lea.sflag [#allocation3], %s227
          %s229 = sand.u32 %s103, 1
          %s230 = smul.addr %s229, 128
          %s231 = scalar_lea.vmem [#allocation6], %s230
          %s232 = smul.u32 4, %s21
          %s234 = ssub.s32 2048, 2048
          %235 = vsyncadd %s228, %s234
          %s236 = smul.addr %s232, 64
          %s237 = scalar_lea.hbm %s3, %s236
          %s238 = sshll.u32 %s231, 4
          %s239 = int_to_ptr.vmem [resolvable:$true] %s238
          %244 = dma.hbm_to_vmem [thread:$0]  %s237, 2048, %s239, %s228, 15872, 256, 16
        $region32: #{_lambda_.4} parent=27 // pred_fallthru
          _
        // Predicated region
        $region33: #{_lambda_.4} parent=27 // pred_check
          %p245 = pneg %p139
        $region34: #{_lambda_.4} parent=27 // pred_check_branch
          %247 = sbr.rel (%p245) target = $region36
        $region35: #{_lambda_.4} parent=27 // pred_region
          %s248 = sand.u32 %s13, 1
          %s249 = scalar_lea.sflag [#allocation3], %s248
          %s250 = sand.u32 %s129, 1
          %s251 = smul.addr %s250, 4
          %s252 = scalar_lea.vmem [#allocation7], %s251
          %s253 = smul.u32 4, %s21
          %s255 = ssub.s32 64, 64
          %256 = vsyncadd %s249, %s255
          %s257 = smul.addr %s253, 16
          %s258 = scalar_lea.hbm %s4, %s257
          %s260 = sshll.u32 %s252, 4
          %s261 = int_to_ptr.vmem [resolvable:$true] %s260
          %263 = dma.hbm_to_vmem [thread:$0]  %s258, 64, %s261, %s249
        $region36: #{_lambda_.4} parent=27 // pred_fallthru
          _
      $region28: #{_lambda_.4} parent=5 // pred_fallthru
        _
      %p264 = scmp.le.s32.totalorder 1, %s13
      %p265 = scmp.lt.s32.totalorder %s13, 63
      %p266 = pnand %p264, %p265
      %p267 = pneg %p266
      // Predicated region
      $region37: #{_lambda_.4} parent=5 // pred_check
        _
      $region38: #{_lambda_.4} parent=5 // pred_check_branch
        %269 = sbr.rel (%p266) target = $region40
      $region39: #{_lambda_.4} parent=5 // pred_region
        %s270 = ssub.s32 %s13, 1
        // Predicated region
        $region41: #{_lambda_.4} parent=39 // pred_check
          %p271 = pneg %p72
        $region42: #{_lambda_.4} parent=39 // pred_check_branch
          %273 = sbr.rel (%p271) target = $region44
        $region43: #{_lambda_.4} parent=39 // pred_region
          %274 = dma.done [#allocation3], 8192
        $region44: #{_lambda_.4} parent=39 // pred_fallthru
          _
        // Predicated region
        $region45: #{_lambda_.4} parent=39 // pred_check
          %p275 = pneg %p93
        $region46: #{_lambda_.4} parent=39 // pred_check_branch
          %277 = sbr.rel (%p275) target = $region48
        $region47: #{_lambda_.4} parent=39 // pred_region
          %278 = dma.done [#allocation5], 16
        $region48: #{_lambda_.4} parent=39 // pred_fallthru
          _
        %s279 = sand.u32 %s18, 1
        %s280 = scalar_lea.sflag [#allocation3], %s279
        %s281 = sand.u32 %s106, 1
        %s282 = smul.addr %s281, 128
        %s283 = scalar_lea.vmem [#allocation6], %s282
        // Predicated region
        $region49: #{_lambda_.4} parent=39 // pred_check
          %p284 = pneg %p119
        $region50: #{_lambda_.4} parent=39 // pred_check_branch
          %286 = sbr.rel (%p284) target = $region52
        $region51: #{_lambda_.4} parent=39 // pred_region
          %287 = dma.done %s280, 2048
        $region52: #{_lambda_.4} parent=39 // pred_fallthru
          _
        %s288 = sand.u32 %s18, 1
        %s289 = scalar_lea.sflag [#allocation3], %s288
        %s290 = sand.u32 %s132, 1
        %s291 = smul.addr %s290, 4
        %s292 = scalar_lea.vmem [#allocation7], %s291
        // Predicated region
        $region53: #{_lambda_.4} parent=39 // pred_check
          %p293 = pneg %p145
        $region54: #{_lambda_.4} parent=39 // pred_check_branch
          %295 = sbr.rel (%p293) target = $region56
        $region55: #{_lambda_.4} parent=39 // pred_region
          %296 = dma.done %s289, 64
        $region56: #{_lambda_.4} parent=39 // pred_fallthru
          _
        %p297 = scmp.lt.s32.totalorder %s22, 0
        %s298 = scalar_select %p297, %s22, 0
        %s299 = smul.addr %s298, 8
        %s300 = smul.addr %s299, 8
        %s301 = scalar_lea.vmem %s0, %s300
        %p302 = pneg %p51
        %p303 = pneg %p48
        %p304 = pneg %p72
        %p305 = pneg %p69
        %p306 = pneg %p93
        %p307 = pneg %p90
        %s308 = sand.u32 %s18, 1
        %s309 = scalar_lea.sflag [#allocation3], %s308
        %s310 = sand.u32 %s106, 1
        %s311 = smul.addr %s310, 128
        %s312 = scalar_lea.vmem [#allocation6], %s311
        %p313 = pneg %p119
        %p314 = pneg %p116
        %s315 = sand.u32 %s18, 1
        %s316 = scalar_lea.sflag [#allocation3], %s315
        %s317 = sand.u32 %s132, 1
        %s318 = smul.addr %s317, 4
        %s319 = scalar_lea.vmem [#allocation7], %s318
        %p320 = pneg %p145
        %p321 = pneg %p142
        %p322 = pneg %p173
        %p323 = pneg %p170
        %s324 = smul.u32 4, %s23
        %p325 = scmp.lt.s32.totalorder %s22, 0
        %s326 = scalar_select %p325, %s22, 0
        %p327 = scmp.lt.s32.totalorder %s324, 247
        %s328 = scalar_select %p327, %s324, 247
        %s329 = smul.addr %s326, 248
        %s330 = sadd.s32 %s328, %s329
        %s331 = smul.addr %s330, 8
        %s332 = scalar_lea.vmem %s5, %s331
        %p333 = scmp.lt.s32.totalorder %s22, 0
        %s334 = scalar_select %p333, %s22, 0
        %s335 = smul.addr %s334, 8
        %s336 = smul.addr %s335, 8
        %s337 = scalar_lea.vmem %s0, %s336
        %s338 = smul.u32 4, %s23
        %s339 = smul.u32 4, %s23
        %s340 = smul.u32 4, %s23
        %p341 = scmp.lt.s32.totalorder %s22, 0
        %s342 = scalar_select %p341, %s22, 0
        %p343 = scmp.lt.s32.totalorder %s340, 247
        %s344 = scalar_select %p343, %s340, 247
        %s345 = smul.addr %s342, 248
        %s346 = sadd.s32 %s344, %s345
        %s347 = smul.addr %s346, 8
        %s348 = scalar_lea.vmem %s5, %s347
        %s349 = smul.u32 4, %s23
        %v351 = vld [vmem:[%s337] sm:$0xff]
        %v352 = vld [vmem:[%s337 + $0x8] sm:$0xff]
        %v353 = vld [vmem:[%s337 + $0x10] sm:$0xff]
        %v354 = vld [vmem:[%s337 + $0x18] sm:$0xff]
        %v355 = vld [vmem:[%s337 + $0x20] sm:$0xff]
        %v356 = vld [vmem:[%s337 + $0x28] sm:$0xff]
        %v357 = vld [vmem:[%s337 + $0x30] sm:$0xff]
        %v358 = vld [vmem:[%s337 + $0x38] sm:$0xff]
        %v359 = vpack.c.bf16 %v351, %v351
        %v360 = vpack.c.bf16 %v352, %v352
        %v361 = vpack.c.bf16 %v353, %v353
        %v362 = vpack.c.bf16 %v354, %v354
        %v363 = vpack.c.bf16 %v355, %v355
        %v364 = vpack.c.bf16 %v356, %v356
        %v365 = vpack.c.bf16 %v357, %v357
        %v366 = vpack.c.bf16 %v358, %v358
        %v367 = vld [vmem:[#allocation2] sm:$0xf]
        %v368 = vld [vmem:[#allocation2 + $0x4] sm:$0xf]
        %v369 = vld [vmem:[#allocation2 + $0x8] sm:$0xf]
        %v370 = vld [vmem:[#allocation2 + $0xc] sm:$0xf]
        %v371 = vld [vmem:[#allocation2 + $0x10] sm:$0xf]
        %v372 = vld [vmem:[#allocation2 + $0x14] sm:$0xf]
        %v373 = vld [vmem:[#allocation2 + $0x18] sm:$0xf]
        %v374 = vld [vmem:[#allocation2 + $0x1c] sm:$0xf]
        %v375 = vld [vmem:[#allocation2 + $0x20] sm:$0xf]
        %v376 = vld [vmem:[#allocation2 + $0x24] sm:$0xf]
        %v377 = vld [vmem:[#allocation2 + $0x28] sm:$0xf]
        %v378 = vld [vmem:[#allocation2 + $0x2c] sm:$0xf]
        %v379 = vld [vmem:[#allocation2 + $0x30] sm:$0xf]
        %v380 = vld [vmem:[#allocation2 + $0x34] sm:$0xf]
        %v381 = vld [vmem:[#allocation2 + $0x38] sm:$0xf]
        %v382 = vld [vmem:[#allocation2 + $0x3c] sm:$0xf]
        %v383 = vld [vmem:[#allocation2 + $0x40] sm:$0xf]
        %v384 = vld [vmem:[#allocation2 + $0x44] sm:$0xf]
        %v385 = vld [vmem:[#allocation2 + $0x48] sm:$0xf]
        %v386 = vld [vmem:[#allocation2 + $0x4c] sm:$0xf]
        %v387 = vld [vmem:[#allocation2 + $0x50] sm:$0xf]
        %v388 = vld [vmem:[#allocation2 + $0x54] sm:$0xf]
        %v389 = vld [vmem:[#allocation2 + $0x58] sm:$0xf]
        %v390 = vld [vmem:[#allocation2 + $0x5c] sm:$0xf]
        %v391 = vld [vmem:[#allocation2 + $0x60] sm:$0xf]
        %v392 = vld [vmem:[#allocation2 + $0x64] sm:$0xf]
        %v393 = vld [vmem:[#allocation2 + $0x68] sm:$0xf]
        %v394 = vld [vmem:[#allocation2 + $0x6c] sm:$0xf]
        %v395 = vld [vmem:[#allocation2 + $0x70] sm:$0xf]
        %v396 = vld [vmem:[#allocation2 + $0x74] sm:$0xf]
        %v397 = vld [vmem:[#allocation2 + $0x78] sm:$0xf]
        %v398 = vld [vmem:[#allocation2 + $0x7c] sm:$0xf]
        %v399 = vld [vmem:[#allocation2 + $0x80] sm:$0xf]
        %v400 = vld [vmem:[#allocation2 + $0x84] sm:$0xf]
        %v401 = vld [vmem:[#allocation2 + $0x88] sm:$0xf]
        %v402 = vld [vmem:[#allocation2 + $0x8c] sm:$0xf]
        %v403 = vld [vmem:[#allocation2 + $0x90] sm:$0xf]
        %v404 = vld [vmem:[#allocation2 + $0x94] sm:$0xf]
        %v405 = vld [vmem:[#allocation2 + $0x98] sm:$0xf]
        %v406 = vld [vmem:[#allocation2 + $0x9c] sm:$0xf]
        %v407 = vld [vmem:[#allocation2 + $0xa0] sm:$0xf]
        %v408 = vld [vmem:[#allocation2 + $0xa4] sm:$0xf]
        %v409 = vld [vmem:[#allocation2 + $0xa8] sm:$0xf]
        %v410 = vld [vmem:[#allocation2 + $0xac] sm:$0xf]
        %v411 = vld [vmem:[#allocation2 + $0xb0] sm:$0xf]
        %v412 = vld [vmem:[#allocation2 + $0xb4] sm:$0xf]
        %v413 = vld [vmem:[#allocation2 + $0xb8] sm:$0xf]
        %v414 = vld [vmem:[#allocation2 + $0xbc] sm:$0xf]
        %v415 = vld [vmem:[#allocation2 + $0xc0] sm:$0xf]
        %v416 = vld [vmem:[#allocation2 + $0xc4] sm:$0xf]
        %v417 = vld [vmem:[#allocation2 + $0xc8] sm:$0xf]
        %v418 = vld [vmem:[#allocation2 + $0xcc] sm:$0xf]
        %v419 = vld [vmem:[#allocation2 + $0xd0] sm:$0xf]
        %v420 = vld [vmem:[#allocation2 + $0xd4] sm:$0xf]
        %v421 = vld [vmem:[#allocation2 + $0xd8] sm:$0xf]
        %v422 = vld [vmem:[#allocation2 + $0xdc] sm:$0xf]
        %v423 = vld [vmem:[#allocation2 + $0xe0] sm:$0xf]
        %v424 = vld [vmem:[#allocation2 + $0xe4] sm:$0xf]
        %v425 = vld [vmem:[#allocation2 + $0xe8] sm:$0xf]
        %v426 = vld [vmem:[#allocation2 + $0xec] sm:$0xf]
        %v427 = vld [vmem:[#allocation2 + $0xf0] sm:$0xf]
        %v428 = vld [vmem:[#allocation2 + $0xf4] sm:$0xf]
        %v429 = vld [vmem:[#allocation2 + $0xf8] sm:$0xf]
        %v430 = vld [vmem:[#allocation2 + $0xfc] sm:$0xf]
        %v431 = vld [vmem:[#allocation2 + $0x100] sm:$0xf]
        %v432 = vld [vmem:[#allocation2 + $0x104] sm:$0xf]
        %v433 = vld [vmem:[#allocation2 + $0x108] sm:$0xf]
        %v434 = vld [vmem:[#allocation2 + $0x10c] sm:$0xf]
        %v435 = vld [vmem:[#allocation2 + $0x110] sm:$0xf]
        %v436 = vld [vmem:[#allocation2 + $0x114] sm:$0xf]
        %v437 = vld [vmem:[#allocation2 + $0x118] sm:$0xf]
        %v438 = vld [vmem:[#allocation2 + $0x11c] sm:$0xf]
        %v439 = vld [vmem:[#allocation2 + $0x120] sm:$0xf]
        %v440 = vld [vmem:[#allocation2 + $0x124] sm:$0xf]
        %v441 = vld [vmem:[#allocation2 + $0x128] sm:$0xf]
        %v442 = vld [vmem:[#allocation2 + $0x12c] sm:$0xf]
        %v443 = vld [vmem:[#allocation2 + $0x130] sm:$0xf]
        %v444 = vld [vmem:[#allocation2 + $0x134] sm:$0xf]
        %v445 = vld [vmem:[#allocation2 + $0x138] sm:$0xf]
        %v446 = vld [vmem:[#allocation2 + $0x13c] sm:$0xf]
        %v447 = vld [vmem:[#allocation2 + $0x140] sm:$0xf]
        %v448 = vld [vmem:[#allocation2 + $0x144] sm:$0xf]
        %v449 = vld [vmem:[#allocation2 + $0x148] sm:$0xf]
        %v450 = vld [vmem:[#allocation2 + $0x14c] sm:$0xf]
        %v451 = vld [vmem:[#allocation2 + $0x150] sm:$0xf]
        %v452 = vld [vmem:[#allocation2 + $0x154] sm:$0xf]
        %v453 = vld [vmem:[#allocation2 + $0x158] sm:$0xf]
        %v454 = vld [vmem:[#allocation2 + $0x15c] sm:$0xf]
        %v455 = vld [vmem:[#allocation2 + $0x160] sm:$0xf]
        %v456 = vld [vmem:[#allocation2 + $0x164] sm:$0xf]
        %v457 = vld [vmem:[#allocation2 + $0x168] sm:$0xf]
        %v458 = vld [vmem:[#allocation2 + $0x16c] sm:$0xf]
        %v459 = vld [vmem:[#allocation2 + $0x170] sm:$0xf]
        %v460 = vld [vmem:[#allocation2 + $0x174] sm:$0xf]
        %v461 = vld [vmem:[#allocation2 + $0x178] sm:$0xf]
        %v462 = vld [vmem:[#allocation2 + $0x17c] sm:$0xf]
        %v463 = vld [vmem:[#allocation2 + $0x180] sm:$0xf]
        %v464 = vld [vmem:[#allocation2 + $0x184] sm:$0xf]
        %v465 = vld [vmem:[#allocation2 + $0x188] sm:$0xf]
        %v466 = vld [vmem:[#allocation2 + $0x18c] sm:$0xf]
        %v467 = vld [vmem:[#allocation2 + $0x190] sm:$0xf]
        %v468 = vld [vmem:[#allocation2 + $0x194] sm:$0xf]
        %v469 = vld [vmem:[#allocation2 + $0x198] sm:$0xf]
        %v470 = vld [vmem:[#allocation2 + $0x19c] sm:$0xf]
        %v471 = vld [vmem:[#allocation2 + $0x1a0] sm:$0xf]
        %v472 = vld [vmem:[#allocation2 + $0x1a4] sm:$0xf]
        %v473 = vld [vmem:[#allocation2 + $0x1a8] sm:$0xf]
        %v474 = vld [vmem:[#allocation2 + $0x1ac] sm:$0xf]
        %v475 = vld [vmem:[#allocation2 + $0x1b0] sm:$0xf]
        %v476 = vld [vmem:[#allocation2 + $0x1b4] sm:$0xf]
        %v477 = vld [vmem:[#allocation2 + $0x1b8] sm:$0xf]
        %v478 = vld [vmem:[#allocation2 + $0x1bc] sm:$0xf]
        %v479 = vld [vmem:[#allocation2 + $0x1c0] sm:$0xf]
        %v480 = vld [vmem:[#allocation2 + $0x1c4] sm:$0xf]
        %v481 = vld [vmem:[#allocation2 + $0x1c8] sm:$0xf]
        %v482 = vld [vmem:[#allocation2 + $0x1cc] sm:$0xf]
        %v483 = vld [vmem:[#allocation2 + $0x1d0] sm:$0xf]
        %v484 = vld [vmem:[#allocation2 + $0x1d4] sm:$0xf]
        %v485 = vld [vmem:[#allocation2 + $0x1d8] sm:$0xf]
        %v486 = vld [vmem:[#allocation2 + $0x1dc] sm:$0xf]
        %v487 = vld [vmem:[#allocation2 + $0x1e0] sm:$0xf]
        %v488 = vld [vmem:[#allocation2 + $0x1e4] sm:$0xf]
        %v489 = vld [vmem:[#allocation2 + $0x1e8] sm:$0xf]
        %v490 = vld [vmem:[#allocation2 + $0x1ec] sm:$0xf]
        %v491 = vld [vmem:[#allocation2 + $0x1f0] sm:$0xf]
        %v492 = vld [vmem:[#allocation2 + $0x1f4] sm:$0xf]
        %v493 = vld [vmem:[#allocation2 + $0x1f8] sm:$0xf]
        %v494 = vld [vmem:[#allocation2 + $0x1fc] sm:$0xf]
        %v495 = vld [vmem:[#allocation4] sm:$0x1]
        %v497 = vlaneseq
        %v498 = vshrl.u32 %v497, 7
        %v499 = vsub.s32 0, %v498
        %v500 = vrot.slane %v495, %v499
        %v630 = vunpack.c.l.b16 %v367
        %v631 = vunpack.c.l.b16 %v368
        %v632 = vunpack.c.l.b16 %v369
        %v633 = vunpack.c.l.b16 %v370
        %v634 = vunpack.c.l.b16 %v371
        %v635 = vunpack.c.l.b16 %v372
        %v636 = vunpack.c.l.b16 %v373
        %v637 = vunpack.c.l.b16 %v374
        %v638 = vunpack.c.l.b16 %v375
        %v639 = vunpack.c.l.b16 %v376
        %v640 = vunpack.c.l.b16 %v377
        %v641 = vunpack.c.l.b16 %v378
        %v642 = vunpack.c.l.b16 %v379
        %v643 = vunpack.c.l.b16 %v380
        %v644 = vunpack.c.l.b16 %v381
        %v645 = vunpack.c.l.b16 %v382
        %v646 = vunpack.c.l.b16 %v383
        %v647 = vunpack.c.l.b16 %v384
        %v648 = vunpack.c.l.b16 %v385
        %v649 = vunpack.c.l.b16 %v386
        %v650 = vunpack.c.l.b16 %v387
        %v651 = vunpack.c.l.b16 %v388
        %v652 = vunpack.c.l.b16 %v389
        %v653 = vunpack.c.l.b16 %v390
        %v654 = vunpack.c.l.b16 %v391
        %v655 = vunpack.c.l.b16 %v392
        %v656 = vunpack.c.l.b16 %v393
        %v657 = vunpack.c.l.b16 %v394
        %v658 = vunpack.c.l.b16 %v395
        %v659 = vunpack.c.l.b16 %v396
        %v660 = vunpack.c.l.b16 %v397
        %v661 = vunpack.c.l.b16 %v398
        %v662 = vunpack.c.l.b16 %v399
        %v663 = vunpack.c.l.b16 %v400
        %v664 = vunpack.c.l.b16 %v401
        %v665 = vunpack.c.l.b16 %v402
        %v666 = vunpack.c.l.b16 %v403
        %v667 = vunpack.c.l.b16 %v404
        %v668 = vunpack.c.l.b16 %v405
        %v669 = vunpack.c.l.b16 %v406
        %v670 = vunpack.c.l.b16 %v407
        %v671 = vunpack.c.l.b16 %v408
        %v672 = vunpack.c.l.b16 %v409
        %v673 = vunpack.c.l.b16 %v410
        %v674 = vunpack.c.l.b16 %v411
        %v675 = vunpack.c.l.b16 %v412
        %v676 = vunpack.c.l.b16 %v413
        %v677 = vunpack.c.l.b16 %v414
        %v678 = vunpack.c.l.b16 %v415
        %v679 = vunpack.c.l.b16 %v416
        %v680 = vunpack.c.l.b16 %v417
        %v681 = vunpack.c.l.b16 %v418
        %v682 = vunpack.c.l.b16 %v419
        %v683 = vunpack.c.l.b16 %v420
        %v684 = vunpack.c.l.b16 %v421
        %v685 = vunpack.c.l.b16 %v422
        %v686 = vunpack.c.l.b16 %v423
        %v687 = vunpack.c.l.b16 %v424
        %v688 = vunpack.c.l.b16 %v425
        %v689 = vunpack.c.l.b16 %v426
        %v690 = vunpack.c.l.b16 %v427
        %v691 = vunpack.c.l.b16 %v428
        %v692 = vunpack.c.l.b16 %v429
        %v693 = vunpack.c.l.b16 %v430
        %v694 = vunpack.c.l.b16 %v431
        %v695 = vunpack.c.l.b16 %v432
        %v696 = vunpack.c.l.b16 %v433
        %v697 = vunpack.c.l.b16 %v434
        %v698 = vunpack.c.l.b16 %v435
        %v699 = vunpack.c.l.b16 %v436
        %v700 = vunpack.c.l.b16 %v437
        %v701 = vunpack.c.l.b16 %v438
        %v702 = vunpack.c.l.b16 %v439
        %v703 = vunpack.c.l.b16 %v440
        %v704 = vunpack.c.l.b16 %v441
        %v705 = vunpack.c.l.b16 %v442
        %v706 = vunpack.c.l.b16 %v443
        %v707 = vunpack.c.l.b16 %v444
        %v708 = vunpack.c.l.b16 %v445
        %v709 = vunpack.c.l.b16 %v446
        %v710 = vunpack.c.l.b16 %v447
        %v711 = vunpack.c.l.b16 %v448
        %v712 = vunpack.c.l.b16 %v449
        %v713 = vunpack.c.l.b16 %v450
        %v714 = vunpack.c.l.b16 %v451
        %v715 = vunpack.c.l.b16 %v452
        %v716 = vunpack.c.l.b16 %v453
        %v717 = vunpack.c.l.b16 %v454
        %v718 = vunpack.c.l.b16 %v455
        %v719 = vunpack.c.l.b16 %v456
        %v720 = vunpack.c.l.b16 %v457
        %v721 = vunpack.c.l.b16 %v458
        %v722 = vunpack.c.l.b16 %v459
        %v723 = vunpack.c.l.b16 %v460
        %v724 = vunpack.c.l.b16 %v461
        %v725 = vunpack.c.l.b16 %v462
        %v726 = vunpack.c.l.b16 %v463
        %v727 = vunpack.c.l.b16 %v464
        %v728 = vunpack.c.l.b16 %v465
        %v729 = vunpack.c.l.b16 %v466
        %v730 = vunpack.c.l.b16 %v467
        %v731 = vunpack.c.l.b16 %v468
        %v732 = vunpack.c.l.b16 %v469
        %v733 = vunpack.c.l.b16 %v470
        %v734 = vunpack.c.l.b16 %v471
        %v735 = vunpack.c.l.b16 %v472
        %v736 = vunpack.c.l.b16 %v473
        %v737 = vunpack.c.l.b16 %v474
        %v738 = vunpack.c.l.b16 %v475
        %v739 = vunpack.c.l.b16 %v476
        %v740 = vunpack.c.l.b16 %v477
        %v741 = vunpack.c.l.b16 %v478
        %v742 = vunpack.c.l.b16 %v479
        %v743 = vunpack.c.l.b16 %v480
        %v744 = vunpack.c.l.b16 %v481
        %v745 = vunpack.c.l.b16 %v482
        %v746 = vunpack.c.l.b16 %v483
        %v747 = vunpack.c.l.b16 %v484
        %v748 = vunpack.c.l.b16 %v485
        %v749 = vunpack.c.l.b16 %v486
        %v750 = vunpack.c.l.b16 %v487
        %v751 = vunpack.c.l.b16 %v488
        %v752 = vunpack.c.l.b16 %v489
        %v753 = vunpack.c.l.b16 %v490
        %v754 = vunpack.c.l.b16 %v491
        %v755 = vunpack.c.l.b16 %v492
        %v756 = vunpack.c.l.b16 %v493
        %v757 = vunpack.c.l.b16 %v494
        %v758 = vpack.c.b16 %v631, %v630
        %v759 = vpack.c.b16 %v633, %v632
        %v760 = vpack.c.b16 %v635, %v634
        %v761 = vpack.c.b16 %v637, %v636
        %v762 = vpack.c.b16 %v639, %v638
        %v763 = vpack.c.b16 %v641, %v640
        %v764 = vpack.c.b16 %v643, %v642
        %v765 = vpack.c.b16 %v645, %v644
        %v766 = vpack.c.b16 %v647, %v646
        %v767 = vpack.c.b16 %v649, %v648
        %v768 = vpack.c.b16 %v651, %v650
        %v769 = vpack.c.b16 %v653, %v652
        %v770 = vpack.c.b16 %v655, %v654
        %v771 = vpack.c.b16 %v657, %v656
        %v772 = vpack.c.b16 %v659, %v658
        %v773 = vpack.c.b16 %v661, %v660
        %v774 = vpack.c.b16 %v663, %v662
        %v775 = vpack.c.b16 %v665, %v664
        %v776 = vpack.c.b16 %v667, %v666
        %v777 = vpack.c.b16 %v669, %v668
        %v778 = vpack.c.b16 %v671, %v670
        %v779 = vpack.c.b16 %v673, %v672
        %v780 = vpack.c.b16 %v675, %v674
        %v781 = vpack.c.b16 %v677, %v676
        %v782 = vpack.c.b16 %v679, %v678
        %v783 = vpack.c.b16 %v681, %v680
        %v784 = vpack.c.b16 %v683, %v682
        %v785 = vpack.c.b16 %v685, %v684
        %v786 = vpack.c.b16 %v687, %v686
        %v787 = vpack.c.b16 %v689, %v688
        %v788 = vpack.c.b16 %v691, %v690
        %v789 = vpack.c.b16 %v693, %v692
        %v790 = vpack.c.b16 %v695, %v694
        %v791 = vpack.c.b16 %v697, %v696
        %v792 = vpack.c.b16 %v699, %v698
        %v793 = vpack.c.b16 %v701, %v700
        %v794 = vpack.c.b16 %v703, %v702
        %v795 = vpack.c.b16 %v705, %v704
        %v796 = vpack.c.b16 %v707, %v706
        %v797 = vpack.c.b16 %v709, %v708
        %v798 = vpack.c.b16 %v711, %v710
        %v799 = vpack.c.b16 %v713, %v712
        %v800 = vpack.c.b16 %v715, %v714
        %v801 = vpack.c.b16 %v717, %v716
        %v802 = vpack.c.b16 %v719, %v718
        %v803 = vpack.c.b16 %v721, %v720
        %v804 = vpack.c.b16 %v723, %v722
        %v805 = vpack.c.b16 %v725, %v724
        %v806 = vpack.c.b16 %v727, %v726
        %v807 = vpack.c.b16 %v729, %v728
        %v808 = vpack.c.b16 %v731, %v730
        %v809 = vpack.c.b16 %v733, %v732
        %v810 = vpack.c.b16 %v735, %v734
        %v811 = vpack.c.b16 %v737, %v736
        %v812 = vpack.c.b16 %v739, %v738
        %v813 = vpack.c.b16 %v741, %v740
        %v814 = vpack.c.b16 %v743, %v742
        %v815 = vpack.c.b16 %v745, %v744
        %v816 = vpack.c.b16 %v747, %v746
        %v817 = vpack.c.b16 %v749, %v748
        %v818 = vpack.c.b16 %v751, %v750
        %v819 = vpack.c.b16 %v753, %v752
        %v820 = vpack.c.b16 %v755, %v754
        %v821 = vpack.c.b16 %v757, %v756
        %886 = vmatprep.subr.bf16.mxu0 0
        %887 = vmatpush1.bf16.msra.mxu0 %v765
        %888 = vmatprep.subr.bf16.mxu0 0
        %889 = vmatpush1.bf16.msra.mxu0 %v764
        %890 = vmatprep.subr.bf16.mxu0 0
        %891 = vmatpush1.bf16.msra.mxu0 %v763
        %892 = vmatprep.subr.bf16.mxu0 0
        %893 = vmatpush1.bf16.msra.mxu0 %v762
        %894 = vmatprep.subr.bf16.mxu0 0
        %895 = vmatpush1.bf16.msra.mxu0 %v761
        %896 = vmatprep.subr.bf16.mxu0 0
        %897 = vmatpush1.bf16.msra.mxu0 %v760
        %898 = vmatprep.subr.bf16.mxu0 0
        %899 = vmatpush1.bf16.msra.mxu0 %v759
        %900 = vmatprep.subr.bf16.mxu0 0
        %901 = vmatpush1.bf16.msra.mxu0 %v758
        %902 = vmatprep.subr.bf16.mxu0 0
        %903 = vmatpush2.bf16.msra.mxu0 %v773
        %904 = vmatprep.subr.bf16.mxu0 0
        %905 = vmatpush2.bf16.msra.mxu0 %v772
        %906 = vmatprep.subr.bf16.mxu0 0
        %907 = vmatpush2.bf16.msra.mxu0 %v771
        %908 = vmatprep.subr.bf16.mxu0 0
        %909 = vmatpush2.bf16.msra.mxu0 %v770
        %910 = vmatprep.subr.bf16.mxu0 0
        %911 = vmatpush2.bf16.msra.mxu0 %v769
        %912 = vmatprep.subr.bf16.mxu0 0
        %913 = vmatpush2.bf16.msra.mxu0 %v768
        %914 = vmatprep.subr.bf16.mxu0 0
        %915 = vmatpush2.bf16.msra.mxu0 %v767
        %916 = vmatprep.subr.bf16.mxu0 0
        %917 = vmatpush2.bf16.msra.mxu0 %v766
        %918 = vmatprep.mubr.bf16.mxu0 %v360
        %919 = vmatmul.mubr.bf16.gmra.mxu0 %v359
        %v920 = vpop.f32.mrf.mxu0
        %v921 = vadd.f32 %v500, %v920
        %v922 = vpop.f32.mrf.mxu0
        %v923 = vpop.f32.mrf.mxu0
        %v924 = vpop.f32.mrf.mxu0
        %925 = vdwg.mxu0
        %926 = vmatprep.subr.bf16.mxu0 0
        %927 = vmatpush1.bf16.msra.mxu0 %v781
        %928 = vmatprep.subr.bf16.mxu0 0
        %929 = vmatpush1.bf16.msra.mxu0 %v780
        %930 = vmatprep.subr.bf16.mxu0 0
        %931 = vmatpush1.bf16.msra.mxu0 %v779
        %932 = vmatprep.subr.bf16.mxu0 0
        %933 = vmatpush1.bf16.msra.mxu0 %v778
        %934 = vmatprep.subr.bf16.mxu0 0
        %935 = vmatpush1.bf16.msra.mxu0 %v777
        %936 = vmatprep.subr.bf16.mxu0 0
        %937 = vmatpush1.bf16.msra.mxu0 %v776
        %938 = vmatprep.subr.bf16.mxu0 0
        %939 = vmatpush1.bf16.msra.mxu0 %v775
        %940 = vmatprep.subr.bf16.mxu0 0
        %941 = vmatpush1.bf16.msra.mxu0 %v774
        %942 = vmatprep.subr.bf16.mxu0 0
        %943 = vmatpush2.bf16.msra.mxu0 %v789
        %944 = vmatprep.subr.bf16.mxu0 0
        %945 = vmatpush2.bf16.msra.mxu0 %v788
        %946 = vmatprep.subr.bf16.mxu0 0
        %947 = vmatpush2.bf16.msra.mxu0 %v787
        %948 = vmatprep.subr.bf16.mxu0 0
        %949 = vmatpush2.bf16.msra.mxu0 %v786
        %950 = vmatprep.subr.bf16.mxu0 0
        %951 = vmatpush2.bf16.msra.mxu0 %v785
        %952 = vmatprep.subr.bf16.mxu0 0
        %953 = vmatpush2.bf16.msra.mxu0 %v784
        %954 = vmatprep.subr.bf16.mxu0 0
        %955 = vmatpush2.bf16.msra.mxu0 %v783
        %956 = vmatprep.subr.bf16.mxu0 0
        %957 = vmatpush2.bf16.msra.mxu0 %v782
        %958 = vmatprep.mubr.bf16.mxu0 %v362
        %959 = vmatmul.mubr.bf16.gmra.mxu0 %v361
        %v960 = vpop.f32.mrf.mxu0
        %v961 = vadd.f32 %v921, %v960
        %v962 = vpop.f32.mrf.mxu0
        %v963 = vpop.f32.mrf.mxu0
        %v964 = vpop.f32.mrf.mxu0
        %965 = vdwg.mxu0
        %966 = vmatprep.subr.bf16.mxu0 0
        %967 = vmatpush1.bf16.msra.mxu0 %v797
        %968 = vmatprep.subr.bf16.mxu0 0
        %969 = vmatpush1.bf16.msra.mxu0 %v796
        %970 = vmatprep.subr.bf16.mxu0 0
        %971 = vmatpush1.bf16.msra.mxu0 %v795
        %972 = vmatprep.subr.bf16.mxu0 0
        %973 = vmatpush1.bf16.msra.mxu0 %v794
        %974 = vmatprep.subr.bf16.mxu0 0
        %975 = vmatpush1.bf16.msra.mxu0 %v793
        %976 = vmatprep.subr.bf16.mxu0 0
        %977 = vmatpush1.bf16.msra.mxu0 %v792
        %978 = vmatprep.subr.bf16.mxu0 0
        %979 = vmatpush1.bf16.msra.mxu0 %v791
        %980 = vmatprep.subr.bf16.mxu0 0
        %981 = vmatpush1.bf16.msra.mxu0 %v790
        %982 = vmatprep.subr.bf16.mxu0 0
        %983 = vmatpush2.bf16.msra.mxu0 %v805
        %984 = vmatprep.subr.bf16.mxu0 0
        %985 = vmatpush2.bf16.msra.mxu0 %v804
        %986 = vmatprep.subr.bf16.mxu0 0
        %987 = vmatpush2.bf16.msra.mxu0 %v803
        %988 = vmatprep.subr.bf16.mxu0 0
        %989 = vmatpush2.bf16.msra.mxu0 %v802
        %990 = vmatprep.subr.bf16.mxu0 0
        %991 = vmatpush2.bf16.msra.mxu0 %v801
        %992 = vmatprep.subr.bf16.mxu0 0
        %993 = vmatpush2.bf16.msra.mxu0 %v800
        %994 = vmatprep.subr.bf16.mxu0 0
        %995 = vmatpush2.bf16.msra.mxu0 %v799
        %996 = vmatprep.subr.bf16.mxu0 0
        %997 = vmatpush2.bf16.msra.mxu0 %v798
        %998 = vmatprep.mubr.bf16.mxu0 %v364
        %999 = vmatmul.mubr.bf16.gmra.mxu0 %v363
        %v1000 = vpop.f32.mrf.mxu0
        %v1001 = vadd.f32 %v961, %v1000
        %v1002 = vpop.f32.mrf.mxu0
        %v1003 = vpop.f32.mrf.mxu0
        %v1004 = vpop.f32.mrf.mxu0
        %1005 = vdwg.mxu0
        %1006 = vmatprep.subr.bf16.mxu0 0
        %1007 = vmatpush1.bf16.msra.mxu0 %v813
        %1008 = vmatprep.subr.bf16.mxu0 0
        %1009 = vmatpush1.bf16.msra.mxu0 %v812
        %1010 = vmatprep.subr.bf16.mxu0 0
        %1011 = vmatpush1.bf16.msra.mxu0 %v811
        %1012 = vmatprep.subr.bf16.mxu0 0
        %1013 = vmatpush1.bf16.msra.mxu0 %v810
        %1014 = vmatprep.subr.bf16.mxu0 0
        %1015 = vmatpush1.bf16.msra.mxu0 %v809
        %1016 = vmatprep.subr.bf16.mxu0 0
        %1017 = vmatpush1.bf16.msra.mxu0 %v808
        %1018 = vmatprep.subr.bf16.mxu0 0
        %1019 = vmatpush1.bf16.msra.mxu0 %v807
        %1020 = vmatprep.subr.bf16.mxu0 0
        %1021 = vmatpush1.bf16.msra.mxu0 %v806
        %1022 = vmatprep.subr.bf16.mxu0 0
        %1023 = vmatpush2.bf16.msra.mxu0 %v821
        %1024 = vmatprep.subr.bf16.mxu0 0
        %1025 = vmatpush2.bf16.msra.mxu0 %v820
        %1026 = vmatprep.subr.bf16.mxu0 0
        %1027 = vmatpush2.bf16.msra.mxu0 %v819
        %1028 = vmatprep.subr.bf16.mxu0 0
        %1029 = vmatpush2.bf16.msra.mxu0 %v818
        %1030 = vmatprep.subr.bf16.mxu0 0
        %1031 = vmatpush2.bf16.msra.mxu0 %v817
        %1032 = vmatprep.subr.bf16.mxu0 0
        %1033 = vmatpush2.bf16.msra.mxu0 %v816
        %1034 = vmatprep.subr.bf16.mxu0 0
        %1035 = vmatpush2.bf16.msra.mxu0 %v815
        %1036 = vmatprep.subr.bf16.mxu0 0
        %1037 = vmatpush2.bf16.msra.mxu0 %v814
        %1038 = vmatprep.mubr.bf16.mxu0 %v366
        %1039 = vmatmul.mubr.bf16.gmra.mxu0 %v365
        %v1040 = vpop.f32.mrf.mxu0
        %v1041 = vadd.f32 %v1001, %v1040
        %v1042 = vpop.f32.mrf.mxu0
        %v1043 = vpop.f32.mrf.mxu0
        %v1044 = vpop.f32.mrf.mxu0
        %1045 = vdwg.mxu0
        %v1046 = vmax.f32 %v1041, 0.0
        %v1047 = vpack.c.bf16 %v1046, %v1046
        %v1048 = vld [vmem:[%s283] sm:$0xff]
        %v1049 = vld [vmem:[%s283 + $0x8] sm:$0xff]
        %v1050 = vld [vmem:[%s283 + $0x10] sm:$0xff]
        %v1051 = vld [vmem:[%s283 + $0x18] sm:$0xff]
        %v1052 = vld [vmem:[%s283 + $0x20] sm:$0xff]
        %v1053 = vld [vmem:[%s283 + $0x28] sm:$0xff]
        %v1054 = vld [vmem:[%s283 + $0x30] sm:$0xff]
        %v1055 = vld [vmem:[%s283 + $0x38] sm:$0xff]
        %v1056 = vld [vmem:[%s283 + $0x40] sm:$0xff]
        %v1057 = vld [vmem:[%s283 + $0x48] sm:$0xff]
        %v1058 = vld [vmem:[%s283 + $0x50] sm:$0xff]
        %v1059 = vld [vmem:[%s283 + $0x58] sm:$0xff]
        %v1060 = vld [vmem:[%s283 + $0x60] sm:$0xff]
        %v1061 = vld [vmem:[%s283 + $0x68] sm:$0xff]
        %v1062 = vld [vmem:[%s283 + $0x70] sm:$0xff]
        %v1063 = vld [vmem:[%s283 + $0x78] sm:$0xff]
        %v1064 = vld [vmem:[%s292] sm:$0xf]
        %v1066 = vlaneseq
        %v1067 = vshrl.u32 %v1066, 7
        %v1068 = vsub.s32 0, %v1067
        %v1069 = vrot.slane %v1064, %v1068
        %v1070 = vlaneseq
        %v1071 = vshrl.u32 %v1070, 7
        %v1072 = vsub.s32 1, %v1071
        %v1073 = vrot.slane %v1064, %v1072
        %v1074 = vlaneseq
        %v1075 = vshrl.u32 %v1074, 7
        %v1076 = vsub.s32 2, %v1075
        %v1077 = vrot.slane %v1064, %v1076
        %v1078 = vlaneseq
        %v1079 = vshrl.u32 %v1078, 7
        %v1080 = vsub.s32 3, %v1079
        %v1081 = vrot.slane %v1064, %v1080
        %v1102 = vunpack.c.l.b16 %v1048
        %v1103 = vunpack.c.h.b16 %v1048
        %v1104 = vunpack.c.l.b16 %v1049
        %v1105 = vunpack.c.h.b16 %v1049
        %v1106 = vunpack.c.l.b16 %v1050
        %v1107 = vunpack.c.h.b16 %v1050
        %v1108 = vunpack.c.l.b16 %v1051
        %v1109 = vunpack.c.h.b16 %v1051
        %v1110 = vunpack.c.l.b16 %v1052
        %v1111 = vunpack.c.h.b16 %v1052
        %v1112 = vunpack.c.l.b16 %v1053
        %v1113 = vunpack.c.h.b16 %v1053
        %v1114 = vunpack.c.l.b16 %v1054
        %v1115 = vunpack.c.h.b16 %v1054
        %v1116 = vunpack.c.l.b16 %v1055
        %v1117 = vunpack.c.h.b16 %v1055
        %v1118 = vunpack.c.l.b16 %v1056
        %v1119 = vunpack.c.h.b16 %v1056
        %v1120 = vunpack.c.l.b16 %v1057
        %v1121 = vunpack.c.h.b16 %v1057
        %v1122 = vunpack.c.l.b16 %v1058
        %v1123 = vunpack.c.h.b16 %v1058
        %v1124 = vunpack.c.l.b16 %v1059
        %v1125 = vunpack.c.h.b16 %v1059
        %v1126 = vunpack.c.l.b16 %v1060
        %v1127 = vunpack.c.h.b16 %v1060
        %v1128 = vunpack.c.l.b16 %v1061
        %v1129 = vunpack.c.h.b16 %v1061
        %v1130 = vunpack.c.l.b16 %v1062
        %v1131 = vunpack.c.h.b16 %v1062
        %v1132 = vunpack.c.l.b16 %v1063
        %v1133 = vunpack.c.h.b16 %v1063
        %v1134 = vpack.c.b16 %v1106, %v1102
        %v1135 = vpack.c.b16 %v1107, %v1103
        %v1136 = vpack.c.b16 %v1108, %v1104
        %v1137 = vpack.c.b16 %v1109, %v1105
        %v1138 = vpack.c.b16 %v1114, %v1110
        %v1139 = vpack.c.b16 %v1115, %v1111
        %v1140 = vpack.c.b16 %v1116, %v1112
        %v1141 = vpack.c.b16 %v1117, %v1113
        %v1142 = vpack.c.b16 %v1122, %v1118
        %v1143 = vpack.c.b16 %v1123, %v1119
        %v1144 = vpack.c.b16 %v1124, %v1120
        %v1145 = vpack.c.b16 %v1125, %v1121
        %v1146 = vpack.c.b16 %v1130, %v1126
        %v1147 = vpack.c.b16 %v1131, %v1127
        %v1148 = vpack.c.b16 %v1132, %v1128
        %v1149 = vpack.c.b16 %v1133, %v1129
        %vm1166 = vcmask 523264
        %v1168 = vsel %vm1166, %v1047, 0
        %1170 = vmatprep.subr.bf16.mxu0 0
        %1171 = vmatpush1.bf16.msra.mxu0 0
        %1172 = vmatprep.subr.bf16.mxu0 0
        %1173 = vmatpush1.bf16.msra.mxu0 0
        %1174 = vmatprep.subr.bf16.mxu0 0
        %1175 = vmatpush1.bf16.msra.mxu0 0
        %1176 = vmatprep.subr.bf16.mxu0 0
        %1177 = vmatpush1.bf16.msra.mxu0 0
        %1178 = vmatprep.subr.bf16.mxu0 %v1147
        %1179 = vmatpush1.bf16.msra.mxu0 %v1146
        %1180 = vmatprep.subr.bf16.mxu0 %v1143
        %1181 = vmatpush1.bf16.msra.mxu0 %v1142
        %1182 = vmatprep.subr.bf16.mxu0 %v1139
        %1183 = vmatpush1.bf16.msra.mxu0 %v1138
        %1184 = vmatprep.subr.bf16.mxu0 %v1135
        %1185 = vmatpush1.bf16.msra.mxu0 %v1134
        %1186 = vmatprep.subr.bf16.mxu0 0
        %1187 = vmatpush2.bf16.msra.mxu0 0
        %1188 = vmatprep.subr.bf16.mxu0 0
        %1189 = vmatpush2.bf16.msra.mxu0 0
        %1190 = vmatprep.subr.bf16.mxu0 0
        %1191 = vmatpush2.bf16.msra.mxu0 0
        %1192 = vmatprep.subr.bf16.mxu0 0
        %1193 = vmatpush2.bf16.msra.mxu0 0
        %1194 = vmatprep.subr.bf16.mxu0 0
        %1195 = vmatpush2.bf16.msra.mxu0 0
        %1196 = vmatprep.subr.bf16.mxu0 0
        %1197 = vmatpush2.bf16.msra.mxu0 0
        %1198 = vmatprep.subr.bf16.mxu0 0
        %1199 = vmatpush2.bf16.msra.mxu0 0
        %1200 = vmatprep.subr.bf16.mxu0 0
        %1201 = vmatpush2.bf16.msra.mxu0 0
        %1202 = vmatprep.mubr.bf16.mxu0 0
        %1203 = vmatmul.mubr.bf16.gmra.mxu0 %v1168
        %v1204 = vpop.f32.mrf.mxu0
        %v1205 = vadd.f32 %v1069, %v1204
        %v1206 = vpop.f32.mrf.mxu0
        %v1207 = vadd.f32 %v1073, %v1206
        %v1208 = vpop.f32.mrf.mxu0
        %v1209 = vpop.f32.mrf.mxu0
        %1210 = vdwg.mxu0
        %1211 = vmatprep.subr.bf16.mxu0 0
        %1212 = vmatpush1.bf16.msra.mxu0 0
        %1213 = vmatprep.subr.bf16.mxu0 0
        %1214 = vmatpush1.bf16.msra.mxu0 0
        %1215 = vmatprep.subr.bf16.mxu0 0
        %1216 = vmatpush1.bf16.msra.mxu0 0
        %1217 = vmatprep.subr.bf16.mxu0 0
        %1218 = vmatpush1.bf16.msra.mxu0 0
        %1219 = vmatprep.subr.bf16.mxu0 %v1149
        %1220 = vmatpush1.bf16.msra.mxu0 %v1148
        %1221 = vmatprep.subr.bf16.mxu0 %v1145
        %1222 = vmatpush1.bf16.msra.mxu0 %v1144
        %1223 = vmatprep.subr.bf16.mxu0 %v1141
        %1224 = vmatpush1.bf16.msra.mxu0 %v1140
        %1225 = vmatprep.subr.bf16.mxu0 %v1137
        %1226 = vmatpush1.bf16.msra.mxu0 %v1136
        %1227 = vmatprep.subr.bf16.mxu0 0
        %1228 = vmatpush2.bf16.msra.mxu0 0
        %1229 = vmatprep.subr.bf16.mxu0 0
        %1230 = vmatpush2.bf16.msra.mxu0 0
        %1231 = vmatprep.subr.bf16.mxu0 0
        %1232 = vmatpush2.bf16.msra.mxu0 0
        %1233 = vmatprep.subr.bf16.mxu0 0
        %1234 = vmatpush2.bf16.msra.mxu0 0
        %1235 = vmatprep.subr.bf16.mxu0 0
        %1236 = vmatpush2.bf16.msra.mxu0 0
        %1237 = vmatprep.subr.bf16.mxu0 0
        %1238 = vmatpush2.bf16.msra.mxu0 0
        %1239 = vmatprep.subr.bf16.mxu0 0
        %1240 = vmatpush2.bf16.msra.mxu0 0
        %1241 = vmatprep.subr.bf16.mxu0 0
        %1242 = vmatpush2.bf16.msra.mxu0 0
        %1243 = vmatprep.mubr.bf16.mxu0 0
        %1244 = vmatmul.mubr.bf16.gmra.mxu0 %v1168
        %v1245 = vpop.f32.mrf.mxu0
        %v1246 = vadd.f32 %v1077, %v1245
        %v1247 = vpop.f32.mrf.mxu0
        %v1248 = vadd.f32 %v1081, %v1247
        %v1249 = vpop.f32.mrf.mxu0
        %v1250 = vpop.f32.mrf.mxu0
        %1251 = vdwg.mxu0
        %1252 = vst [vmem:[%s348] sm:$0xff] %v1205
        %1253 = vst [vmem:[%s348 + $0x8] sm:$0xff] %v1207
        %1254 = vst [vmem:[%s348 + $0x10] sm:$0xff] %v1246
        %1255 = vst [vmem:[%s348 + $0x18] sm:$0xff] %v1248
        %s1256 = smul.u32 4, %s23
        %p1257 = scmp.lt.s32.totalorder %s22, 0
        %s1258 = scalar_select %p1257, %s22, 0
        %p1259 = scmp.lt.s32.totalorder %s1256, 247
        %s1260 = scalar_select %p1259, %s1256, 247
        %s1261 = smul.addr %s1258, 248
        %s1262 = sadd.s32 %s1260, %s1261
        %s1263 = smul.addr %s1262, 8
        %s1264 = scalar_lea.vmem %s5, %s1263
        // Predicated region
        $region57: #{_lambda_.4} parent=39 // pred_check
          %p1265 = pneg %p170
        $region58: #{_lambda_.4} parent=39 // pred_check_branch
          %1267 = sbr.rel (%p1265) target = $region60
        $region59: #{_lambda_.4} parent=39 // pred_region
          %s1268 = smul.u32 4, %s23
        $region60: #{_lambda_.4} parent=39 // pred_fallthru
          _
      $region40: #{_lambda_.4} parent=5 // pred_fallthru
        _
      %p1269 = scmp.le.s32.totalorder 2, %s13
      // Predicated region
      $region61: #{_lambda_.4} parent=5 // pred_check
        %p1270 = pneg %p1269
      $region62: #{_lambda_.4} parent=5 // pred_check_branch
        %1272 = sbr.rel (%p1270) target = $region64
      $region63: #{_lambda_.4} parent=5 // pred_region
        %s1273 = ssub.s32 %s13, 2
        // Predicated region
        $region65: #{_lambda_.4} parent=63 // pred_check
          %p1274 = pneg %p176
        $region66: #{_lambda_.4} parent=63 // pred_check_branch
          %1276 = sbr.rel (%p1274) target = $region68
        $region67: #{_lambda_.4} parent=63 // pred_region
          %s1277 = smul.u32 4, %s25
          %p1278 = scmp.lt.s32.totalorder %s24, 0
          %s1279 = scalar_select %p1278, %s24, 0
          %p1280 = scmp.lt.s32.totalorder %s1277, 247
          %s1281 = scalar_select %p1280, %s1277, 247
          %s1282 = smul.addr %s1279, 248
          %s1283 = sadd.s32 %s1281, %s1282
          %s1284 = smul.addr %s1283, 8
          %s1285 = scalar_lea.vmem %s5, %s1284
        $region68: #{_lambda_.4} parent=63 // pred_fallthru
          _
      $region64: #{_lambda_.4} parent=5 // pred_fallthru
        _
    $region6: #{_lambda_.4} parent=1 // loop_footer
      %s17 = sadd.s32 1, %s13
    $region7: #{_lambda_.4} parent=1 // loop_footer_branch
      %12 = sbr.rel target = $region3
    $region8: #{_lambda_.4} parent=1 // loop_exit
      _
    %1286 = vsyncpa [#allocation3], 1
    %s1287 = scalar_lea.sflag [#allocation3], 1
    %1288 = vsyncpa %s1287, 1
    %1289 = vsyncpa [#allocation5], 1

// kernel: _lambda_.5
$region0: #{_lambda_.5}
  #allocation0 [shape = 'u32[]', space=smem, size = 0x4, offset = 0x4, fixed_abs, tag = 'smem constant byte address 0x4 - core index']
  #allocation1 [shape = 'u32[144,128]{1,0:T(1,128)}', space=vmem, size = 0x12000, scoped, tag = 'internal scratch']
  %s0 = inlined_call_operand.vmem [shape: f32[11,10], index: 0, kind: input, shape index: {}]
  %s1 = inlined_call_operand.vmem [shape: f32[1,2048], index: 1, kind: input, shape index: {}]
  %s2 = inlined_call_operand.vmem [shape: f32[10,2048], index: 2, kind: input, shape index: {}]
  %s3 = inlined_call_operand.vmem [shape: f32[10,2048], index: 3, kind: input, shape index: {}]
  %s4 = inlined_call_operand.vmem [shape: f32[11,2048], index: 4, kind: input, shape index: {}]
  %s5 = inlined_call_operand.vmem [shape: f32[1,2048], index: 5, kind: output, shape index: {0}]
  %s6 = inlined_call_operand.vmem [shape: f32[1,2048], index: 6, kind: output, shape index: {1}]
  %7 = xla_tuple %s5, %s6
  %s8 = sld [smem:[#allocation0]]
  $region130: #{_lambda_.5} parent=0
    _
  %s10 = ssub.s32 1, %s8
  %s11 = scalar_select 0, %s10, %s8
  $region1: #{_lambda_.5} parent=0
    #allocation2 [shape = 'u8[65536]{0}', space=vmem, size = 0x10000, scoped, tag = 'input window, operand 2']
    #allocation3 [shape = 'u8[65536]{0}', space=vmem, size = 0x10000, scoped, tag = 'input window, operand 3']
    #allocation4 [shape = 'u8[65536]{0}', space=vmem, size = 0x10000, scoped, tag = 'input window, operand 4']
    loop: start=0, step=1, limit=6
    $region2: #{_lambda_.5} parent=1 // loop_pre_header
      _
    $region3: #{_lambda_.5} parent=1 // loop_header
      %s13 = sphi 0, %s17
      %p14 = scmp.ge.s32.totalorder %s13, 6
      %s21 = sphi 0, %s21
      %s23 = sphi 0, %s21
      %s24 = sphi 0, %s23
      %s38 = sphi 0, %s24
      %s44 = sphi 0, %s46
      %s47 = sphi 0, %s44
      %s48 = sphi 0, %s47
      %s64 = sphi 0, %s48
      %s70 = sphi 0, %s72
      %s73 = sphi 0, %s70
      %s74 = sphi 0, %s73
      %s90 = sphi 0, %s74
      %s96 = sphi 0, %s98
      %s99 = sphi 0, %s96
      %s100 = sphi 0, %s99
      %s116 = sphi 0, %s100
      %s122 = sphi 0, %s124
      %s125 = sphi 0, %s122
      %s126 = sphi 0, %s125
      %s142 = sphi 0, %s126
      %s148 = sphi 0, %s150
      %s151 = sphi 0, %s148
      %s152 = sphi 0, %s151
      %s168 = sphi 0, %s152
      %s174 = sphi 0, %s176
      %s177 = sphi 0, %s174
      %s178 = sphi 0, %s177
      %s194 = sphi 0, %s178
    $region4: #{_lambda_.5} parent=1 // loop_header_branch
      %16 = sbr.rel (%p14) target = $region8
    $region5: #{_lambda_.5} parent=1 // loop_body
      %s18 = ssub.s32 %s13, 1
      %s19 = ssub.s32 %s13, 2
      %s20 = sadd.s32 %s13, 1
      %s22 = sadd.s32 %s21, 1
      %p25 = scmp.eq.s32.totalorder %s13, 3
      %p26 = scmp.ne.s32.totalorder %s21, %s23
      %p27 = scmp.eq.s32.totalorder %s13, 0
      %p28 = por %p26, %p27
      %p29 = scmp.ne.s32.totalorder %s21, %s23
      %p30 = scmp.eq.s32.totalorder %s18, 3
      %p31 = por %p29, %p30
      %p32 = scmp.ne.s32.totalorder %s23, %s24
      %p33 = scmp.eq.s32.totalorder %s18, 0
      %p34 = por %p32, %p33
      %p35 = scmp.ne.s32.totalorder %s23, %s24
      %p36 = scmp.eq.s32.totalorder %s19, 3
      %p37 = por %p35, %p36
      %p39 = scmp.ne.s32.totalorder %s24, %s38
      %p40 = scmp.eq.s32.totalorder %s19, 0
      %p41 = por %p39, %p40
      %s42 = ssub.s32 %s13, %s20
      %p43 = scmp.eq.s32.totalorder %s42, 0
      %s45 = sadd.s32 %s44, 1
      %s46 = scalar_select %p43, %s44, %s45
      %p49 = pneg %p43
      %p50 = scmp.eq.s32.totalorder %s13, 3
      %p51 = por %p49, %p50
      %p52 = scmp.ne.s32.totalorder %s44, %s47
      %p53 = scmp.eq.s32.totalorder %s13, 0
      %p54 = por %p52, %p53
      %p55 = scmp.ne.s32.totalorder %s44, %s47
      %p56 = scmp.eq.s32.totalorder %s18, 3
      %p57 = por %p55, %p56
      %p58 = scmp.ne.s32.totalorder %s47, %s48
      %p59 = scmp.eq.s32.totalorder %s18, 0
      %p60 = por %p58, %p59
      %p61 = scmp.ne.s32.totalorder %s47, %s48
      %p62 = scmp.eq.s32.totalorder %s19, 3
      %p63 = por %p61, %p62
      %p65 = scmp.ne.s32.totalorder %s48, %s64
      %p66 = scmp.eq.s32.totalorder %s19, 0
      %p67 = por %p65, %p66
      %s68 = ssub.s32 %s13, %s20
      %p69 = scmp.eq.s32.totalorder %s68, 0
      %s71 = sadd.s32 %s70, 1
      %s72 = scalar_select %p69, %s70, %s71
      %p75 = pneg %p69
      %p76 = scmp.eq.s32.totalorder %s13, 3
      %p77 = por %p75, %p76
      %p78 = scmp.ne.s32.totalorder %s70, %s73
      %p79 = scmp.eq.s32.totalorder %s13, 0
      %p80 = por %p78, %p79
      %p81 = scmp.ne.s32.totalorder %s70, %s73
      %p82 = scmp.eq.s32.totalorder %s18, 3
      %p83 = por %p81, %p82
      %p84 = scmp.ne.s32.totalorder %s73, %s74
      %p85 = scmp.eq.s32.totalorder %s18, 0
      %p86 = por %p84, %p85
      %p87 = scmp.ne.s32.totalorder %s73, %s74
      %p88 = scmp.eq.s32.totalorder %s19, 3
      %p89 = por %p87, %p88
      %p91 = scmp.ne.s32.totalorder %s74, %s90
      %p92 = scmp.eq.s32.totalorder %s19, 0
      %p93 = por %p91, %p92
      %s94 = ssub.s32 %s13, %s20
      %p95 = scmp.eq.s32.totalorder %s94, 0
      %s97 = sadd.s32 %s96, 1
      %s98 = scalar_select %p95, %s96, %s97
      %p101 = pneg %p95
      %p102 = scmp.eq.s32.totalorder %s13, 3
      %p103 = por %p101, %p102
      %p104 = scmp.ne.s32.totalorder %s96, %s99
      %p105 = scmp.eq.s32.totalorder %s13, 0
      %p106 = por %p104, %p105
      %p107 = scmp.ne.s32.totalorder %s96, %s99
      %p108 = scmp.eq.s32.totalorder %s18, 3
      %p109 = por %p107, %p108
      %p110 = scmp.ne.s32.totalorder %s99, %s100
      %p111 = scmp.eq.s32.totalorder %s18, 0
      %p112 = por %p110, %p111
      %p113 = scmp.ne.s32.totalorder %s99, %s100
      %p114 = scmp.eq.s32.totalorder %s19, 3
      %p115 = por %p113, %p114
      %p117 = scmp.ne.s32.totalorder %s100, %s116
      %p118 = scmp.eq.s32.totalorder %s19, 0
      %p119 = por %p117, %p118
      %s120 = ssub.s32 %s13, %s20
      %p121 = scmp.eq.s32.totalorder %s120, 0
      %s123 = sadd.s32 %s122, 1
      %s124 = scalar_select %p121, %s122, %s123
      %p127 = pneg %p121
      %p128 = scmp.eq.s32.totalorder %s13, 3
      %p129 = por %p127, %p128
      %p130 = scmp.ne.s32.totalorder %s122, %s125
      %p131 = scmp.eq.s32.totalorder %s13, 0
      %p132 = por %p130, %p131
      %p133 = scmp.ne.s32.totalorder %s122, %s125
      %p134 = scmp.eq.s32.totalorder %s18, 3
      %p135 = por %p133, %p134
      %p136 = scmp.ne.s32.totalorder %s125, %s126
      %p137 = scmp.eq.s32.totalorder %s18, 0
      %p138 = por %p136, %p137
      %p139 = scmp.ne.s32.totalorder %s125, %s126
      %p140 = scmp.eq.s32.totalorder %s19, 3
      %p141 = por %p139, %p140
      %p143 = scmp.ne.s32.totalorder %s126, %s142
      %p144 = scmp.eq.s32.totalorder %s19, 0
      %p145 = por %p143, %p144
      %s146 = ssub.s32 %s13, %s20
      %p147 = scmp.eq.s32.totalorder %s146, 0
      %s149 = sadd.s32 %s148, 1
      %s150 = scalar_select %p147, %s148, %s149
      %p153 = pneg %p147
      %p154 = scmp.eq.s32.totalorder %s13, 3
      %p155 = por %p153, %p154
      %p156 = scmp.ne.s32.totalorder %s148, %s151
      %p157 = scmp.eq.s32.totalorder %s13, 0
      %p158 = por %p156, %p157
      %p159 = scmp.ne.s32.totalorder %s148, %s151
      %p160 = scmp.eq.s32.totalorder %s18, 3
      %p161 = por %p159, %p160
      %p162 = scmp.ne.s32.totalorder %s151, %s152
      %p163 = scmp.eq.s32.totalorder %s18, 0
      %p164 = por %p162, %p163
      %p165 = scmp.ne.s32.totalorder %s151, %s152
      %p166 = scmp.eq.s32.totalorder %s19, 3
      %p167 = por %p165, %p166
      %p169 = scmp.ne.s32.totalorder %s152, %s168
      %p170 = scmp.eq.s32.totalorder %s19, 0
      %p171 = por %p169, %p170
      %s172 = ssub.s32 %s13, %s20
      %p173 = scmp.eq.s32.totalorder %s172, 0
      %s175 = sadd.s32 %s174, 1
      %s176 = scalar_select %p173, %s174, %s175
      %p179 = pneg %p173
      %p180 = scmp.eq.s32.totalorder %s13, 3
      %p181 = por %p179, %p180
      %p182 = scmp.ne.s32.totalorder %s174, %s177
      %p183 = scmp.eq.s32.totalorder %s13, 0
      %p184 = por %p182, %p183
      %p185 = scmp.ne.s32.totalorder %s174, %s177
      %p186 = scmp.eq.s32.totalorder %s18, 3
      %p187 = por %p185, %p186
      %p188 = scmp.ne.s32.totalorder %s177, %s178
      %p189 = scmp.eq.s32.totalorder %s18, 0
      %p190 = por %p188, %p189
      %p191 = scmp.ne.s32.totalorder %s177, %s178
      %p192 = scmp.eq.s32.totalorder %s19, 3
      %p193 = por %p191, %p192
      %p195 = scmp.ne.s32.totalorder %s178, %s194
      %p196 = scmp.eq.s32.totalorder %s19, 0
      %p197 = por %p195, %p196
      %p198 = scmp.le.s32.totalorder 1, %s13
      %p199 = scmp.lt.s32.totalorder %s13, 5
      %p200 = pnand %p198, %p199
      %p201 = pneg %p200
      // Predicated region
      $region9: #{_lambda_.5} parent=5 // pred_check
        _
      $region10: #{_lambda_.5} parent=5 // pred_check_branch
        %203 = sbr.rel (%p200) target = $region12
      $region11: #{_lambda_.5} parent=5 // pred_region
        %s204 = ssub.s32 %s13, 1
        // Predicated region
        $region13: #{_lambda_.5} parent=11 // pred_check
          %p205 = pneg %p34
        $region14: #{_lambda_.5} parent=11 // pred_check_branch
          %207 = sbr.rel (%p205) target = $region16
        $region15: #{_lambda_.5} parent=11 // pred_region
          _
        $region16: #{_lambda_.5} parent=11 // pred_fallthru
          _
      $region12: #{_lambda_.5} parent=5 // pred_fallthru
        _
      %p208 = scmp.lt.s32.totalorder %s13, 4
      // Predicated region
      $region17: #{_lambda_.5} parent=5 // pred_check
        %p209 = pneg %p208
      $region18: #{_lambda_.5} parent=5 // pred_check_branch
        %211 = sbr.rel (%p209) target = $region20
      $region19: #{_lambda_.5} parent=5 // pred_region
        // Predicated region
        $region21: #{_lambda_.5} parent=19 // pred_check
          %p212 = pneg %p54
        $region22: #{_lambda_.5} parent=19 // pred_check_branch
          %214 = sbr.rel (%p212) target = $region24
        $region23: #{_lambda_.5} parent=19 // pred_region
          %s215 = smul.u32 4, %s13
          %p216 = scmp.lt.s32.totalorder %s215, 15
          %s217 = scalar_select %p216, %s215, 15
          %s218 = scalar_lea.vmem %s1, %s217
          %s219 = smul.u32 4, %s13
        $region24: #{_lambda_.5} parent=19 // pred_fallthru
          _
        // Predicated region
        $region25: #{_lambda_.5} parent=19 // pred_check
          %p220 = pneg %p80
        $region26: #{_lambda_.5} parent=19 // pred_check_branch
          %222 = sbr.rel (%p220) target = $region28
        $region27: #{_lambda_.5} parent=19 // pred_region
          %s223 = sand.u32 %s70, 1
          %s224 = sand.u32 %s70, 1
          %s225 = smul.addr %s224, 64
          %s226 = scalar_lea.vmem [#allocation2], %s225
          %s227 = smul.u32 4, %s13
          %s228 = smul.addr %s227, 8
          %s229 = scalar_lea.vmem %s2, %s228
          // Predicated region
          $region29: #{_lambda_.5} parent=27 // pred_check
            _
          $region30: #{_lambda_.5} parent=27 // pred_check_branch
            %231 = sbr.rel (0) target = $region32
          $region31: #{_lambda_.5} parent=27 // pred_region
            // Predicated region
            $region33: #{_lambda_.5} parent=31 // pred_check
              _
            $region34: #{_lambda_.5} parent=31 // pred_check_branch
              %233 = sbr.rel (0) target = $region36
            $region35: #{_lambda_.5} parent=31 // pred_region
              loop: start=0, step=1, limit=1
              $region37: #{_lambda_.5} parent=35 // loop_pre_header
                _
              $region38: #{_lambda_.5} parent=35 // loop_header
                %s235 = sphi 0, %s239
                %p236 = scmp.ge.s32.totalorder %s235, 1
                %s240 = sphi %s229, %s229
                %s241 = sphi %s226, %s226
              $region39: #{_lambda_.5} parent=35 // loop_header_branch
                %238 = sbr.rel (%p236) target = $region43
              $region40: #{_lambda_.5} parent=35 // loop_body
                %v242 = vld [vmem:[%s240] sm:$0xff]
                %243 = vst [vmem:[%s241] sm:$0xff] %v242
                %v244 = vld [vmem:[%s240 + $0x8] sm:$0xff]
                %245 = vst [vmem:[%s241 + $0x8] sm:$0xff] %v244
                %v246 = vld [vmem:[%s240 + $0x10] sm:$0xff]
                %247 = vst [vmem:[%s241 + $0x10] sm:$0xff] %v246
                %v248 = vld [vmem:[%s240 + $0x18] sm:$0xff]
                %249 = vst [vmem:[%s241 + $0x18] sm:$0xff] %v248
                %v250 = vld [vmem:[%s240 + $0x80] sm:$0xff]
                %251 = vst [vmem:[%s241 + $0x20] sm:$0xff] %v250
                %v252 = vld [vmem:[%s240 + $0x88] sm:$0xff]
                %253 = vst [vmem:[%s241 + $0x28] sm:$0xff] %v252
                %v254 = vld [vmem:[%s240 + $0x90] sm:$0xff]
                %255 = vst [vmem:[%s241 + $0x30] sm:$0xff] %v254
                %v256 = vld [vmem:[%s240 + $0x98] sm:$0xff]
                %257 = vst [vmem:[%s241 + $0x38] sm:$0xff] %v256
              $region41: #{_lambda_.5} parent=35 // loop_footer
                %s239 = sadd.s32 1, %s235
              $region42: #{_lambda_.5} parent=35 // loop_footer_branch
                %234 = sbr.rel target = $region38
              $region43: #{_lambda_.5} parent=35 // loop_exit
                _
            $region36: #{_lambda_.5} parent=31 // pred_fallthru
              _
            // Predicated region
            $region44: #{_lambda_.5} parent=31 // pred_check
              _
            $region45: #{_lambda_.5} parent=31 // pred_check_branch
              %259 = sbr.rel target = $region47
            $region46: #{_lambda_.5} parent=31 // pred_region
              _
            $region47: #{_lambda_.5} parent=31 // pred_fallthru
              _
          $region32: #{_lambda_.5} parent=27 // pred_fallthru
            _
          %260 = vnop
        $region28: #{_lambda_.5} parent=19 // pred_fallthru
          _
        // Predicated region
        $region48: #{_lambda_.5} parent=19 // pred_check
          %p261 = pneg %p106
        $region49: #{_lambda_.5} parent=19 // pred_check_branch
          %263 = sbr.rel (%p261) target = $region51
        $region50: #{_lambda_.5} parent=19 // pred_region
          %s264 = sand.u32 %s96, 1
          %s265 = sand.u32 %s96, 1
          %s266 = smul.addr %s265, 64
          %s267 = scalar_lea.vmem [#allocation3], %s266
          %s268 = smul.u32 4, %s13
          %s269 = smul.addr %s268, 8
          %s270 = scalar_lea.vmem %s3, %s269
          // Predicated region
          $region52: #{_lambda_.5} parent=50 // pred_check
            _
          $region53: #{_lambda_.5} parent=50 // pred_check_branch
            %272 = sbr.rel (0) target = $region55
          $region54: #{_lambda_.5} parent=50 // pred_region
            // Predicated region
            $region56: #{_lambda_.5} parent=54 // pred_check
              _
            $region57: #{_lambda_.5} parent=54 // pred_check_branch
              %274 = sbr.rel (0) target = $region59
            $region58: #{_lambda_.5} parent=54 // pred_region
              loop: start=0, step=1, limit=1
              $region60: #{_lambda_.5} parent=58 // loop_pre_header
                _
              $region61: #{_lambda_.5} parent=58 // loop_header
                %s276 = sphi 0, %s280
                %p277 = scmp.ge.s32.totalorder %s276, 1
                %s281 = sphi %s270, %s270
                %s282 = sphi %s267, %s267
              $region62: #{_lambda_.5} parent=58 // loop_header_branch
                %279 = sbr.rel (%p277) target = $region66
              $region63: #{_lambda_.5} parent=58 // loop_body
                %v283 = vld [vmem:[%s281] sm:$0xff]
                %284 = vst [vmem:[%s282] sm:$0xff] %v283
                %v285 = vld [vmem:[%s281 + $0x8] sm:$0xff]
                %286 = vst [vmem:[%s282 + $0x8] sm:$0xff] %v285
                %v287 = vld [vmem:[%s281 + $0x10] sm:$0xff]
                %288 = vst [vmem:[%s282 + $0x10] sm:$0xff] %v287
                %v289 = vld [vmem:[%s281 + $0x18] sm:$0xff]
                %290 = vst [vmem:[%s282 + $0x18] sm:$0xff] %v289
                %v291 = vld [vmem:[%s281 + $0x80] sm:$0xff]
                %292 = vst [vmem:[%s282 + $0x20] sm:$0xff] %v291
                %v293 = vld [vmem:[%s281 + $0x88] sm:$0xff]
                %294 = vst [vmem:[%s282 + $0x28] sm:$0xff] %v293
                %v295 = vld [vmem:[%s281 + $0x90] sm:$0xff]
                %296 = vst [vmem:[%s282 + $0x30] sm:$0xff] %v295
                %v297 = vld [vmem:[%s281 + $0x98] sm:$0xff]
                %298 = vst [vmem:[%s282 + $0x38] sm:$0xff] %v297
              $region64: #{_lambda_.5} parent=58 // loop_footer
                %s280 = sadd.s32 1, %s276
              $region65: #{_lambda_.5} parent=58 // loop_footer_branch
                %275 = sbr.rel target = $region61
              $region66: #{_lambda_.5} parent=58 // loop_exit
                _
            $region59: #{_lambda_.5} parent=54 // pred_fallthru
              _
            // Predicated region
            $region67: #{_lambda_.5} parent=54 // pred_check
              _
            $region68: #{_lambda_.5} parent=54 // pred_check_branch
              %300 = sbr.rel target = $region70
            $region69: #{_lambda_.5} parent=54 // pred_region
              _
            $region70: #{_lambda_.5} parent=54 // pred_fallthru
              _
          $region55: #{_lambda_.5} parent=50 // pred_fallthru
            _
          %301 = vnop
        $region51: #{_lambda_.5} parent=19 // pred_fallthru
          _
        // Predicated region
        $region71: #{_lambda_.5} parent=19 // pred_check
          %p302 = pneg %p132
        $region72: #{_lambda_.5} parent=19 // pred_check_branch
          %304 = sbr.rel (%p302) target = $region74
        $region73: #{_lambda_.5} parent=19 // pred_region
          %s305 = sand.u32 %s122, 1
          %s306 = sand.u32 %s122, 1
          %s307 = smul.addr %s306, 64
          %s308 = scalar_lea.vmem [#allocation4], %s307
          %s309 = smul.u32 4, %s13
          %s310 = smul.addr %s309, 8
          %s311 = scalar_lea.vmem %s4, %s310
          // Predicated region
          $region75: #{_lambda_.5} parent=73 // pred_check
            _
          $region76: #{_lambda_.5} parent=73 // pred_check_branch
            %313 = sbr.rel (0) target = $region78
          $region77: #{_lambda_.5} parent=73 // pred_region
            // Predicated region
            $region79: #{_lambda_.5} parent=77 // pred_check
              _
            $region80: #{_lambda_.5} parent=77 // pred_check_branch
              %315 = sbr.rel (0) target = $region82
            $region81: #{_lambda_.5} parent=77 // pred_region
              loop: start=0, step=1, limit=1
              $region83: #{_lambda_.5} parent=81 // loop_pre_header
                _
              $region84: #{_lambda_.5} parent=81 // loop_header
                %s317 = sphi 0, %s321
                %p318 = scmp.ge.s32.totalorder %s317, 1
                %s322 = sphi %s311, %s311
                %s323 = sphi %s308, %s308
              $region85: #{_lambda_.5} parent=81 // loop_header_branch
                %320 = sbr.rel (%p318) target = $region89
              $region86: #{_lambda_.5} parent=81 // loop_body
                %v324 = vld [vmem:[%s322] sm:$0xff]
                %325 = vst [vmem:[%s323] sm:$0xff] %v324
                %v326 = vld [vmem:[%s322 + $0x8] sm:$0xff]
                %327 = vst [vmem:[%s323 + $0x8] sm:$0xff] %v326
                %v328 = vld [vmem:[%s322 + $0x10] sm:$0xff]
                %329 = vst [vmem:[%s323 + $0x10] sm:$0xff] %v328
                %v330 = vld [vmem:[%s322 + $0x18] sm:$0xff]
                %331 = vst [vmem:[%s323 + $0x18] sm:$0xff] %v330
                %v332 = vld [vmem:[%s322 + $0x80] sm:$0xff]
                %333 = vst [vmem:[%s323 + $0x20] sm:$0xff] %v332
                %v334 = vld [vmem:[%s322 + $0x88] sm:$0xff]
                %335 = vst [vmem:[%s323 + $0x28] sm:$0xff] %v334
                %v336 = vld [vmem:[%s322 + $0x90] sm:$0xff]
                %337 = vst [vmem:[%s323 + $0x30] sm:$0xff] %v336
                %v338 = vld [vmem:[%s322 + $0x98] sm:$0xff]
                %339 = vst [vmem:[%s323 + $0x38] sm:$0xff] %v338
              $region87: #{_lambda_.5} parent=81 // loop_footer
                %s321 = sadd.s32 1, %s317
              $region88: #{_lambda_.5} parent=81 // loop_footer_branch
                %316 = sbr.rel target = $region84
              $region89: #{_lambda_.5} parent=81 // loop_exit
                _
            $region82: #{_lambda_.5} parent=77 // pred_fallthru
              _
            // Predicated region
            $region90: #{_lambda_.5} parent=77 // pred_check
              _
            $region91: #{_lambda_.5} parent=77 // pred_check_branch
              %341 = sbr.rel target = $region93
            $region92: #{_lambda_.5} parent=77 // pred_region
              _
            $region93: #{_lambda_.5} parent=77 // pred_fallthru
              _
          $region78: #{_lambda_.5} parent=73 // pred_fallthru
            _
          %342 = vnop
        $region74: #{_lambda_.5} parent=19 // pred_fallthru
          _
      $region20: #{_lambda_.5} parent=5 // pred_fallthru
        _
      %p343 = scmp.le.s32.totalorder 1, %s13
      %p344 = scmp.lt.s32.totalorder %s13, 5
      %p345 = pnand %p343, %p344
      %p346 = pneg %p345
      // Predicated region
      $region94: #{_lambda_.5} parent=5 // pred_check
        _
      $region95: #{_lambda_.5} parent=5 // pred_check_branch
        %348 = sbr.rel (%p345) target = $region97
      $region96: #{_lambda_.5} parent=5 // pred_region
        %s349 = ssub.s32 %s13, 1
        %s350 = sand.u32 %s73, 1
        %s351 = sand.u32 %s73, 1
        %s352 = smul.addr %s351, 64
        %s353 = scalar_lea.vmem [#allocation2], %s352
        // Predicated region
        $region98: #{_lambda_.5} parent=96 // pred_check
          %p354 = pneg %p86
        $region99: #{_lambda_.5} parent=96 // pred_check_branch
          %356 = sbr.rel (%p354) target = $region101
        $region100: #{_lambda_.5} parent=96 // pred_region
          _
        $region101: #{_lambda_.5} parent=96 // pred_fallthru
          _
        %s357 = sand.u32 %s99, 1
        %s358 = sand.u32 %s99, 1
        %s359 = smul.addr %s358, 64
        %s360 = scalar_lea.vmem [#allocation3], %s359
        // Predicated region
        $region102: #{_lambda_.5} parent=96 // pred_check
          %p361 = pneg %p112
        $region103: #{_lambda_.5} parent=96 // pred_check_branch
          %363 = sbr.rel (%p361) target = $region105
        $region104: #{_lambda_.5} parent=96 // pred_region
          _
        $region105: #{_lambda_.5} parent=96 // pred_fallthru
          _
        %s364 = sand.u32 %s125, 1
        %s365 = sand.u32 %s125, 1
        %s366 = smul.addr %s365, 64
        %s367 = scalar_lea.vmem [#allocation4], %s366
        // Predicated region
        $region106: #{_lambda_.5} parent=96 // pred_check
          %p368 = pneg %p138
        $region107: #{_lambda_.5} parent=96 // pred_check_branch
          %370 = sbr.rel (%p368) target = $region109
        $region108: #{_lambda_.5} parent=96 // pred_region
          _
        $region109: #{_lambda_.5} parent=96 // pred_fallthru
          _
        %p371 = pneg %p34
        %p372 = pneg %p31
        %s373 = smul.u32 4, %s18
        %p374 = scmp.lt.s32.totalorder %s373, 15
        %s375 = scalar_select %p374, %s373, 15
        %s376 = scalar_lea.vmem %s1, %s375
        %p377 = pneg %p60
        %p378 = pneg %p57
        %s379 = sand.u32 %s73, 1
        %s380 = sand.u32 %s73, 1
        %s381 = smul.addr %s380, 64
        %s382 = scalar_lea.vmem [#allocation2], %s381
        %p383 = pneg %p86
        %p384 = pneg %p83
        %s385 = sand.u32 %s99, 1
        %s386 = sand.u32 %s99, 1
        %s387 = smul.addr %s386, 64
        %s388 = scalar_lea.vmem [#allocation3], %s387
        %p389 = pneg %p112
        %p390 = pneg %p109
        %s391 = sand.u32 %s125, 1
        %s392 = sand.u32 %s125, 1
        %s393 = smul.addr %s392, 64
        %s394 = scalar_lea.vmem [#allocation4], %s393
        %p395 = pneg %p138
        %p396 = pneg %p135
        %p397 = pneg %p164
        %p398 = pneg %p161
        %s399 = smul.u32 4, %s18
        %p400 = scmp.lt.s32.totalorder %s399, 15
        %s401 = scalar_select %p400, %s399, 15
        %s402 = scalar_lea.vmem %s5, %s401
        %p403 = pneg %p190
        %p404 = pneg %p187
        %s405 = smul.u32 4, %s18
        %p406 = scmp.lt.s32.totalorder %s405, 15
        %s407 = scalar_select %p406, %s405, 15
        %s408 = scalar_lea.vmem %s6, %s407
        %s409 = smul.u32 4, %s18
        %p410 = scmp.lt.s32.totalorder %s409, 15
        %s411 = scalar_select %p410, %s409, 15
        %s412 = scalar_lea.vmem %s1, %s411
        %s413 = smul.u32 4, %s18
        %s414 = smul.u32 4, %s18
        %s415 = smul.u32 4, %s18
        %s416 = smul.u32 4, %s18
        %s417 = smul.u32 4, %s18
        %p418 = scmp.lt.s32.totalorder %s417, 15
        %s419 = scalar_select %p418, %s417, 15
        %s420 = scalar_lea.vmem %s5, %s419
        %s421 = smul.u32 4, %s18
        %s422 = smul.u32 4, %s18
        %p423 = scmp.lt.s32.totalorder %s422, 15
        %s424 = scalar_select %p423, %s422, 15
        %s425 = scalar_lea.vmem %s6, %s424
        %s426 = smul.u32 4, %s18
        %v427 = vld [vmem:[%s412] sm:$0xf]
        %v428 = vld [vmem:[%s0] sm:$0xff]
        %v429 = vld [vmem:[%s0 + $0x8] sm:$0x7]
        %v430 = vld [vmem:[%s353] sm:$0xff]
        %v431 = vld [vmem:[%s353 + $0x8] sm:$0xff]
        %v432 = vld [vmem:[%s353 + $0x10] sm:$0xff]
        %v433 = vld [vmem:[%s353 + $0x18] sm:$0xff]
        %v434 = vld [vmem:[%s353 + $0x20] sm:$0x3]
        %v435 = vld [vmem:[%s353 + $0x28] sm:$0x3]
        %v436 = vld [vmem:[%s353 + $0x30] sm:$0x3]
        %v437 = vld [vmem:[%s353 + $0x38] sm:$0x3]
        %v438 = vmul.f32 %v430, 0.125
        %v439 = vmul.f32 %v431, 0.125
        %v440 = vmul.f32 %v432, 0.125
        %v441 = vmul.f32 %v433, 0.125
        %v442 = vmul.f32 %v434, 0.125
        %v443 = vmul.f32 %v435, 0.125
        %v444 = vmul.f32 %v436, 0.125
        %v445 = vmul.f32 %v437, 0.125
        %v446 = vld [vmem:[%s360] sm:$0xff]
        %v447 = vld [vmem:[%s360 + $0x8] sm:$0xff]
        %v448 = vld [vmem:[%s360 + $0x10] sm:$0xff]
        %v449 = vld [vmem:[%s360 + $0x18] sm:$0xff]
        %v450 = vld [vmem:[%s360 + $0x20] sm:$0x3]
        %v451 = vld [vmem:[%s360 + $0x28] sm:$0x3]
        %v452 = vld [vmem:[%s360 + $0x30] sm:$0x3]
        %v453 = vld [vmem:[%s360 + $0x38] sm:$0x3]
        %v454 = vmul.f32 %v446, 0.125
        %v455 = vmul.f32 %v447, 0.125
        %v456 = vmul.f32 %v448, 0.125
        %v457 = vmul.f32 %v449, 0.125
        %v458 = vmul.f32 %v450, 0.125
        %v459 = vmul.f32 %v451, 0.125
        %v460 = vmul.f32 %v452, 0.125
        %v461 = vmul.f32 %v453, 0.125
        %v462 = vld [vmem:[%s367] sm:$0xff]
        %v463 = vld [vmem:[%s367 + $0x8] sm:$0xff]
        %v464 = vld [vmem:[%s367 + $0x10] sm:$0xff]
        %v465 = vld [vmem:[%s367 + $0x18] sm:$0xff]
        %v466 = vld [vmem:[%s367 + $0x20] sm:$0x7]
        %v467 = vld [vmem:[%s367 + $0x28] sm:$0x7]
        %v468 = vld [vmem:[%s367 + $0x30] sm:$0x7]
        %v469 = vld [vmem:[%s367 + $0x38] sm:$0x7]
        %vm470 = vcmask 1041408
        %v471 = vsel %vm470, %v442, -inf
        %v472 = vmax.f32 %v438, %v471
        %v473 = vrot.slane %v472, 4
        %v474 = vmax.f32 %v472, %v473
        %v475 = vrot.slane %v474, 2
        %v476 = vmax.f32 %v474, %v475
        %v477 = vrot.slane %v476, 1
        %v478 = vmax.f32 %v476, %v477
        %v479 = vsel %vm470, %v443, -inf
        %v480 = vmax.f32 %v439, %v479
        %v481 = vrot.slane %v480, 4
        %v482 = vmax.f32 %v480, %v481
        %v483 = vrot.slane %v482, 2
        %v484 = vmax.f32 %v482, %v483
        %v485 = vrot.slane %v484, 1
        %v486 = vmax.f32 %v484, %v485
        %v487 = vsel %vm470, %v444, -inf
        %v488 = vmax.f32 %v440, %v487
        %v489 = vrot.slane %v488, 4
        %v490 = vmax.f32 %v488, %v489
        %v491 = vrot.slane %v490, 2
        %v492 = vmax.f32 %v490, %v491
        %v493 = vrot.slane %v492, 1
        %v494 = vmax.f32 %v492, %v493
        %v495 = vsel %vm470, %v445, -inf
        %v496 = vmax.f32 %v441, %v495
        %v497 = vrot.slane %v496, 4
        %v498 = vmax.f32 %v496, %v497
        %v499 = vrot.slane %v498, 2
        %v500 = vmax.f32 %v498, %v499
        %v501 = vrot.slane %v500, 1
        %v502 = vmax.f32 %v500, %v501
        %v503 = vsub.f32 %v438, %v478
        %v504 = vsub.f32 %v439, %v486
        %v505 = vsub.f32 %v440, %v494
        %v506 = vsub.f32 %v441, %v502
        %v507 = vsub.f32 %v442, %v478
        %v508 = vsub.f32 %v443, %v486
        %v509 = vsub.f32 %v444, %v494
        %v510 = vsub.f32 %v445, %v502
        %v511 = vmul.f32 %v503, 1.442695
        %v512 = vpow.pop %v511
        %v513 = vmul.f32 %v504, 1.442695
        %v514 = vpow.pop %v513
        %v515 = vmul.f32 %v505, 1.442695
        %v516 = vpow.pop %v515
        %v517 = vmul.f32 %v506, 1.442695
        %v518 = vpow.pop %v517
        %v519 = vmul.f32 %v507, 1.442695
        %v520 = vpow.pop %v519
        %v521 = vmul.f32 %v508, 1.442695
        %v522 = vpow.pop %v521
        %v523 = vmul.f32 %v509, 1.442695
        %v524 = vpow.pop %v523
        %v525 = vmul.f32 %v510, 1.442695
        %v526 = vpow.pop %v525
        %v527 = vsel %vm470, %v520, 0.0
        %v528 = vadd.f32 %v512, %v527
        %v529 = vrot.slane %v528, 4
        %v530 = vadd.f32 %v528, %v529
        %v531 = vrot.slane %v530, 2
        %v532 = vadd.f32 %v530, %v531
        %v533 = vrot.slane %v532, 1
        %v534 = vadd.f32 %v532, %v533
        %v535 = vsel %vm470, %v522, 0.0
        %v536 = vadd.f32 %v514, %v535
        %v537 = vrot.slane %v536, 4
        %v538 = vadd.f32 %v536, %v537
        %v539 = vrot.slane %v538, 2
        %v540 = vadd.f32 %v538, %v539
        %v541 = vrot.slane %v540, 1
        %v542 = vadd.f32 %v540, %v541
        %v543 = vsel %vm470, %v524, 0.0
        %v544 = vadd.f32 %v516, %v543
        %v545 = vrot.slane %v544, 4
        %v546 = vadd.f32 %v544, %v545
        %v547 = vrot.slane %v546, 2
        %v548 = vadd.f32 %v546, %v547
        %v549 = vrot.slane %v548, 1
        %v550 = vadd.f32 %v548, %v549
        %v551 = vsel %vm470, %v526, 0.0
        %v552 = vadd.f32 %v518, %v551
        %v553 = vrot.slane %v552, 4
        %v554 = vadd.f32 %v552, %v553
        %v555 = vrot.slane %v554, 2
        %v556 = vadd.f32 %v554, %v555
        %v557 = vrot.slane %v556, 1
        %v558 = vadd.f32 %v556, %v557
        %v559 = vrcp.pop %v534
        %v560 = vmul.f32 %v512, %v559
        %v561 = vrcp.pop %v542
        %v562 = vmul.f32 %v514, %v561
        %v563 = vrcp.pop %v550
        %v564 = vmul.f32 %v516, %v563
        %v565 = vrcp.pop %v558
        %v566 = vmul.f32 %v518, %v565
        %v567 = vmul.f32 %v520, %v559
        %v568 = vmul.f32 %v522, %v561
        %v569 = vmul.f32 %v524, %v563
        %v570 = vmul.f32 %v526, %v565
        %v571 = vmul.f32 %v560, 0.99
        %v572 = vmul.f32 %v562, 0.99
        %v573 = vmul.f32 %v564, 0.99
        %v574 = vmul.f32 %v566, 0.99
        %v575 = vmul.f32 %v567, 0.99
        %v576 = vmul.f32 %v568, 0.99
        %v577 = vmul.f32 %v569, 0.99
        %v578 = vmul.f32 %v570, 0.99
        %v579 = vadd.f32 %v571, 0.001
        %v580 = vadd.f32 %v572, 0.001
        %v581 = vadd.f32 %v573, 0.001
        %v582 = vadd.f32 %v574, 0.001
        %v583 = vadd.f32 %v575, 0.001
        %v584 = vadd.f32 %v576, 0.001
        %v585 = vadd.f32 %v577, 0.001
        %v586 = vadd.f32 %v578, 0.001
        %v587 = vsel %vm470, %v458, -inf
        %v588 = vmax.f32 %v454, %v587
        %v589 = vrot.slane %v588, 4
        %v590 = vmax.f32 %v588, %v589
        %v591 = vrot.slane %v590, 2
        %v592 = vmax.f32 %v590, %v591
        %v593 = vrot.slane %v592, 1
        %v594 = vmax.f32 %v592, %v593
        %v595 = vsel %vm470, %v459, -inf
        %v596 = vmax.f32 %v455, %v595
        %v597 = vrot.slane %v596, 4
        %v598 = vmax.f32 %v596, %v597
        %v599 = vrot.slane %v598, 2
        %v600 = vmax.f32 %v598, %v599
        %v601 = vrot.slane %v600, 1
        %v602 = vmax.f32 %v600, %v601
        %v603 = vsel %vm470, %v460, -inf
        %v604 = vmax.f32 %v456, %v603
        %v605 = vrot.slane %v604, 4
        %v606 = vmax.f32 %v604, %v605
        %v607 = vrot.slane %v606, 2
        %v608 = vmax.f32 %v606, %v607
        %v609 = vrot.slane %v608, 1
        %v610 = vmax.f32 %v608, %v609
        %v611 = vsel %vm470, %v461, -inf
        %v612 = vmax.f32 %v457, %v611
        %v613 = vrot.slane %v612, 4
        %v614 = vmax.f32 %v612, %v613
        %v615 = vrot.slane %v614, 2
        %v616 = vmax.f32 %v614, %v615
        %v617 = vrot.slane %v616, 1
        %v618 = vmax.f32 %v616, %v617
        %v619 = vsub.f32 %v454, %v594
        %v620 = vsub.f32 %v455, %v602
        %v621 = vsub.f32 %v456, %v610
        %v622 = vsub.f32 %v457, %v618
        %v623 = vsub.f32 %v458, %v594
        %v624 = vsub.f32 %v459, %v602
        %v625 = vsub.f32 %v460, %v610
        %v626 = vsub.f32 %v461, %v618
        %v627 = vmul.f32 %v619, 1.442695
        %v628 = vpow.pop %v627
        %v629 = vmul.f32 %v620, 1.442695
        %v630 = vpow.pop %v629
        %v631 = vmul.f32 %v621, 1.442695
        %v632 = vpow.pop %v631
        %v633 = vmul.f32 %v622, 1.442695
        %v634 = vpow.pop %v633
        %v635 = vmul.f32 %v623, 1.442695
        %v636 = vpow.pop %v635
        %v637 = vmul.f32 %v624, 1.442695
        %v638 = vpow.pop %v637
        %v639 = vmul.f32 %v625, 1.442695
        %v640 = vpow.pop %v639
        %v641 = vmul.f32 %v626, 1.442695
        %v642 = vpow.pop %v641
        %v643 = vsel %vm470, %v636, 0.0
        %v644 = vadd.f32 %v628, %v643
        %v645 = vrot.slane %v644, 4
        %v646 = vadd.f32 %v644, %v645
        %v647 = vrot.slane %v646, 2
        %v648 = vadd.f32 %v646, %v647
        %v649 = vrot.slane %v648, 1
        %v650 = vadd.f32 %v648, %v649
        %v651 = vsel %vm470, %v638, 0.0
        %v652 = vadd.f32 %v630, %v651
        %v653 = vrot.slane %v652, 4
        %v654 = vadd.f32 %v652, %v653
        %v655 = vrot.slane %v654, 2
        %v656 = vadd.f32 %v654, %v655
        %v657 = vrot.slane %v656, 1
        %v658 = vadd.f32 %v656, %v657
        %v659 = vsel %vm470, %v640, 0.0
        %v660 = vadd.f32 %v632, %v659
        %v661 = vrot.slane %v660, 4
        %v662 = vadd.f32 %v660, %v661
        %v663 = vrot.slane %v662, 2
        %v664 = vadd.f32 %v662, %v663
        %v665 = vrot.slane %v664, 1
        %v666 = vadd.f32 %v664, %v665
        %v667 = vsel %vm470, %v642, 0.0
        %v668 = vadd.f32 %v634, %v667
        %v669 = vrot.slane %v668, 4
        %v670 = vadd.f32 %v668, %v669
        %v671 = vrot.slane %v670, 2
        %v672 = vadd.f32 %v670, %v671
        %v673 = vrot.slane %v672, 1
        %v674 = vadd.f32 %v672, %v673
        %v675 = vrcp.pop %v650
        %v676 = vmul.f32 %v628, %v675
        %v677 = vrcp.pop %v658
        %v678 = vmul.f32 %v630, %v677
        %v679 = vrcp.pop %v666
        %v680 = vmul.f32 %v632, %v679
        %v681 = vrcp.pop %v674
        %v682 = vmul.f32 %v634, %v681
        %v683 = vmul.f32 %v636, %v675
        %v684 = vmul.f32 %v638, %v677
        %v685 = vmul.f32 %v640, %v679
        %v686 = vmul.f32 %v642, %v681
        %v687 = vmul.f32 %v676, 0.99
        %v688 = vmul.f32 %v678, 0.99
        %v689 = vmul.f32 %v680, 0.99
        %v690 = vmul.f32 %v682, 0.99
        %v691 = vmul.f32 %v683, 0.99
        %v692 = vmul.f32 %v684, 0.99
        %v693 = vmul.f32 %v685, 0.99
        %v694 = vmul.f32 %v686, 0.99
        %v695 = vadd.f32 %v687, 0.001
        %v696 = vadd.f32 %v688, 0.001
        %v697 = vadd.f32 %v689, 0.001
        %v698 = vadd.f32 %v690, 0.001
        %v699 = vadd.f32 %v691, 0.001
        %v700 = vadd.f32 %v692, 0.001
        %v701 = vadd.f32 %v693, 0.001
        %v702 = vadd.f32 %v694, 0.001
        %vm703 = vcmask 80896
        %v705 = vsel %vm703, %v428, 0
        %v708 = vsel %vm703, %v429, 0
        %v711 = vsel %vm470, %v583, 0
        %v714 = vsel %vm470, %v584, 0
        %v717 = vsel %vm470, %v585, 0
        %v720 = vsel %vm470, %v586, 0
        %v723 = vsel %vm470, %v699, 0
        %v726 = vsel %vm470, %v700, 0
        %v729 = vsel %vm470, %v701, 0
        %v732 = vsel %vm470, %v702, 0
        %734 = vmatprep.subr.mxu0 0.0
        %735 = vmatpush1.msra.mxu0 0.0
        %736 = vmatprep.subr.mxu0 0.0
        %737 = vmatpush1.msra.mxu0 0.0
        %738 = vmatprep.subr.mxu0 0.0
        %739 = vmatpush1.msra.mxu0 0.0
        %740 = vmatprep.subr.mxu0 0.0
        %741 = vmatpush1.msra.mxu0 0.0
        %742 = vmatprep.subr.mxu0 0.0
        %743 = vmatpush1.msra.mxu0 0.0
        %744 = vmatprep.subr.mxu0 0.0
        %745 = vmatpush1.msra.mxu0 0.0
        %746 = vmatprep.subr.mxu0 0.0
        %747 = vmatpush1.msra.mxu0 0.0
        %748 = vmatprep.subr.mxu0 0.0
        %749 = vmatpush1.msra.mxu0 0.0
        %750 = vmatprep.subr.mxu0 0.0
        %751 = vmatpush1.msra.mxu0 0.0
        %752 = vmatprep.subr.mxu0 0.0
        %753 = vmatpush1.msra.mxu0 0.0
        %754 = vmatprep.subr.mxu0 0.0
        %755 = vmatpush1.msra.mxu0 0.0
        %756 = vmatprep.subr.mxu0 0.0
        %757 = vmatpush1.msra.mxu0 0.0
        %758 = vmatprep.subr.mxu0 0.0
        %759 = vmatpush1.msra.mxu0 0.0
        %760 = vmatprep.subr.mxu0 0.0
        %761 = vmatpush1.msra.mxu0 0.0
        %762 = vmatprep.subr.mxu0 %v714
        %763 = vmatpush1.msra.mxu0 %v711
        %764 = vmatprep.subr.mxu0 %v580
        %765 = vmatpush1.msra.mxu0 %v579
        %766 = vmatprep.subr.mxu0 0.0
        %767 = vmatpush2.msra.mxu0 0.0
        %768 = vmatprep.subr.mxu0 0.0
        %769 = vmatpush2.msra.mxu0 0.0
        %770 = vmatprep.subr.mxu0 0.0
        %771 = vmatpush2.msra.mxu0 0.0
        %772 = vmatprep.subr.mxu0 0.0
        %773 = vmatpush2.msra.mxu0 0.0
        %774 = vmatprep.subr.mxu0 0.0
        %775 = vmatpush2.msra.mxu0 0.0
        %776 = vmatprep.subr.mxu0 0.0
        %777 = vmatpush2.msra.mxu0 0.0
        %778 = vmatprep.subr.mxu0 0.0
        %779 = vmatpush2.msra.mxu0 0.0
        %780 = vmatprep.subr.mxu0 0.0
        %781 = vmatpush2.msra.mxu0 0.0
        %782 = vmatprep.subr.mxu0 0.0
        %783 = vmatpush2.msra.mxu0 0.0
        %784 = vmatprep.subr.mxu0 0.0
        %785 = vmatpush2.msra.mxu0 0.0
        %786 = vmatprep.subr.mxu0 0.0
        %787 = vmatpush2.msra.mxu0 0.0
        %788 = vmatprep.subr.mxu0 0.0
        %789 = vmatpush2.msra.mxu0 0.0
        %790 = vmatprep.subr.mxu0 0.0
        %791 = vmatpush2.msra.mxu0 0.0
        %792 = vmatprep.subr.mxu0 0.0
        %793 = vmatpush2.msra.mxu0 0.0
        %794 = vmatprep.subr.mxu0 0.0
        %795 = vmatpush2.msra.mxu0 0.0
        %796 = vmatprep.subr.mxu0 0.0
        %797 = vmatpush2.msra.mxu0 0.0
        %798 = vmatprep.mubr.f32.mxu0 0.0
        %799 = vmatmul.mubr.f32.gmra.mxu0 %v705
        %v800 = vpop.f32.mrf.mxu0
        %v801 = vadd.f32 0.0, %v800
        %v802 = vpop.f32.mrf.mxu0
        %v803 = vadd.f32 0.0, %v802
        %804 = vmatprep.mubr.f32.mxu0 0.0
        %805 = vmatmul.mubr.f32.gmra.mxu0 %v708
        %v806 = vpop.f32.mrf.mxu0
        %v807 = vadd.f32 0.0, %v806
        %v808 = vpop.f32.mrf.mxu0
        %v809 = vadd.f32 0.0, %v808
        %810 = vdwg.mxu0
        %811 = vmatprep.subr.mxu0 0.0
        %812 = vmatpush1.msra.mxu0 0.0
        %813 = vmatprep.subr.mxu0 0.0
        %814 = vmatpush1.msra.mxu0 0.0
        %815 = vmatprep.subr.mxu0 0.0
        %816 = vmatpush1.msra.mxu0 0.0
        %817 = vmatprep.subr.mxu0 0.0
        %818 = vmatpush1.msra.mxu0 0.0
        %819 = vmatprep.subr.mxu0 0.0
        %820 = vmatpush1.msra.mxu0 0.0
        %821 = vmatprep.subr.mxu0 0.0
        %822 = vmatpush1.msra.mxu0 0.0
        %823 = vmatprep.subr.mxu0 0.0
        %824 = vmatpush1.msra.mxu0 0.0
        %825 = vmatprep.subr.mxu0 0.0
        %826 = vmatpush1.msra.mxu0 0.0
        %827 = vmatprep.subr.mxu0 0.0
        %828 = vmatpush1.msra.mxu0 0.0
        %829 = vmatprep.subr.mxu0 0.0
        %830 = vmatpush1.msra.mxu0 0.0
        %831 = vmatprep.subr.mxu0 0.0
        %832 = vmatpush1.msra.mxu0 0.0
        %833 = vmatprep.subr.mxu0 0.0
        %834 = vmatpush1.msra.mxu0 0.0
        %835 = vmatprep.subr.mxu0 0.0
        %836 = vmatpush1.msra.mxu0 0.0
        %837 = vmatprep.subr.mxu0 0.0
        %838 = vmatpush1.msra.mxu0 0.0
        %839 = vmatprep.subr.mxu0 %v720
        %840 = vmatpush1.msra.mxu0 %v717
        %841 = vmatprep.subr.mxu0 %v582
        %842 = vmatpush1.msra.mxu0 %v581
        %843 = vmatprep.subr.mxu0 0.0
        %844 = vmatpush2.msra.mxu0 0.0
        %845 = vmatprep.subr.mxu0 0.0
        %846 = vmatpush2.msra.mxu0 0.0
        %847 = vmatprep.subr.mxu0 0.0
        %848 = vmatpush2.msra.mxu0 0.0
        %849 = vmatprep.subr.mxu0 0.0
        %850 = vmatpush2.msra.mxu0 0.0
        %851 = vmatprep.subr.mxu0 0.0
        %852 = vmatpush2.msra.mxu0 0.0
        %853 = vmatprep.subr.mxu0 0.0
        %854 = vmatpush2.msra.mxu0 0.0
        %855 = vmatprep.subr.mxu0 0.0
        %856 = vmatpush2.msra.mxu0 0.0
        %857 = vmatprep.subr.mxu0 0.0
        %858 = vmatpush2.msra.mxu0 0.0
        %859 = vmatprep.subr.mxu0 0.0
        %860 = vmatpush2.msra.mxu0 0.0
        %861 = vmatprep.subr.mxu0 0.0
        %862 = vmatpush2.msra.mxu0 0.0
        %863 = vmatprep.subr.mxu0 0.0
        %864 = vmatpush2.msra.mxu0 0.0
        %865 = vmatprep.subr.mxu0 0.0
        %866 = vmatpush2.msra.mxu0 0.0
        %867 = vmatprep.subr.mxu0 0.0
        %868 = vmatpush2.msra.mxu0 0.0
        %869 = vmatprep.subr.mxu0 0.0
        %870 = vmatpush2.msra.mxu0 0.0
        %871 = vmatprep.subr.mxu0 0.0
        %872 = vmatpush2.msra.mxu0 0.0
        %873 = vmatprep.subr.mxu0 0.0
        %874 = vmatpush2.msra.mxu0 0.0
        %875 = vmatprep.mubr.f32.mxu0 0.0
        %876 = vmatmul.mubr.f32.gmra.mxu0 %v705
        %v877 = vpop.f32.mrf.mxu0
        %v878 = vadd.f32 0.0, %v877
        %v879 = vpop.f32.mrf.mxu0
        %v880 = vadd.f32 0.0, %v879
        %881 = vmatprep.mubr.f32.mxu0 0.0
        %882 = vmatmul.mubr.f32.gmra.mxu0 %v708
        %v883 = vpop.f32.mrf.mxu0
        %v884 = vadd.f32 0.0, %v883
        %v885 = vpop.f32.mrf.mxu0
        %v886 = vadd.f32 0.0, %v885
        %887 = vdwg.mxu0
        %888 = vmatprep.subr.mxu0 0.0
        %889 = vmatpush1.msra.mxu0 0.0
        %890 = vmatprep.subr.mxu0 0.0
        %891 = vmatpush1.msra.mxu0 0.0
        %892 = vmatprep.subr.mxu0 0.0
        %893 = vmatpush1.msra.mxu0 0.0
        %894 = vmatprep.subr.mxu0 0.0
        %895 = vmatpush1.msra.mxu0 0.0
        %896 = vmatprep.subr.mxu0 0.0
        %897 = vmatpush1.msra.mxu0 0.0
        %898 = vmatprep.subr.mxu0 0.0
        %899 = vmatpush1.msra.mxu0 0.0
        %900 = vmatprep.subr.mxu0 0.0
        %901 = vmatpush1.msra.mxu0 0.0
        %902 = vmatprep.subr.mxu0 0.0
        %903 = vmatpush1.msra.mxu0 0.0
        %904 = vmatprep.subr.mxu0 0.0
        %905 = vmatpush1.msra.mxu0 0.0
        %906 = vmatprep.subr.mxu0 0.0
        %907 = vmatpush1.msra.mxu0 0.0
        %908 = vmatprep.subr.mxu0 0.0
        %909 = vmatpush1.msra.mxu0 0.0
        %910 = vmatprep.subr.mxu0 0.0
        %911 = vmatpush1.msra.mxu0 0.0
        %912 = vmatprep.subr.mxu0 0.0
        %913 = vmatpush1.msra.mxu0 0.0
        %914 = vmatprep.subr.mxu0 0.0
        %915 = vmatpush1.msra.mxu0 0.0
        %916 = vmatprep.subr.mxu0 %v726
        %917 = vmatpush1.msra.mxu0 %v723
        %918 = vmatprep.subr.mxu0 %v696
        %919 = vmatpush1.msra.mxu0 %v695
        %920 = vmatprep.subr.mxu0 0.0
        %921 = vmatpush2.msra.mxu0 0.0
        %922 = vmatprep.subr.mxu0 0.0
        %923 = vmatpush2.msra.mxu0 0.0
        %924 = vmatprep.subr.mxu0 0.0
        %925 = vmatpush2.msra.mxu0 0.0
        %926 = vmatprep.subr.mxu0 0.0
        %927 = vmatpush2.msra.mxu0 0.0
        %928 = vmatprep.subr.mxu0 0.0
        %929 = vmatpush2.msra.mxu0 0.0
        %930 = vmatprep.subr.mxu0 0.0
        %931 = vmatpush2.msra.mxu0 0.0
        %932 = vmatprep.subr.mxu0 0.0
        %933 = vmatpush2.msra.mxu0 0.0
        %934 = vmatprep.subr.mxu0 0.0
        %935 = vmatpush2.msra.mxu0 0.0
        %936 = vmatprep.subr.mxu0 0.0
        %937 = vmatpush2.msra.mxu0 0.0
        %938 = vmatprep.subr.mxu0 0.0
        %939 = vmatpush2.msra.mxu0 0.0
        %940 = vmatprep.subr.mxu0 0.0
        %941 = vmatpush2.msra.mxu0 0.0
        %942 = vmatprep.subr.mxu0 0.0
        %943 = vmatpush2.msra.mxu0 0.0
        %944 = vmatprep.subr.mxu0 0.0
        %945 = vmatpush2.msra.mxu0 0.0
        %946 = vmatprep.subr.mxu0 0.0
        %947 = vmatpush2.msra.mxu0 0.0
        %948 = vmatprep.subr.mxu0 0.0
        %949 = vmatpush2.msra.mxu0 0.0
        %950 = vmatprep.subr.mxu0 0.0
        %951 = vmatpush2.msra.mxu0 0.0
        %952 = vmatprep.mubr.f32.mxu0 0.0
        %953 = vmatmul.mubr.f32.gmra.mxu0 %v705
        %v954 = vpop.f32.mrf.mxu0
        %v955 = vadd.f32 0.0, %v954
        %v956 = vpop.f32.mrf.mxu0
        %v957 = vadd.f32 0.0, %v956
        %958 = vmatprep.mubr.f32.mxu0 0.0
        %959 = vmatmul.mubr.f32.gmra.mxu0 %v708
        %v960 = vpop.f32.mrf.mxu0
        %v961 = vadd.f32 0.0, %v960
        %v962 = vpop.f32.mrf.mxu0
        %v963 = vadd.f32 0.0, %v962
        %964 = vdwg.mxu0
        %965 = vmatprep.subr.mxu0 0.0
        %966 = vmatpush1.msra.mxu0 0.0
        %967 = vmatprep.subr.mxu0 0.0
        %968 = vmatpush1.msra.mxu0 0.0
        %969 = vmatprep.subr.mxu0 0.0
        %970 = vmatpush1.msra.mxu0 0.0
        %971 = vmatprep.subr.mxu0 0.0
        %972 = vmatpush1.msra.mxu0 0.0
        %973 = vmatprep.subr.mxu0 0.0
        %974 = vmatpush1.msra.mxu0 0.0
        %975 = vmatprep.subr.mxu0 0.0
        %976 = vmatpush1.msra.mxu0 0.0
        %977 = vmatprep.subr.mxu0 0.0
        %978 = vmatpush1.msra.mxu0 0.0
        %979 = vmatprep.subr.mxu0 0.0
        %980 = vmatpush1.msra.mxu0 0.0
        %981 = vmatprep.subr.mxu0 0.0
        %982 = vmatpush1.msra.mxu0 0.0
        %983 = vmatprep.subr.mxu0 0.0
        %984 = vmatpush1.msra.mxu0 0.0
        %985 = vmatprep.subr.mxu0 0.0
        %986 = vmatpush1.msra.mxu0 0.0
        %987 = vmatprep.subr.mxu0 0.0
        %988 = vmatpush1.msra.mxu0 0.0
        %989 = vmatprep.subr.mxu0 0.0
        %990 = vmatpush1.msra.mxu0 0.0
        %991 = vmatprep.subr.mxu0 0.0
        %992 = vmatpush1.msra.mxu0 0.0
        %993 = vmatprep.subr.mxu0 %v732
        %994 = vmatpush1.msra.mxu0 %v729
        %995 = vmatprep.subr.mxu0 %v698
        %996 = vmatpush1.msra.mxu0 %v697
        %997 = vmatprep.subr.mxu0 0.0
        %998 = vmatpush2.msra.mxu0 0.0
        %999 = vmatprep.subr.mxu0 0.0
        %1000 = vmatpush2.msra.mxu0 0.0
        %1001 = vmatprep.subr.mxu0 0.0
        %1002 = vmatpush2.msra.mxu0 0.0
        %1003 = vmatprep.subr.mxu0 0.0
        %1004 = vmatpush2.msra.mxu0 0.0
        %1005 = vmatprep.subr.mxu0 0.0
        %1006 = vmatpush2.msra.mxu0 0.0
        %1007 = vmatprep.subr.mxu0 0.0
        %1008 = vmatpush2.msra.mxu0 0.0
        %1009 = vmatprep.subr.mxu0 0.0
        %1010 = vmatpush2.msra.mxu0 0.0
        %1011 = vmatprep.subr.mxu0 0.0
        %1012 = vmatpush2.msra.mxu0 0.0
        %1013 = vmatprep.subr.mxu0 0.0
        %1014 = vmatpush2.msra.mxu0 0.0
        %1015 = vmatprep.subr.mxu0 0.0
        %1016 = vmatpush2.msra.mxu0 0.0
        %1017 = vmatprep.subr.mxu0 0.0
        %1018 = vmatpush2.msra.mxu0 0.0
        %1019 = vmatprep.subr.mxu0 0.0
        %1020 = vmatpush2.msra.mxu0 0.0
        %1021 = vmatprep.subr.mxu0 0.0
        %1022 = vmatpush2.msra.mxu0 0.0
        %1023 = vmatprep.subr.mxu0 0.0
        %1024 = vmatpush2.msra.mxu0 0.0
        %1025 = vmatprep.subr.mxu0 0.0
        %1026 = vmatpush2.msra.mxu0 0.0
        %1027 = vmatprep.subr.mxu0 0.0
        %1028 = vmatpush2.msra.mxu0 0.0
        %1029 = vmatprep.mubr.f32.mxu0 0.0
        %1030 = vmatmul.mubr.f32.gmra.mxu0 %v705
        %v1031 = vpop.f32.mrf.mxu0
        %v1032 = vadd.f32 0.0, %v1031
        %v1033 = vpop.f32.mrf.mxu0
        %v1034 = vadd.f32 0.0, %v1033
        %1035 = vmatprep.mubr.f32.mxu0 0.0
        %1036 = vmatmul.mubr.f32.gmra.mxu0 %v708
        %v1037 = vpop.f32.mrf.mxu0
        %v1038 = vadd.f32 0.0, %v1037
        %v1039 = vpop.f32.mrf.mxu0
        %v1040 = vadd.f32 0.0, %v1039
        %1041 = vdwg.mxu0
        %v1042 = vlaneseq
        %v1043 = vshrl.u32 %v1042, 7
        %v1044 = vadd.s32 %v1043, 8
        %vm1045 = vcmp.eq.s32.totalorder %v1043, 10
        %vm1046 = vcmp.eq.s32.totalorder %v1044, 10
        %v1047 = vsel %vm1045, 1.0, %v801
        %v1048 = vsel %vm1045, 1.0, %v803
        %v1049 = vsel %vm1045, 1.0, %v878
        %v1050 = vsel %vm1045, 1.0, %v880
        %v1051 = vsel %vm1046, 1.0, %v807
        %v1052 = vsel %vm1046, 1.0, %v809
        %v1053 = vsel %vm1046, 1.0, %v884
        %v1054 = vsel %vm1046, 1.0, %v886
        %v1055 = vsel %vm1045, 1.0, %v955
        %v1056 = vsel %vm1045, 1.0, %v957
        %v1057 = vsel %vm1045, 1.0, %v1032
        %v1058 = vsel %vm1045, 1.0, %v1034
        %v1059 = vsel %vm1046, 1.0, %v961
        %v1060 = vsel %vm1046, 1.0, %v963
        %v1061 = vsel %vm1046, 1.0, %v1038
        %v1062 = vsel %vm1046, 1.0, %v1040
        %v1063 = vmax.f32 %v462, 0.0
        %v1064 = vmax.f32 %v463, 0.0
        %v1065 = vmax.f32 %v464, 0.0
        %v1066 = vmax.f32 %v465, 0.0
        %v1067 = vmax.f32 %v466, 0.0
        %v1068 = vmax.f32 %v467, 0.0
        %v1069 = vmax.f32 %v468, 0.0
        %v1070 = vmax.f32 %v469, 0.0
        %v1071 = vand.u32 2147483647, %v462
        %v1072 = vand.u32 2147483647, %v463
        %v1073 = vand.u32 2147483647, %v464
        %v1074 = vand.u32 2147483647, %v465
        %v1075 = vand.u32 2147483647, %v466
        %v1076 = vand.u32 2147483647, %v467
        %v1077 = vand.u32 2147483647, %v468
        %v1078 = vand.u32 2147483647, %v469
        %v1079 = vsub.f32 0.0, %v1071
        %v1080 = vsub.f32 0.0, %v1072
        %v1081 = vsub.f32 0.0, %v1073
        %v1082 = vsub.f32 0.0, %v1074
        %v1083 = vsub.f32 0.0, %v1075
        %v1084 = vsub.f32 0.0, %v1076
        %v1085 = vsub.f32 0.0, %v1077
        %v1086 = vsub.f32 0.0, %v1078
        %v1087 = vmul.f32 %v1079, 1.442695
        %v1088 = vpow.pop %v1087
        %v1089 = vmul.f32 %v1080, 1.442695
        %v1090 = vpow.pop %v1089
        %v1091 = vmul.f32 %v1081, 1.442695
        %v1092 = vpow.pop %v1091
        %v1093 = vmul.f32 %v1082, 1.442695
        %v1094 = vpow.pop %v1093
        %v1095 = vmul.f32 %v1083, 1.442695
        %v1096 = vpow.pop %v1095
        %v1097 = vmul.f32 %v1084, 1.442695
        %v1098 = vpow.pop %v1097
        %v1099 = vmul.f32 %v1085, 1.442695
        %v1100 = vpow.pop %v1099
        %v1101 = vmul.f32 %v1086, 1.442695
        %v1102 = vpow.pop %v1101
        %v1103 = vadd.f32 %v1088, 1.0
        %v1104 = vlog2.pop %v1103
        %v1105 = vmul.f32 %v1104, 0.6931472
        %v1106 = vmul.f32 -0.5, %v1088
        %v1107 = vadd.f32 %v1106, 1.0
        %v1108 = vmul.f32 %v1107, %v1088
        %v1109 = vand.u32 2147483647, %v1088
        %vm1110 = vcmp.lt.f32.partialorder %v1109, 0.0004427343
        %v1111 = vsel %vm1110, %v1108, %v1105
        %v1112 = vadd.f32 %v1090, 1.0
        %v1113 = vlog2.pop %v1112
        %v1114 = vmul.f32 %v1113, 0.6931472
        %v1115 = vmul.f32 -0.5, %v1090
        %v1116 = vadd.f32 %v1115, 1.0
        %v1117 = vmul.f32 %v1116, %v1090
        %v1118 = vand.u32 2147483647, %v1090
        %vm1119 = vcmp.lt.f32.partialorder %v1118, 0.0004427343
        %v1120 = vsel %vm1119, %v1117, %v1114
        %v1121 = vadd.f32 %v1092, 1.0
        %v1122 = vlog2.pop %v1121
        %v1123 = vmul.f32 %v1122, 0.6931472
        %v1124 = vmul.f32 -0.5, %v1092
        %v1125 = vadd.f32 %v1124, 1.0
        %v1126 = vmul.f32 %v1125, %v1092
        %v1127 = vand.u32 2147483647, %v1092
        %vm1128 = vcmp.lt.f32.partialorder %v1127, 0.0004427343
        %v1129 = vsel %vm1128, %v1126, %v1123
        %v1130 = vadd.f32 %v1094, 1.0
        %v1131 = vlog2.pop %v1130
        %v1132 = vmul.f32 %v1131, 0.6931472
        %v1133 = vmul.f32 -0.5, %v1094
        %v1134 = vadd.f32 %v1133, 1.0
        %v1135 = vmul.f32 %v1134, %v1094
        %v1136 = vand.u32 2147483647, %v1094
        %vm1137 = vcmp.lt.f32.partialorder %v1136, 0.0004427343
        %v1138 = vsel %vm1137, %v1135, %v1132
        %v1139 = vadd.f32 %v1096, 1.0
        %v1140 = vlog2.pop %v1139
        %v1141 = vmul.f32 %v1140, 0.6931472
        %v1142 = vmul.f32 -0.5, %v1096
        %v1143 = vadd.f32 %v1142, 1.0
        %v1144 = vmul.f32 %v1143, %v1096
        %v1145 = vand.u32 2147483647, %v1096
        %vm1146 = vcmp.lt.f32.partialorder %v1145, 0.0004427343
        %v1147 = vsel %vm1146, %v1144, %v1141
        %v1148 = vadd.f32 %v1098, 1.0
        %v1149 = vlog2.pop %v1148
        %v1150 = vmul.f32 %v1149, 0.6931472
        %v1151 = vmul.f32 -0.5, %v1098
        %v1152 = vadd.f32 %v1151, 1.0
        %v1153 = vmul.f32 %v1152, %v1098
        %v1154 = vand.u32 2147483647, %v1098
        %vm1155 = vcmp.lt.f32.partialorder %v1154, 0.0004427343
        %v1156 = vsel %vm1155, %v1153, %v1150
        %v1157 = vadd.f32 %v1100, 1.0
        %v1158 = vlog2.pop %v1157
        %v1159 = vmul.f32 %v1158, 0.6931472
        %v1160 = vmul.f32 -0.5, %v1100
        %v1161 = vadd.f32 %v1160, 1.0
        %v1162 = vmul.f32 %v1161, %v1100
        %v1163 = vand.u32 2147483647, %v1100
        %vm1164 = vcmp.lt.f32.partialorder %v1163, 0.0004427343
        %v1165 = vsel %vm1164, %v1162, %v1159
        %v1166 = vadd.f32 %v1102, 1.0
        %v1167 = vlog2.pop %v1166
        %v1168 = vmul.f32 %v1167, 0.6931472
        %v1169 = vmul.f32 -0.5, %v1102
        %v1170 = vadd.f32 %v1169, 1.0
        %v1171 = vmul.f32 %v1170, %v1102
        %v1172 = vand.u32 2147483647, %v1102
        %vm1173 = vcmp.lt.f32.partialorder %v1172, 0.0004427343
        %v1174 = vsel %vm1173, %v1171, %v1168
        %v1175 = vadd.f32 %v1063, %v1111
        %v1176 = vadd.f32 %v1064, %v1120
        %v1177 = vadd.f32 %v1065, %v1129
        %v1178 = vadd.f32 %v1066, %v1138
        %v1179 = vadd.f32 %v1067, %v1147
        %v1180 = vadd.f32 %v1068, %v1156
        %v1181 = vadd.f32 %v1069, %v1165
        %v1182 = vadd.f32 %v1070, %v1174
        %v1183 = vadd.f32 %v1175, 0.001
        %v1184 = vadd.f32 %v1176, 0.001
        %v1185 = vadd.f32 %v1177, 0.001
        %v1186 = vadd.f32 %v1178, 0.001
        %v1187 = vadd.f32 %v1179, 0.001
        %v1188 = vadd.f32 %v1180, 0.001
        %v1189 = vadd.f32 %v1181, 0.001
        %v1190 = vadd.f32 %v1182, 0.001
        %v1191 = vadd.f32 %v1047, 1e-06
        %v1192 = vadd.f32 %v1048, 1e-06
        %v1193 = vadd.f32 %v1049, 1e-06
        %v1194 = vadd.f32 %v1050, 1e-06
        %v1195 = vadd.f32 %v1051, 1e-06
        %v1196 = vadd.f32 %v1052, 1e-06
        %v1197 = vadd.f32 %v1053, 1e-06
        %v1198 = vadd.f32 %v1054, 1e-06
        %v1199 = vsel %vm1045, %v1191, %v801
        %v1200 = vsel %vm1045, %v1192, %v803
        %v1201 = vsel %vm1045, %v1193, %v878
        %v1202 = vsel %vm1045, %v1194, %v880
        %v1203 = vsel %vm1046, %v1195, %v807
        %v1204 = vsel %vm1046, %v1196, %v809
        %v1205 = vsel %vm1046, %v1197, %v884
        %v1206 = vsel %vm1046, %v1198, %v886
        %v1208 = vlaneseq
        %v1209 = vshrl.u32 %v1208, 7
        %v1210 = vsub.s32 0, %v1209
        %v1211 = vrot.slane %v427, %v1210
        %v1212 = vlaneseq
        %v1213 = vshrl.u32 %v1212, 7
        %v1214 = vsub.s32 1, %v1213
        %v1215 = vrot.slane %v427, %v1214
        %v1216 = vlaneseq
        %v1217 = vshrl.u32 %v1216, 7
        %v1218 = vsub.s32 2, %v1217
        %v1219 = vrot.slane %v427, %v1218
        %v1220 = vlaneseq
        %v1221 = vshrl.u32 %v1220, 7
        %v1222 = vsub.s32 3, %v1221
        %v1223 = vrot.slane %v427, %v1222
        %vm1228 = vcmp.ge.f32.partialorder %v1211, %v1199
        %vm1229 = vcmp.ge.f32.partialorder %v1215, %v1200
        %vm1230 = vcmp.ge.f32.partialorder %v1219, %v1201
        %vm1231 = vcmp.ge.f32.partialorder %v1223, %v1202
        %vm1232 = vcmp.ge.f32.partialorder %v1211, %v1203
        %vm1233 = vcmp.ge.f32.partialorder %v1215, %v1204
        %vm1234 = vcmp.ge.f32.partialorder %v1219, %v1205
        %vm1235 = vcmp.ge.f32.partialorder %v1223, %v1206
        %v1236 = vsel %vm1228, 1, 0
        %v1237 = vsel %vm1229, 1, 0
        %v1238 = vsel %vm1230, 1, 0
        %v1239 = vsel %vm1231, 1, 0
        %v1240 = vsel %vm1232, 1, 0
        %v1241 = vsel %vm1233, 1, 0
        %v1242 = vsel %vm1234, 1, 0
        %v1243 = vsel %vm1235, 1, 0
        %vm1244 = vcmask 1042432
        %v1245 = vsel %vm1244, %v1240, 0
        %v1246 = vadd.s32 %v1236, %v1245
        %v1247 = vrot.slane %v1246, 4
        %v1248 = vadd.s32 %v1246, %v1247
        %v1249 = vrot.slane %v1248, 2
        %v1250 = vadd.s32 %v1248, %v1249
        %v1251 = vrot.slane %v1250, 1
        %v1252 = vadd.s32 %v1250, %v1251
        %v1253 = vsel %vm1244, %v1241, 0
        %v1254 = vadd.s32 %v1237, %v1253
        %v1255 = vrot.slane %v1254, 4
        %v1256 = vadd.s32 %v1254, %v1255
        %v1257 = vrot.slane %v1256, 2
        %v1258 = vadd.s32 %v1256, %v1257
        %v1259 = vrot.slane %v1258, 1
        %v1260 = vadd.s32 %v1258, %v1259
        %v1261 = vsel %vm1244, %v1242, 0
        %v1262 = vadd.s32 %v1238, %v1261
        %v1263 = vrot.slane %v1262, 4
        %v1264 = vadd.s32 %v1262, %v1263
        %v1265 = vrot.slane %v1264, 2
        %v1266 = vadd.s32 %v1264, %v1265
        %v1267 = vrot.slane %v1266, 1
        %v1268 = vadd.s32 %v1266, %v1267
        %v1269 = vsel %vm1244, %v1243, 0
        %v1270 = vadd.s32 %v1239, %v1269
        %v1271 = vrot.slane %v1270, 4
        %v1272 = vadd.s32 %v1270, %v1271
        %v1273 = vrot.slane %v1272, 2
        %v1274 = vadd.s32 %v1272, %v1273
        %v1275 = vrot.slane %v1274, 1
        %v1276 = vadd.s32 %v1274, %v1275
        %v1277 = vsub.s32 %v1252, 1
        %v1278 = vsub.s32 %v1260, 1
        %v1279 = vsub.s32 %v1268, 1
        %v1280 = vsub.s32 %v1276, 1
        %vm1281 = vcmp.gt.s32.totalorder %v1277, 0
        %v1282 = vsel %vm1281, %v1277, 0
        %vm1283 = vcmp.gt.s32.totalorder %v1278, 0
        %v1284 = vsel %vm1283, %v1278, 0
        %vm1285 = vcmp.gt.s32.totalorder %v1279, 0
        %v1286 = vsel %vm1285, %v1279, 0
        %vm1287 = vcmp.gt.s32.totalorder %v1280, 0
        %v1288 = vsel %vm1287, %v1280, 0
        %vm1289 = vcmp.lt.s32.totalorder %v1282, 9
        %v1290 = vsel %vm1289, %v1282, 9
        %vm1291 = vcmp.lt.s32.totalorder %v1284, 9
        %v1292 = vsel %vm1291, %v1284, 9
        %vm1293 = vcmp.lt.s32.totalorder %v1286, 9
        %v1294 = vsel %vm1293, %v1286, 9
        %vm1295 = vcmp.lt.s32.totalorder %v1288, 9
        %v1296 = vsel %vm1295, %v1288, 9
        %vm1297 = vcmp.eq.s32.totalorder %v1043, %v1290
        %vm1298 = vcmp.eq.s32.totalorder %v1043, %v1292
        %vm1299 = vcmp.eq.s32.totalorder %v1043, %v1294
        %vm1300 = vcmp.eq.s32.totalorder %v1043, %v1296
        %vm1301 = vcmp.eq.s32.totalorder %v1044, %v1290
        %vm1302 = vcmp.eq.s32.totalorder %v1044, %v1292
        %vm1303 = vcmp.eq.s32.totalorder %v1044, %v1294
        %vm1304 = vcmp.eq.s32.totalorder %v1044, %v1296
        %v1305 = vsel %vm1297, 1, 0
        %v1306 = vsel %vm1298, 1, 0
        %v1307 = vsel %vm1299, 1, 0
        %v1308 = vsel %vm1300, 1, 0
        %v1309 = vsel %vm1301, 1, 0
        %v1310 = vsel %vm1302, 1, 0
        %v1311 = vsel %vm1303, 1, 0
        %v1312 = vsel %vm1304, 1, 0
        %v1313 = vcvt.s32.f32 %v1305
        %v1314 = vcvt.s32.f32 %v1306
        %v1315 = vcvt.s32.f32 %v1307
        %v1316 = vcvt.s32.f32 %v1308
        %v1317 = vcvt.s32.f32 %v1309
        %v1318 = vcvt.s32.f32 %v1310
        %v1319 = vcvt.s32.f32 %v1311
        %v1320 = vcvt.s32.f32 %v1312
        %v1321 = vadd.s32 %v1290, 1
        %v1322 = vadd.s32 %v1292, 1
        %v1323 = vadd.s32 %v1294, 1
        %v1324 = vadd.s32 %v1296, 1
        %vm1325 = vcmp.eq.s32.totalorder %v1043, %v1321
        %vm1326 = vcmp.eq.s32.totalorder %v1043, %v1322
        %vm1327 = vcmp.eq.s32.totalorder %v1043, %v1323
        %vm1328 = vcmp.eq.s32.totalorder %v1043, %v1324
        %vm1329 = vcmp.eq.s32.totalorder %v1044, %v1321
        %vm1330 = vcmp.eq.s32.totalorder %v1044, %v1322
        %vm1331 = vcmp.eq.s32.totalorder %v1044, %v1323
        %vm1332 = vcmp.eq.s32.totalorder %v1044, %v1324
        %v1333 = vsel %vm1325, 1, 0
        %v1334 = vsel %vm1326, 1, 0
        %v1335 = vsel %vm1327, 1, 0
        %v1336 = vsel %vm1328, 1, 0
        %v1337 = vsel %vm1329, 1, 0
        %v1338 = vsel %vm1330, 1, 0
        %v1339 = vsel %vm1331, 1, 0
        %v1340 = vsel %vm1332, 1, 0
        %v1341 = vcvt.s32.f32 %v1333
        %v1342 = vcvt.s32.f32 %v1334
        %v1343 = vcvt.s32.f32 %v1335
        %v1344 = vcvt.s32.f32 %v1336
        %v1345 = vcvt.s32.f32 %v1337
        %v1346 = vcvt.s32.f32 %v1338
        %v1347 = vcvt.s32.f32 %v1339
        %v1348 = vcvt.s32.f32 %v1340
        %v1349 = vmul.f32 %v1047, %v1313
        %v1350 = vmul.f32 %v1048, %v1314
        %v1351 = vmul.f32 %v1049, %v1315
        %v1352 = vmul.f32 %v1050, %v1316
        %v1353 = vmul.f32 %v1051, %v1317
        %v1354 = vmul.f32 %v1052, %v1318
        %v1355 = vmul.f32 %v1053, %v1319
        %v1356 = vmul.f32 %v1054, %v1320
        %v1357 = vsel %vm1244, %v1353, 0.0
        %v1358 = vadd.f32 %v1349, %v1357
        %v1359 = vrot.slane %v1358, 4
        %v1360 = vadd.f32 %v1358, %v1359
        %v1361 = vrot.slane %v1360, 2
        %v1362 = vadd.f32 %v1360, %v1361
        %v1363 = vrot.slane %v1362, 1
        %v1364 = vadd.f32 %v1362, %v1363
        %v1365 = vsel %vm1244, %v1354, 0.0
        %v1366 = vadd.f32 %v1350, %v1365
        %v1367 = vrot.slane %v1366, 4
        %v1368 = vadd.f32 %v1366, %v1367
        %v1369 = vrot.slane %v1368, 2
        %v1370 = vadd.f32 %v1368, %v1369
        %v1371 = vrot.slane %v1370, 1
        %v1372 = vadd.f32 %v1370, %v1371
        %v1373 = vsel %vm1244, %v1355, 0.0
        %v1374 = vadd.f32 %v1351, %v1373
        %v1375 = vrot.slane %v1374, 4
        %v1376 = vadd.f32 %v1374, %v1375
        %v1377 = vrot.slane %v1376, 2
        %v1378 = vadd.f32 %v1376, %v1377
        %v1379 = vrot.slane %v1378, 1
        %v1380 = vadd.f32 %v1378, %v1379
        %v1381 = vsel %vm1244, %v1356, 0.0
        %v1382 = vadd.f32 %v1352, %v1381
        %v1383 = vrot.slane %v1382, 4
        %v1384 = vadd.f32 %v1382, %v1383
        %v1385 = vrot.slane %v1384, 2
        %v1386 = vadd.f32 %v1384, %v1385
        %v1387 = vrot.slane %v1386, 1
        %v1388 = vadd.f32 %v1386, %v1387
        %v1389 = vmul.f32 %v1047, %v1341
        %v1390 = vmul.f32 %v1048, %v1342
        %v1391 = vmul.f32 %v1049, %v1343
        %v1392 = vmul.f32 %v1050, %v1344
        %v1393 = vmul.f32 %v1051, %v1345
        %v1394 = vmul.f32 %v1052, %v1346
        %v1395 = vmul.f32 %v1053, %v1347
        %v1396 = vmul.f32 %v1054, %v1348
        %v1397 = vsel %vm1244, %v1393, 0.0
        %v1398 = vadd.f32 %v1389, %v1397
        %v1399 = vrot.slane %v1398, 4
        %v1400 = vadd.f32 %v1398, %v1399
        %v1401 = vrot.slane %v1400, 2
        %v1402 = vadd.f32 %v1400, %v1401
        %v1403 = vrot.slane %v1402, 1
        %v1404 = vadd.f32 %v1402, %v1403
        %v1405 = vsel %vm1244, %v1394, 0.0
        %v1406 = vadd.f32 %v1390, %v1405
        %v1407 = vrot.slane %v1406, 4
        %v1408 = vadd.f32 %v1406, %v1407
        %v1409 = vrot.slane %v1408, 2
        %v1410 = vadd.f32 %v1408, %v1409
        %v1411 = vrot.slane %v1410, 1
        %v1412 = vadd.f32 %v1410, %v1411
        %v1413 = vsel %vm1244, %v1395, 0.0
        %v1414 = vadd.f32 %v1391, %v1413
        %v1415 = vrot.slane %v1414, 4
        %v1416 = vadd.f32 %v1414, %v1415
        %v1417 = vrot.slane %v1416, 2
        %v1418 = vadd.f32 %v1416, %v1417
        %v1419 = vrot.slane %v1418, 1
        %v1420 = vadd.f32 %v1418, %v1419
        %v1421 = vsel %vm1244, %v1396, 0.0
        %v1422 = vadd.f32 %v1392, %v1421
        %v1423 = vrot.slane %v1422, 4
        %v1424 = vadd.f32 %v1422, %v1423
        %v1425 = vrot.slane %v1424, 2
        %v1426 = vadd.f32 %v1424, %v1425
        %v1427 = vrot.slane %v1426, 1
        %v1428 = vadd.f32 %v1426, %v1427
        %v1429 = vsub.f32 %v1404, %v1364
        %v1430 = vsub.f32 %v1412, %v1372
        %v1431 = vsub.f32 %v1420, %v1380
        %v1432 = vsub.f32 %v1428, %v1388
        %v1433 = vmul.f32 %v1055, %v1313
        %v1434 = vmul.f32 %v1056, %v1314
        %v1435 = vmul.f32 %v1057, %v1315
        %v1436 = vmul.f32 %v1058, %v1316
        %v1437 = vmul.f32 %v1059, %v1317
        %v1438 = vmul.f32 %v1060, %v1318
        %v1439 = vmul.f32 %v1061, %v1319
        %v1440 = vmul.f32 %v1062, %v1320
        %v1441 = vsel %vm1244, %v1437, 0.0
        %v1442 = vadd.f32 %v1433, %v1441
        %v1443 = vrot.slane %v1442, 4
        %v1444 = vadd.f32 %v1442, %v1443
        %v1445 = vrot.slane %v1444, 2
        %v1446 = vadd.f32 %v1444, %v1445
        %v1447 = vrot.slane %v1446, 1
        %v1448 = vadd.f32 %v1446, %v1447
        %v1449 = vsel %vm1244, %v1438, 0.0
        %v1450 = vadd.f32 %v1434, %v1449
        %v1451 = vrot.slane %v1450, 4
        %v1452 = vadd.f32 %v1450, %v1451
        %v1453 = vrot.slane %v1452, 2
        %v1454 = vadd.f32 %v1452, %v1453
        %v1455 = vrot.slane %v1454, 1
        %v1456 = vadd.f32 %v1454, %v1455
        %v1457 = vsel %vm1244, %v1439, 0.0
        %v1458 = vadd.f32 %v1435, %v1457
        %v1459 = vrot.slane %v1458, 4
        %v1460 = vadd.f32 %v1458, %v1459
        %v1461 = vrot.slane %v1460, 2
        %v1462 = vadd.f32 %v1460, %v1461
        %v1463 = vrot.slane %v1462, 1
        %v1464 = vadd.f32 %v1462, %v1463
        %v1465 = vsel %vm1244, %v1440, 0.0
        %v1466 = vadd.f32 %v1436, %v1465
        %v1467 = vrot.slane %v1466, 4
        %v1468 = vadd.f32 %v1466, %v1467
        %v1469 = vrot.slane %v1468, 2
        %v1470 = vadd.f32 %v1468, %v1469
        %v1471 = vrot.slane %v1470, 1
        %v1472 = vadd.f32 %v1470, %v1471
        %v1473 = vmul.f32 %v1055, %v1341
        %v1474 = vmul.f32 %v1056, %v1342
        %v1475 = vmul.f32 %v1057, %v1343
        %v1476 = vmul.f32 %v1058, %v1344
        %v1477 = vmul.f32 %v1059, %v1345
        %v1478 = vmul.f32 %v1060, %v1346
        %v1479 = vmul.f32 %v1061, %v1347
        %v1480 = vmul.f32 %v1062, %v1348
        %v1481 = vsel %vm1244, %v1477, 0.0
        %v1482 = vadd.f32 %v1473, %v1481
        %v1483 = vrot.slane %v1482, 4
        %v1484 = vadd.f32 %v1482, %v1483
        %v1485 = vrot.slane %v1484, 2
        %v1486 = vadd.f32 %v1484, %v1485
        %v1487 = vrot.slane %v1486, 1
        %v1488 = vadd.f32 %v1486, %v1487
        %v1489 = vsel %vm1244, %v1478, 0.0
        %v1490 = vadd.f32 %v1474, %v1489
        %v1491 = vrot.slane %v1490, 4
        %v1492 = vadd.f32 %v1490, %v1491
        %v1493 = vrot.slane %v1492, 2
        %v1494 = vadd.f32 %v1492, %v1493
        %v1495 = vrot.slane %v1494, 1
        %v1496 = vadd.f32 %v1494, %v1495
        %v1497 = vsel %vm1244, %v1479, 0.0
        %v1498 = vadd.f32 %v1475, %v1497
        %v1499 = vrot.slane %v1498, 4
        %v1500 = vadd.f32 %v1498, %v1499
        %v1501 = vrot.slane %v1500, 2
        %v1502 = vadd.f32 %v1500, %v1501
        %v1503 = vrot.slane %v1502, 1
        %v1504 = vadd.f32 %v1502, %v1503
        %v1505 = vsel %vm1244, %v1480, 0.0
        %v1506 = vadd.f32 %v1476, %v1505
        %v1507 = vrot.slane %v1506, 4
        %v1508 = vadd.f32 %v1506, %v1507
        %v1509 = vrot.slane %v1508, 2
        %v1510 = vadd.f32 %v1508, %v1509
        %v1511 = vrot.slane %v1510, 1
        %v1512 = vadd.f32 %v1510, %v1511
        %v1513 = vsub.f32 %v1488, %v1448
        %v1514 = vsub.f32 %v1496, %v1456
        %v1515 = vsub.f32 %v1504, %v1464
        %v1516 = vsub.f32 %v1512, %v1472
        %v1517 = vmul.f32 %v1183, %v1313
        %v1518 = vmul.f32 %v1184, %v1314
        %v1519 = vmul.f32 %v1185, %v1315
        %v1520 = vmul.f32 %v1186, %v1316
        %v1521 = vmul.f32 %v1187, %v1317
        %v1522 = vmul.f32 %v1188, %v1318
        %v1523 = vmul.f32 %v1189, %v1319
        %v1524 = vmul.f32 %v1190, %v1320
        %v1525 = vsel %vm1244, %v1521, 0.0
        %v1526 = vadd.f32 %v1517, %v1525
        %v1527 = vrot.slane %v1526, 4
        %v1528 = vadd.f32 %v1526, %v1527
        %v1529 = vrot.slane %v1528, 2
        %v1530 = vadd.f32 %v1528, %v1529
        %v1531 = vrot.slane %v1530, 1
        %v1532 = vadd.f32 %v1530, %v1531
        %v1533 = vsel %vm1244, %v1522, 0.0
        %v1534 = vadd.f32 %v1518, %v1533
        %v1535 = vrot.slane %v1534, 4
        %v1536 = vadd.f32 %v1534, %v1535
        %v1537 = vrot.slane %v1536, 2
        %v1538 = vadd.f32 %v1536, %v1537
        %v1539 = vrot.slane %v1538, 1
        %v1540 = vadd.f32 %v1538, %v1539
        %v1541 = vsel %vm1244, %v1523, 0.0
        %v1542 = vadd.f32 %v1519, %v1541
        %v1543 = vrot.slane %v1542, 4
        %v1544 = vadd.f32 %v1542, %v1543
        %v1545 = vrot.slane %v1544, 2
        %v1546 = vadd.f32 %v1544, %v1545
        %v1547 = vrot.slane %v1546, 1
        %v1548 = vadd.f32 %v1546, %v1547
        %v1549 = vsel %vm1244, %v1524, 0.0
        %v1550 = vadd.f32 %v1520, %v1549
        %v1551 = vrot.slane %v1550, 4
        %v1552 = vadd.f32 %v1550, %v1551
        %v1553 = vrot.slane %v1552, 2
        %v1554 = vadd.f32 %v1552, %v1553
        %v1555 = vrot.slane %v1554, 1
        %v1556 = vadd.f32 %v1554, %v1555
        %v1557 = vmul.f32 %v1183, %v1341
        %v1558 = vmul.f32 %v1184, %v1342
        %v1559 = vmul.f32 %v1185, %v1343
        %v1560 = vmul.f32 %v1186, %v1344
        %v1561 = vmul.f32 %v1187, %v1345
        %v1562 = vmul.f32 %v1188, %v1346
        %v1563 = vmul.f32 %v1189, %v1347
        %v1564 = vmul.f32 %v1190, %v1348
        %v1565 = vsel %vm1244, %v1561, 0.0
        %v1566 = vadd.f32 %v1557, %v1565
        %v1567 = vrot.slane %v1566, 4
        %v1568 = vadd.f32 %v1566, %v1567
        %v1569 = vrot.slane %v1568, 2
        %v1570 = vadd.f32 %v1568, %v1569
        %v1571 = vrot.slane %v1570, 1
        %v1572 = vadd.f32 %v1570, %v1571
        %v1573 = vsel %vm1244, %v1562, 0.0
        %v1574 = vadd.f32 %v1558, %v1573
        %v1575 = vrot.slane %v1574, 4
        %v1576 = vadd.f32 %v1574, %v1575
        %v1577 = vrot.slane %v1576, 2
        %v1578 = vadd.f32 %v1576, %v1577
        %v1579 = vrot.slane %v1578, 1
        %v1580 = vadd.f32 %v1578, %v1579
        %v1581 = vsel %vm1244, %v1563, 0.0
        %v1582 = vadd.f32 %v1559, %v1581
        %v1583 = vrot.slane %v1582, 4
        %v1584 = vadd.f32 %v1582, %v1583
        %v1585 = vrot.slane %v1584, 2
        %v1586 = vadd.f32 %v1584, %v1585
        %v1587 = vrot.slane %v1586, 1
        %v1588 = vadd.f32 %v1586, %v1587
        %v1589 = vsel %vm1244, %v1564, 0.0
        %v1590 = vadd.f32 %v1560, %v1589
        %v1591 = vrot.slane %v1590, 4
        %v1592 = vadd.f32 %v1590, %v1591
        %v1593 = vrot.slane %v1592, 2
        %v1594 = vadd.f32 %v1592, %v1593
        %v1595 = vrot.slane %v1594, 1
        %v1596 = vadd.f32 %v1594, %v1595
        %v1597 = vrcp.pop %v1429
        %v1598 = vmul.f32 %v1513, %v1597
        %v1599 = vrcp.pop %v1430
        %v1600 = vmul.f32 %v1514, %v1599
        %v1601 = vrcp.pop %v1431
        %v1602 = vmul.f32 %v1515, %v1601
        %v1603 = vrcp.pop %v1432
        %v1604 = vmul.f32 %v1516, %v1603
        %v1609 = vcombine.low %v1364, %v1372
        %v1610 = vcombine.low %v1380, %v1388
        %v1612 = vunpack.c.l.s4 1966171168
        %v1613 = vunpack.c.0.s8 %v1612
        %v1614 = vlaneseq
        %v1615 = vshrl.u32 %v1614, 7
        %v1616 = vsub.s32 %v1613, %v1615
        %v1617 = vrot.slane %v1609, %v1616
        %v1619 = vunpack.c.l.s4 1966171168
        %v1620 = vunpack.c.0.s8 %v1619
        %v1621 = vlaneseq
        %v1622 = vshrl.u32 %v1621, 7
        %v1623 = vsub.s32 %v1620, %v1622
        %v1624 = vrot.slane %v1610, %v1623
        %v1625 = vcombine.low %v1617, %v1624
        %v1627 = vunpack.c.l.s4 1966171168
        %v1628 = vunpack.c.0.s8 %v1627
        %v1629 = vlaneseq
        %v1630 = vshrl.u32 %v1629, 7
        %v1631 = vsub.s32 %v1628, %v1630
        %v1632 = vrot.slane %v1625, %v1631
        %v1634 = vsub.f32 %v427, %v1632
        %v1639 = vcombine.low %v1429, %v1430
        %v1640 = vcombine.low %v1431, %v1432
        %v1642 = vunpack.c.l.s4 1966171168
        %v1643 = vunpack.c.0.s8 %v1642
        %v1644 = vlaneseq
        %v1645 = vshrl.u32 %v1644, 7
        %v1646 = vsub.s32 %v1643, %v1645
        %v1647 = vrot.slane %v1639, %v1646
        %v1649 = vunpack.c.l.s4 1966171168
        %v1650 = vunpack.c.0.s8 %v1649
        %v1651 = vlaneseq
        %v1652 = vshrl.u32 %v1651, 7
        %v1653 = vsub.s32 %v1650, %v1652
        %v1654 = vrot.slane %v1640, %v1653
        %v1655 = vcombine.low %v1647, %v1654
        %v1657 = vunpack.c.l.s4 1966171168
        %v1658 = vunpack.c.0.s8 %v1657
        %v1659 = vlaneseq
        %v1660 = vshrl.u32 %v1659, 7
        %v1661 = vsub.s32 %v1658, %v1660
        %v1662 = vrot.slane %v1655, %v1661
        %v1664 = vrcp.pop %v1662
        %v1665 = vmul.f32 %v1634, %v1664
        %v1666 = vsub.f32 1.0, %v1665
        %v1667 = vmul.f32 %v1665, %v1666
        %v1668 = vmul.f32 %v1665, %v1665
        %v1670 = vlaneseq
        %v1671 = vshrl.u32 %v1670, 7
        %v1672 = vsub.s32 0, %v1671
        %v1673 = vrot.slane %v1668, %v1672
        %v1674 = vlaneseq
        %v1675 = vshrl.u32 %v1674, 7
        %v1676 = vsub.s32 1, %v1675
        %v1677 = vrot.slane %v1668, %v1676
        %v1678 = vlaneseq
        %v1679 = vshrl.u32 %v1678, 7
        %v1680 = vsub.s32 2, %v1679
        %v1681 = vrot.slane %v1668, %v1680
        %v1682 = vlaneseq
        %v1683 = vshrl.u32 %v1682, 7
        %v1684 = vsub.s32 3, %v1683
        %v1685 = vrot.slane %v1668, %v1684
        %v1690 = vmul.f32 %v1598, %v1673
        %v1691 = vmul.f32 %v1600, %v1677
        %v1692 = vmul.f32 %v1602, %v1681
        %v1693 = vmul.f32 %v1604, %v1685
        %v1695 = vlaneseq
        %v1696 = vshrl.u32 %v1695, 7
        %v1697 = vsub.s32 0, %v1696
        %v1698 = vrot.slane %v1667, %v1697
        %v1699 = vlaneseq
        %v1700 = vshrl.u32 %v1699, 7
        %v1701 = vsub.s32 1, %v1700
        %v1702 = vrot.slane %v1667, %v1701
        %v1703 = vlaneseq
        %v1704 = vshrl.u32 %v1703, 7
        %v1705 = vsub.s32 2, %v1704
        %v1706 = vrot.slane %v1667, %v1705
        %v1707 = vlaneseq
        %v1708 = vshrl.u32 %v1707, 7
        %v1709 = vsub.s32 3, %v1708
        %v1710 = vrot.slane %v1667, %v1709
        %v1715 = vmul.f32 %v1532, %v1698
        %v1716 = vmul.f32 %v1540, %v1702
        %v1717 = vmul.f32 %v1548, %v1706
        %v1718 = vmul.f32 %v1556, %v1710
        %v1719 = vadd.f32 %v1690, %v1715
        %v1720 = vadd.f32 %v1691, %v1716
        %v1721 = vadd.f32 %v1692, %v1717
        %v1722 = vadd.f32 %v1693, %v1718
        %v1723 = vmul.f32 %v1513, %v1719
        %v1724 = vmul.f32 %v1514, %v1720
        %v1725 = vmul.f32 %v1515, %v1721
        %v1726 = vmul.f32 %v1516, %v1722
        %v1727 = vadd.f32 %v1532, %v1572
        %v1728 = vadd.f32 %v1540, %v1580
        %v1729 = vadd.f32 %v1548, %v1588
        %v1730 = vadd.f32 %v1556, %v1596
        %v1731 = vmul.f32 %v1598, 2.0
        %v1732 = vmul.f32 %v1600, 2.0
        %v1733 = vmul.f32 %v1602, 2.0
        %v1734 = vmul.f32 %v1604, 2.0
        %v1735 = vsub.f32 %v1727, %v1731
        %v1736 = vsub.f32 %v1728, %v1732
        %v1737 = vsub.f32 %v1729, %v1733
        %v1738 = vsub.f32 %v1730, %v1734
        %v1739 = vmul.f32 %v1735, %v1698
        %v1740 = vmul.f32 %v1736, %v1702
        %v1741 = vmul.f32 %v1737, %v1706
        %v1742 = vmul.f32 %v1738, %v1710
        %v1743 = vadd.f32 %v1598, %v1739
        %v1744 = vadd.f32 %v1600, %v1740
        %v1745 = vadd.f32 %v1602, %v1741
        %v1746 = vadd.f32 %v1604, %v1742
        %v1747 = vrcp.pop %v1743
        %v1748 = vmul.f32 1.0, %v1747
        %v1749 = vrcp.pop %v1744
        %v1750 = vmul.f32 1.0, %v1749
        %v1751 = vrcp.pop %v1745
        %v1752 = vmul.f32 1.0, %v1751
        %v1753 = vrcp.pop %v1746
        %v1754 = vmul.f32 1.0, %v1753
        %v1755 = vmul.f32 %v1723, %v1748
        %v1756 = vmul.f32 %v1724, %v1750
        %v1757 = vmul.f32 %v1725, %v1752
        %v1758 = vmul.f32 %v1726, %v1754
        %v1759 = vadd.f32 %v1448, %v1755
        %v1760 = vadd.f32 %v1456, %v1756
        %v1761 = vadd.f32 %v1464, %v1757
        %v1762 = vadd.f32 %v1472, %v1758
        %v1767 = vcombine.low %v1759, %v1760
        %v1768 = vcombine.low %v1761, %v1762
        %v1770 = vunpack.c.l.s4 1966171168
        %v1771 = vunpack.c.0.s8 %v1770
        %v1772 = vlaneseq
        %v1773 = vshrl.u32 %v1772, 7
        %v1774 = vsub.s32 %v1771, %v1773
        %v1775 = vrot.slane %v1767, %v1774
        %v1777 = vunpack.c.l.s4 1966171168
        %v1778 = vunpack.c.0.s8 %v1777
        %v1779 = vlaneseq
        %v1780 = vshrl.u32 %v1779, 7
        %v1781 = vsub.s32 %v1778, %v1780
        %v1782 = vrot.slane %v1768, %v1781
        %v1783 = vcombine.low %v1775, %v1782
        %v1785 = vunpack.c.l.s4 1966171168
        %v1786 = vunpack.c.0.s8 %v1785
        %v1787 = vlaneseq
        %v1788 = vshrl.u32 %v1787, 7
        %v1789 = vsub.s32 %v1786, %v1788
        %v1790 = vrot.slane %v1783, %v1789
        %v1792 = vlaneseq
        %vm1793 = vcmp.ge.s32.totalorder %v1792, 0
        %vm1794 = vcmp.lt.s32.totalorder %v1792, 512
        %vm1795 = vmand %vm1793, %vm1794
        %1796 = vst.msk [vmem:[%s420] sm:$0xf] %vm1795, %v1790
        %v1797 = vmul.f32 %v1598, %v1598
        %v1798 = vmul.f32 %v1600, %v1600
        %v1799 = vmul.f32 %v1602, %v1602
        %v1800 = vmul.f32 %v1604, %v1604
        %v1801 = vmul.f32 %v1572, %v1673
        %v1802 = vmul.f32 %v1580, %v1677
        %v1803 = vmul.f32 %v1588, %v1681
        %v1804 = vmul.f32 %v1596, %v1685
        %v1805 = vmul.f32 %v1731, %v1698
        %v1806 = vmul.f32 %v1732, %v1702
        %v1807 = vmul.f32 %v1733, %v1706
        %v1808 = vmul.f32 %v1734, %v1710
        %v1809 = vadd.f32 %v1801, %v1805
        %v1810 = vadd.f32 %v1802, %v1806
        %v1811 = vadd.f32 %v1803, %v1807
        %v1812 = vadd.f32 %v1804, %v1808
        %v1814 = vlaneseq
        %v1815 = vshrl.u32 %v1814, 7
        %v1816 = vsub.s32 0, %v1815
        %v1817 = vrot.slane %v1666, %v1816
        %v1818 = vlaneseq
        %v1819 = vshrl.u32 %v1818, 7
        %v1820 = vsub.s32 1, %v1819
        %v1821 = vrot.slane %v1666, %v1820
        %v1822 = vlaneseq
        %v1823 = vshrl.u32 %v1822, 7
        %v1824 = vsub.s32 2, %v1823
        %v1825 = vrot.slane %v1666, %v1824
        %v1826 = vlaneseq
        %v1827 = vshrl.u32 %v1826, 7
        %v1828 = vsub.s32 3, %v1827
        %v1829 = vrot.slane %v1666, %v1828
        %v1834 = vmul.f32 %v1532, %v1817
        %v1835 = vmul.f32 %v1540, %v1821
        %v1836 = vmul.f32 %v1548, %v1825
        %v1837 = vmul.f32 %v1556, %v1829
        %v1838 = vmul.f32 %v1834, %v1817
        %v1839 = vmul.f32 %v1835, %v1821
        %v1840 = vmul.f32 %v1836, %v1825
        %v1841 = vmul.f32 %v1837, %v1829
        %v1842 = vadd.f32 %v1809, %v1838
        %v1843 = vadd.f32 %v1810, %v1839
        %v1844 = vadd.f32 %v1811, %v1840
        %v1845 = vadd.f32 %v1812, %v1841
        %v1846 = vmul.f32 %v1797, %v1842
        %v1847 = vmul.f32 %v1798, %v1843
        %v1848 = vmul.f32 %v1799, %v1844
        %v1849 = vmul.f32 %v1800, %v1845
        %v1850 = vmul.f32 %v1846, %v1748
        %v1851 = vmul.f32 %v1847, %v1750
        %v1852 = vmul.f32 %v1848, %v1752
        %v1853 = vmul.f32 %v1849, %v1754
        %v1854 = vmul.f32 %v1850, %v1748
        %v1855 = vmul.f32 %v1851, %v1750
        %v1856 = vmul.f32 %v1852, %v1752
        %v1857 = vmul.f32 %v1853, %v1754
        %v1858 = vlog2.pop %v1854
        %v1859 = vmul.f32 %v1858, 0.6931472
        %v1860 = vlog2.pop %v1855
        %v1861 = vmul.f32 %v1860, 0.6931472
        %v1862 = vlog2.pop %v1856
        %v1863 = vmul.f32 %v1862, 0.6931472
        %v1864 = vlog2.pop %v1857
        %v1865 = vmul.f32 %v1864, 0.6931472
        %v1870 = vcombine.low %v1859, %v1861
        %v1871 = vcombine.low %v1863, %v1865
        %v1873 = vunpack.c.l.s4 1966171168
        %v1874 = vunpack.c.0.s8 %v1873
        %v1875 = vlaneseq
        %v1876 = vshrl.u32 %v1875, 7
        %v1877 = vsub.s32 %v1874, %v1876
        %v1878 = vrot.slane %v1870, %v1877
        %v1880 = vunpack.c.l.s4 1966171168
        %v1881 = vunpack.c.0.s8 %v1880
        %v1882 = vlaneseq
        %v1883 = vshrl.u32 %v1882, 7
        %v1884 = vsub.s32 %v1881, %v1883
        %v1885 = vrot.slane %v1871, %v1884
        %v1886 = vcombine.low %v1878, %v1885
        %v1888 = vunpack.c.l.s4 1966171168
        %v1889 = vunpack.c.0.s8 %v1888
        %v1890 = vlaneseq
        %v1891 = vshrl.u32 %v1890, 7
        %v1892 = vsub.s32 %v1889, %v1891
        %v1893 = vrot.slane %v1886, %v1892
        %1895 = vst.msk [vmem:[%s425] sm:$0xf] %vm1795, %v1893
        %s1896 = smul.u32 4, %s18
        %p1897 = scmp.lt.s32.totalorder %s1896, 15
        %s1898 = scalar_select %p1897, %s1896, 15
        %s1899 = scalar_lea.vmem %s5, %s1898
        %s1900 = smul.u32 4, %s18
        %p1901 = scmp.lt.s32.totalorder %s1900, 15
        %s1902 = scalar_select %p1901, %s1900, 15
        %s1903 = scalar_lea.vmem %s6, %s1902
        // Predicated region
        $region110: #{_lambda_.5} parent=96 // pred_check
          %p1904 = pneg %p161
        $region111: #{_lambda_.5} parent=96 // pred_check_branch
          %1906 = sbr.rel (%p1904) target = $region113
        $region112: #{_lambda_.5} parent=96 // pred_region
          %s1907 = smul.u32 4, %s18
        $region113: #{_lambda_.5} parent=96 // pred_fallthru
          _
        // Predicated region
        $region114: #{_lambda_.5} parent=96 // pred_check
          %p1908 = pneg %p187
        $region115: #{_lambda_.5} parent=96 // pred_check_branch
          %1910 = sbr.rel (%p1908) target = $region117
        $region116: #{_lambda_.5} parent=96 // pred_region
          %s1911 = smul.u32 4, %s18
        $region117: #{_lambda_.5} parent=96 // pred_fallthru
          _
      $region97: #{_lambda_.5} parent=5 // pred_fallthru
        _
      %p1912 = scmp.le.s32.totalorder 2, %s13
      // Predicated region
      $region118: #{_lambda_.5} parent=5 // pred_check
        %p1913 = pneg %p1912
      $region119: #{_lambda_.5} parent=5 // pred_check_branch
        %1915 = sbr.rel (%p1913) target = $region121
      $region120: #{_lambda_.5} parent=5 // pred_region
        %s1916 = ssub.s32 %s13, 2
        // Predicated region
        $region122: #{_lambda_.5} parent=120 // pred_check
          %p1917 = pneg %p167
        $region123: #{_lambda_.5} parent=120 // pred_check_branch
          %1919 = sbr.rel (%p1917) target = $region125
        $region124: #{_lambda_.5} parent=120 // pred_region
          %s1920 = smul.u32 4, %s19
          %p1921 = scmp.lt.s32.totalorder %s1920, 15
          %s1922 = scalar_select %p1921, %s1920, 15
          %s1923 = scalar_lea.vmem %s5, %s1922
        $region125: #{_lambda_.5} parent=120 // pred_fallthru
          _
        // Predicated region
        $region126: #{_lambda_.5} parent=120 // pred_check
          %p1924 = pneg %p193
        $region127: #{_lambda_.5} parent=120 // pred_check_branch
          %1926 = sbr.rel (%p1924) target = $region129
        $region128: #{_lambda_.5} parent=120 // pred_region
          %s1927 = smul.u32 4, %s19
          %p1928 = scmp.lt.s32.totalorder %s1927, 15
          %s1929 = scalar_select %p1928, %s1927, 15
          %s1930 = scalar_lea.vmem %s6, %s1929
        $region129: #{_lambda_.5} parent=120 // pred_fallthru
          _
      $region121: #{_lambda_.5} parent=5 // pred_fallthru
        _
    $region6: #{_lambda_.5} parent=1 // loop_footer
      %s17 = sadd.s32 1, %s13
    $region7: #{_lambda_.5} parent=1 // loop_footer_branch
      %12 = sbr.rel target = $region3
    $region8: #{_lambda_.5} parent=1 // loop_exit
      _

// kernel: _lambda_.6
$region0: #{_lambda_.6}
  #allocation0 [shape = 'u32[]', space=smem, size = 0x4, offset = 0x4, fixed_abs, tag = 'smem constant byte address 0x4 - core index']
  #allocation1 [shape = 'u32[144,128]{1,0:T(1,128)}', space=vmem, size = 0x12000, scoped, tag = 'internal scratch']
  %s0 = inlined_call_operand.vmem [shape: f32[8,1024], index: 0, kind: input, shape index: {}]
  %s1 = inlined_call_operand.vmem [shape: bf16[1024,64], index: 1, kind: input, shape index: {}]
  %s2 = inlined_call_operand.vmem [shape: f32[1,64], index: 2, kind: input, shape index: {}]
  %s3 = inlined_call_operand.vmem [shape: bf16[64,31744], index: 3, kind: input, shape index: {}]
  %s4 = inlined_call_operand.vmem [shape: f32[1,31744], index: 4, kind: input, shape index: {}]
  %s5 = inlined_call_operand.vmem [shape: f32[8,31744], index: 5, kind: output, shape index: {}]
  %s6 = sld [smem:[#allocation0]]
  $region76: #{_lambda_.6} parent=0
    _
  %s8 = ssub.s32 1, %s6
  %s9 = scalar_select 0, %s8, %s6
  $region1: #{_lambda_.6} parent=0
    #allocation2 [shape = 'u8[131072]{0}', space=vmem, size = 0x20000, scoped, tag = 'input window, operand 3']
    loop: start=0, step=1, limit=64
    $region2: #{_lambda_.6} parent=1 // loop_pre_header
      _
    $region3: #{_lambda_.6} parent=1 // loop_header
      %s11 = sphi 0, %s15
      %p12 = scmp.ge.s32.totalorder %s11, 64
      %s18 = sphi 0, %s30
      %s19 = sphi 0, %s26
      %s20 = sphi 0, %s18
      %s21 = sphi 0, %s19
      %s22 = sphi 0, %s20
      %s23 = sphi 0, %s21
      %s33 = sphi 0, %s35
      %s36 = sphi 0, %s33
      %s37 = sphi 0, %s36
      %s53 = sphi 0, %s37
      %s57 = sphi 0, %s57
      %s59 = sphi 0, %s57
      %s60 = sphi 0, %s59
      %s74 = sphi 0, %s60
      %s78 = sphi 0, %s78
      %s80 = sphi 0, %s78
      %s81 = sphi 0, %s80
      %s95 = sphi 0, %s81
      %s101 = sphi 0, %s103
      %s104 = sphi 0, %s101
      %s105 = sphi 0, %s104
      %s121 = sphi 0, %s105
      %s127 = sphi 0, %s129
      %s130 = sphi 0, %s127
      %s131 = sphi 0, %s130
      %s147 = sphi 0, %s131
      %s155 = sphi 0, %s157
      %s158 = sphi 0, %s155
      %s159 = sphi 0, %s158
      %s175 = sphi 0, %s159
    $region4: #{_lambda_.6} parent=1 // loop_header_branch
      %14 = sbr.rel (%p12) target = $region8
    $region5: #{_lambda_.6} parent=1 // loop_body
      %s16 = ssub.s32 %s11, 1
      %s17 = ssub.s32 %s11, 2
      %s24 = sadd.s32 1, %s19
      %p25 = scmp.ge.s32.totalorder %s24, 62
      %s26 = scalar_select %p25, 0, %s24
      %s27 = sadd.s32 1, %s18
      %s28 = scalar_select %p25, %s27, %s18
      %p29 = scmp.ge.s32.totalorder %s28, 1
      %s30 = scalar_select %p29, 0, %s28
      %s31 = ssub.s32 %s18, %s30
      %p32 = scmp.eq.s32.totalorder %s31, 0
      %s34 = sadd.s32 %s33, 1
      %s35 = scalar_select %p32, %s33, %s34
      %p38 = pneg %p32
      %p39 = scmp.eq.s32.totalorder %s11, 61
      %p40 = por %p38, %p39
      %p41 = scmp.ne.s32.totalorder %s33, %s36
      %p42 = scmp.eq.s32.totalorder %s11, 0
      %p43 = por %p41, %p42
      %p44 = scmp.ne.s32.totalorder %s33, %s36
      %p45 = scmp.eq.s32.totalorder %s16, 61
      %p46 = por %p44, %p45
      %p47 = scmp.ne.s32.totalorder %s36, %s37
      %p48 = scmp.eq.s32.totalorder %s16, 0
      %p49 = por %p47, %p48
      %p50 = scmp.ne.s32.totalorder %s36, %s37
      %p51 = scmp.eq.s32.totalorder %s17, 61
      %p52 = por %p50, %p51
      %p54 = scmp.ne.s32.totalorder %s37, %s53
      %p55 = scmp.eq.s32.totalorder %s17, 0
      %p56 = por %p54, %p55
      %s58 = sadd.s32 %s57, 1
      %p61 = scmp.eq.s32.totalorder %s11, 61
      %p62 = scmp.ne.s32.totalorder %s57, %s59
      %p63 = scmp.eq.s32.totalorder %s11, 0
      %p64 = por %p62, %p63
      %p65 = scmp.ne.s32.totalorder %s57, %s59
      %p66 = scmp.eq.s32.totalorder %s16, 61
      %p67 = por %p65, %p66
      %p68 = scmp.ne.s32.totalorder %s59, %s60
      %p69 = scmp.eq.s32.totalorder %s16, 0
      %p70 = por %p68, %p69
      %p71 = scmp.ne.s32.totalorder %s59, %s60
      %p72 = scmp.eq.s32.totalorder %s17, 61
      %p73 = por %p71, %p72
      %p75 = scmp.ne.s32.totalorder %s60, %s74
      %p76 = scmp.eq.s32.totalorder %s17, 0
      %p77 = por %p75, %p76
      %s79 = sadd.s32 %s78, 1
      %p82 = scmp.eq.s32.totalorder %s11, 61
      %p83 = scmp.ne.s32.totalorder %s78, %s80
      %p84 = scmp.eq.s32.totalorder %s11, 0
      %p85 = por %p83, %p84
      %p86 = scmp.ne.s32.totalorder %s78, %s80
      %p87 = scmp.eq.s32.totalorder %s16, 61
      %p88 = por %p86, %p87
      %p89 = scmp.ne.s32.totalorder %s80, %s81
      %p90 = scmp.eq.s32.totalorder %s16, 0
      %p91 = por %p89, %p90
      %p92 = scmp.ne.s32.totalorder %s80, %s81
      %p93 = scmp.eq.s32.totalorder %s17, 61
      %p94 = por %p92, %p93
      %p96 = scmp.ne.s32.totalorder %s81, %s95
      %p97 = scmp.eq.s32.totalorder %s17, 0
      %p98 = por %p96, %p97
      %s99 = ssub.s32 %s19, %s26
      %p100 = scmp.eq.s32.totalorder %s99, 0
      %s102 = sadd.s32 %s101, 1
      %s103 = scalar_select %p100, %s101, %s102
      %p106 = pneg %p100
      %p107 = scmp.eq.s32.totalorder %s11, 61
      %p108 = por %p106, %p107
      %p109 = scmp.ne.s32.totalorder %s101, %s104
      %p110 = scmp.eq.s32.totalorder %s11, 0
      %p111 = por %p109, %p110
      %p112 = scmp.ne.s32.totalorder %s101, %s104
      %p113 = scmp.eq.s32.totalorder %s16, 61
      %p114 = por %p112, %p113
      %p115 = scmp.ne.s32.totalorder %s104, %s105
      %p116 = scmp.eq.s32.totalorder %s16, 0
      %p117 = por %p115, %p116
      %p118 = scmp.ne.s32.totalorder %s104, %s105
      %p119 = scmp.eq.s32.totalorder %s17, 61
      %p120 = por %p118, %p119
      %p122 = scmp.ne.s32.totalorder %s105, %s121
      %p123 = scmp.eq.s32.totalorder %s17, 0
      %p124 = por %p122, %p123
      %s125 = ssub.s32 %s19, %s26
      %p126 = scmp.eq.s32.totalorder %s125, 0
      %s128 = sadd.s32 %s127, 1
      %s129 = scalar_select %p126, %s127, %s128
      %p132 = pneg %p126
      %p133 = scmp.eq.s32.totalorder %s11, 61
      %p134 = por %p132, %p133
      %p135 = scmp.ne.s32.totalorder %s127, %s130
      %p136 = scmp.eq.s32.totalorder %s11, 0
      %p137 = por %p135, %p136
      %p138 = scmp.ne.s32.totalorder %s127, %s130
      %p139 = scmp.eq.s32.totalorder %s16, 61
      %p140 = por %p138, %p139
      %p141 = scmp.ne.s32.totalorder %s130, %s131
      %p142 = scmp.eq.s32.totalorder %s16, 0
      %p143 = por %p141, %p142
      %p144 = scmp.ne.s32.totalorder %s130, %s131
      %p145 = scmp.eq.s32.totalorder %s17, 61
      %p146 = por %p144, %p145
      %p148 = scmp.ne.s32.totalorder %s131, %s147
      %p149 = scmp.eq.s32.totalorder %s17, 0
      %p150 = por %p148, %p149
      %s151 = ssub.s32 %s18, %s30
      %s152 = ssub.s32 %s19, %s26
      %s153 = sor.u32 %s151, %s152
      %p154 = scmp.eq.s32.totalorder %s153, 0
      %s156 = sadd.s32 %s155, 1
      %s157 = scalar_select %p154, %s155, %s156
      %p160 = pneg %p154
      %p161 = scmp.eq.s32.totalorder %s11, 61
      %p162 = por %p160, %p161
      %p163 = scmp.ne.s32.totalorder %s155, %s158
      %p164 = scmp.eq.s32.totalorder %s11, 0
      %p165 = por %p163, %p164
      %p166 = scmp.ne.s32.totalorder %s155, %s158
      %p167 = scmp.eq.s32.totalorder %s16, 61
      %p168 = por %p166, %p167
      %p169 = scmp.ne.s32.totalorder %s158, %s159
      %p170 = scmp.eq.s32.totalorder %s16, 0
      %p171 = por %p169, %p170
      %p172 = scmp.ne.s32.totalorder %s158, %s159
      %p173 = scmp.eq.s32.totalorder %s17, 61
      %p174 = por %p172, %p173
      %p176 = scmp.ne.s32.totalorder %s159, %s175
      %p177 = scmp.eq.s32.totalorder %s17, 0
      %p178 = por %p176, %p177
      %p179 = scmp.le.s32.totalorder 1, %s11
      %p180 = scmp.lt.s32.totalorder %s11, 63
      %p181 = pnand %p179, %p180
      %p182 = pneg %p181
      // Predicated region
      $region9: #{_lambda_.6} parent=5 // pred_check
        _
      $region10: #{_lambda_.6} parent=5 // pred_check_branch
        %184 = sbr.rel (%p181) target = $region12
      $region11: #{_lambda_.6} parent=5 // pred_region
        %s185 = ssub.s32 %s11, 1
        // Predicated region
        $region13: #{_lambda_.6} parent=11 // pred_check
          %p186 = pneg %p49
        $region14: #{_lambda_.6} parent=11 // pred_check_branch
          %188 = sbr.rel (%p186) target = $region16
        $region15: #{_lambda_.6} parent=11 // pred_region
          %p189 = scmp.lt.s32.totalorder %s20, 0
          %s190 = scalar_select %p189, %s20, 0
          %s191 = smul.addr %s190, 8
          %s192 = smul.addr %s191, 8
          %s193 = scalar_lea.vmem %s0, %s192
        $region16: #{_lambda_.6} parent=11 // pred_fallthru
          _
        // Predicated region
        $region17: #{_lambda_.6} parent=11 // pred_check
          %p194 = pneg %p70
        $region18: #{_lambda_.6} parent=11 // pred_check_branch
          %196 = sbr.rel (%p194) target = $region20
        $region19: #{_lambda_.6} parent=11 // pred_region
          _
        $region20: #{_lambda_.6} parent=11 // pred_fallthru
          _
        // Predicated region
        $region21: #{_lambda_.6} parent=11 // pred_check
          %p197 = pneg %p91
        $region22: #{_lambda_.6} parent=11 // pred_check_branch
          %199 = sbr.rel (%p197) target = $region24
        $region23: #{_lambda_.6} parent=11 // pred_region
          _
        $region24: #{_lambda_.6} parent=11 // pred_fallthru
          _
      $region12: #{_lambda_.6} parent=5 // pred_fallthru
        _
      %p200 = scmp.lt.s32.totalorder %s11, 62
      // Predicated region
      $region25: #{_lambda_.6} parent=5 // pred_check
        %p201 = pneg %p200
      $region26: #{_lambda_.6} parent=5 // pred_check_branch
        %203 = sbr.rel (%p201) target = $region28
      $region27: #{_lambda_.6} parent=5 // pred_region
        // Predicated region
        $region29: #{_lambda_.6} parent=27 // pred_check
          %p204 = pneg %p111
        $region30: #{_lambda_.6} parent=27 // pred_check_branch
          %206 = sbr.rel (%p204) target = $region32
        $region31: #{_lambda_.6} parent=27 // pred_region
          %s207 = sand.u32 %s101, 1
          %s208 = sand.u32 %s101, 1
          %s209 = smul.addr %s208, 128
          %s210 = scalar_lea.vmem [#allocation2], %s209
          %s211 = smul.u32 4, %s19
          %s212 = smul.addr %s211, 4
          %s213 = scalar_lea.vmem %s3, %s212
          // Predicated region
          $region33: #{_lambda_.6} parent=31 // pred_check
            _
          $region34: #{_lambda_.6} parent=31 // pred_check_branch
            %215 = sbr.rel (0) target = $region36
          $region35: #{_lambda_.6} parent=31 // pred_region
            // Predicated region
            $region37: #{_lambda_.6} parent=35 // pred_check
              _
            $region38: #{_lambda_.6} parent=35 // pred_check_branch
              %217 = sbr.rel (0) target = $region40
            $region39: #{_lambda_.6} parent=35 // pred_region
              loop: start=0, step=1, limit=1
              $region41: #{_lambda_.6} parent=39 // loop_pre_header
                _
              $region42: #{_lambda_.6} parent=39 // loop_header
                %s219 = sphi 0, %s223
                %p220 = scmp.ge.s32.totalorder %s219, 1
                %s224 = sphi %s213, %s213
                %s225 = sphi %s210, %s210
              $region43: #{_lambda_.6} parent=39 // loop_header_branch
                %222 = sbr.rel (%p220) target = $region47
              $region44: #{_lambda_.6} parent=39 // loop_body
                %v226 = vld [vmem:[%s224] sm:$0xff]
                %227 = vst [vmem:[%s225] sm:$0xff] %v226
                %v228 = vld [vmem:[%s224 + $0x8] sm:$0xff]
                %229 = vst [vmem:[%s225 + $0x8] sm:$0xff] %v228
                %v230 = vld [vmem:[%s224 + $0x3e0] sm:$0xff]
                %231 = vst [vmem:[%s225 + $0x10] sm:$0xff] %v230
                %v232 = vld [vmem:[%s224 + $0x3e8] sm:$0xff]
                %233 = vst [vmem:[%s225 + $0x18] sm:$0xff] %v232
                %v234 = vld [vmem:[%s224 + $0x7c0] sm:$0xff]
                %235 = vst [vmem:[%s225 + $0x20] sm:$0xff] %v234
                %v236 = vld [vmem:[%s224 + $0x7c8] sm:$0xff]
                %237 = vst [vmem:[%s225 + $0x28] sm:$0xff] %v236
                %v238 = vld [vmem:[%s224 + $0xba0] sm:$0xff]
                %239 = vst [vmem:[%s225 + $0x30] sm:$0xff] %v238
                %v240 = vld [vmem:[%s224 + $0xba8] sm:$0xff]
                %241 = vst [vmem:[%s225 + $0x38] sm:$0xff] %v240
                %v242 = vld [vmem:[%s224 + $0xf80] sm:$0xff]
                %243 = vst [vmem:[%s225 + $0x40] sm:$0xff] %v242
                %v244 = vld [vmem:[%s224 + $0xf88] sm:$0xff]
                %245 = vst [vmem:[%s225 + $0x48] sm:$0xff] %v244
                %v246 = vld [vmem:[%s224 + $0x1360] sm:$0xff]
                %247 = vst [vmem:[%s225 + $0x50] sm:$0xff] %v246
                %v248 = vld [vmem:[%s224 + $0x1368] sm:$0xff]
                %249 = vst [vmem:[%s225 + $0x58] sm:$0xff] %v248
                %v250 = vld [vmem:[%s224 + $0x1740] sm:$0xff]
                %251 = vst [vmem:[%s225 + $0x60] sm:$0xff] %v250
                %v252 = vld [vmem:[%s224 + $0x1748] sm:$0xff]
                %253 = vst [vmem:[%s225 + $0x68] sm:$0xff] %v252
                %v254 = vld [vmem:[%s224 + $0x1b20] sm:$0xff]
                %255 = vst [vmem:[%s225 + $0x70] sm:$0xff] %v254
                %v256 = vld [vmem:[%s224 + $0x1b28] sm:$0xff]
                %257 = vst [vmem:[%s225 + $0x78] sm:$0xff] %v256
              $region45: #{_lambda_.6} parent=39 // loop_footer
                %s223 = sadd.s32 1, %s219
              $region46: #{_lambda_.6} parent=39 // loop_footer_branch
                %218 = sbr.rel target = $region42
              $region47: #{_lambda_.6} parent=39 // loop_exit
                _
            $region40: #{_lambda_.6} parent=35 // pred_fallthru
              _
            // Predicated region
            $region48: #{_lambda_.6} parent=35 // pred_check
              _
            $region49: #{_lambda_.6} parent=35 // pred_check_branch
              %259 = sbr.rel target = $region51
            $region50: #{_lambda_.6} parent=35 // pred_region
              _
            $region51: #{_lambda_.6} parent=35 // pred_fallthru
              _
          $region36: #{_lambda_.6} parent=31 // pred_fallthru
            _
          %260 = vnop
        $region32: #{_lambda_.6} parent=27 // pred_fallthru
          _
        // Predicated region
        $region52: #{_lambda_.6} parent=27 // pred_check
          %p261 = pneg %p137
        $region53: #{_lambda_.6} parent=27 // pred_check_branch
          %263 = sbr.rel (%p261) target = $region55
        $region54: #{_lambda_.6} parent=27 // pred_region
          %s264 = smul.u32 4, %s19
          %p265 = scmp.lt.s32.totalorder %s264, 247
          %s266 = scalar_select %p265, %s264, 247
          %s267 = scalar_lea.vmem %s4, %s266
          %s268 = smul.u32 4, %s19
        $region55: #{_lambda_.6} parent=27 // pred_fallthru
          _
      $region28: #{_lambda_.6} parent=5 // pred_fallthru
        _
      %p269 = scmp.le.s32.totalorder 1, %s11
      %p270 = scmp.lt.s32.totalorder %s11, 63
      %p271 = pnand %p269, %p270
      %p272 = pneg %p271
      // Predicated region
      $region56: #{_lambda_.6} parent=5 // pred_check
        _
      $region57: #{_lambda_.6} parent=5 // pred_check_branch
        %274 = sbr.rel (%p271) target = $region59
      $region58: #{_lambda_.6} parent=5 // pred_region
        %s275 = ssub.s32 %s11, 1
        %s276 = sand.u32 %s104, 1
        %s277 = sand.u32 %s104, 1
        %s278 = smul.addr %s277, 128
        %s279 = scalar_lea.vmem [#allocation2], %s278
        // Predicated region
        $region60: #{_lambda_.6} parent=58 // pred_check
          %p280 = pneg %p117
        $region61: #{_lambda_.6} parent=58 // pred_check_branch
          %282 = sbr.rel (%p280) target = $region63
        $region62: #{_lambda_.6} parent=58 // pred_region
          _
        $region63: #{_lambda_.6} parent=58 // pred_fallthru
          _
        %p283 = scmp.lt.s32.totalorder %s20, 0
        %s284 = scalar_select %p283, %s20, 0
        %s285 = smul.addr %s284, 8
        %s286 = smul.addr %s285, 8
        %s287 = scalar_lea.vmem %s0, %s286
        %p288 = pneg %p49
        %p289 = pneg %p46
        %p290 = pneg %p70
        %p291 = pneg %p67
        %p292 = pneg %p91
        %p293 = pneg %p88
        %s294 = sand.u32 %s104, 1
        %s295 = sand.u32 %s104, 1
        %s296 = smul.addr %s295, 128
        %s297 = scalar_lea.vmem [#allocation2], %s296
        %p298 = pneg %p117
        %p299 = pneg %p114
        %s300 = smul.u32 4, %s21
        %p301 = scmp.lt.s32.totalorder %s300, 247
        %s302 = scalar_select %p301, %s300, 247
        %s303 = scalar_lea.vmem %s4, %s302
        %p304 = pneg %p143
        %p305 = pneg %p140
        %p306 = pneg %p171
        %p307 = pneg %p168
        %s308 = smul.u32 4, %s21
        %p309 = scmp.lt.s32.totalorder %s20, 0
        %s310 = scalar_select %p309, %s20, 0
        %p311 = scmp.lt.s32.totalorder %s308, 247
        %s312 = scalar_select %p311, %s308, 247
        %s313 = smul.addr %s310, 248
        %s314 = sadd.s32 %s312, %s313
        %s315 = smul.addr %s314, 8
        %s316 = scalar_lea.vmem %s5, %s315
        %p317 = scmp.lt.s32.totalorder %s20, 0
        %s318 = scalar_select %p317, %s20, 0
        %s319 = smul.addr %s318, 8
        %s320 = smul.addr %s319, 8
        %s321 = scalar_lea.vmem %s0, %s320
        %s322 = smul.u32 4, %s21
        %s323 = smul.u32 4, %s21
        %p324 = scmp.lt.s32.totalorder %s323, 247
        %s325 = scalar_select %p324, %s323, 247
        %s326 = scalar_lea.vmem %s4, %s325
        %s327 = smul.u32 4, %s21
        %s328 = smul.u32 4, %s21
        %p329 = scmp.lt.s32.totalorder %s20, 0
        %s330 = scalar_select %p329, %s20, 0
        %p331 = scmp.lt.s32.totalorder %s328, 247
        %s332 = scalar_select %p331, %s328, 247
        %s333 = smul.addr %s330, 248
        %s334 = sadd.s32 %s332, %s333
        %s335 = smul.addr %s334, 8
        %s336 = scalar_lea.vmem %s5, %s335
        %s337 = smul.u32 4, %s21
        %v339 = vld [vmem:[%s321] sm:$0xff]
        %v340 = vld [vmem:[%s321 + $0x8] sm:$0xff]
        %v341 = vld [vmem:[%s321 + $0x10] sm:$0xff]
        %v342 = vld [vmem:[%s321 + $0x18] sm:$0xff]
        %v343 = vld [vmem:[%s321 + $0x20] sm:$0xff]
        %v344 = vld [vmem:[%s321 + $0x28] sm:$0xff]
        %v345 = vld [vmem:[%s321 + $0x30] sm:$0xff]
        %v346 = vld [vmem:[%s321 + $0x38] sm:$0xff]
        %v347 = vpack.c.bf16 %v339, %v339
        %v348 = vpack.c.bf16 %v340, %v340
        %v349 = vpack.c.bf16 %v341, %v341
        %v350 = vpack.c.bf16 %v342, %v342
        %v351 = vpack.c.bf16 %v343, %v343
        %v352 = vpack.c.bf16 %v344, %v344
        %v353 = vpack.c.bf16 %v345, %v345
        %v354 = vpack.c.bf16 %v346, %v346
        %v355 = vld [vmem:[%s1] sm:$0xf]
        %v356 = vld [vmem:[%s1 + $0x4] sm:$0xf]
        %v357 = vld [vmem:[%s1 + $0x8] sm:$0xf]
        %v358 = vld [vmem:[%s1 + $0xc] sm:$0xf]
        %v359 = vld [vmem:[%s1 + $0x10] sm:$0xf]
        %v360 = vld [vmem:[%s1 + $0x14] sm:$0xf]
        %v361 = vld [vmem:[%s1 + $0x18] sm:$0xf]
        %v362 = vld [vmem:[%s1 + $0x1c] sm:$0xf]
        %v363 = vld [vmem:[%s1 + $0x20] sm:$0xf]
        %v364 = vld [vmem:[%s1 + $0x24] sm:$0xf]
        %v365 = vld [vmem:[%s1 + $0x28] sm:$0xf]
        %v366 = vld [vmem:[%s1 + $0x2c] sm:$0xf]
        %v367 = vld [vmem:[%s1 + $0x30] sm:$0xf]
        %v368 = vld [vmem:[%s1 + $0x34] sm:$0xf]
        %v369 = vld [vmem:[%s1 + $0x38] sm:$0xf]
        %v370 = vld [vmem:[%s1 + $0x3c] sm:$0xf]
        %v371 = vld [vmem:[%s1 + $0x40] sm:$0xf]
        %v372 = vld [vmem:[%s1 + $0x44] sm:$0xf]
        %v373 = vld [vmem:[%s1 + $0x48] sm:$0xf]
        %v374 = vld [vmem:[%s1 + $0x4c] sm:$0xf]
        %v375 = vld [vmem:[%s1 + $0x50] sm:$0xf]
        %v376 = vld [vmem:[%s1 + $0x54] sm:$0xf]
        %v377 = vld [vmem:[%s1 + $0x58] sm:$0xf]
        %v378 = vld [vmem:[%s1 + $0x5c] sm:$0xf]
        %v379 = vld [vmem:[%s1 + $0x60] sm:$0xf]
        %v380 = vld [vmem:[%s1 + $0x64] sm:$0xf]
        %v381 = vld [vmem:[%s1 + $0x68] sm:$0xf]
        %v382 = vld [vmem:[%s1 + $0x6c] sm:$0xf]
        %v383 = vld [vmem:[%s1 + $0x70] sm:$0xf]
        %v384 = vld [vmem:[%s1 + $0x74] sm:$0xf]
        %v385 = vld [vmem:[%s1 + $0x78] sm:$0xf]
        %v386 = vld [vmem:[%s1 + $0x7c] sm:$0xf]
        %v387 = vld [vmem:[%s1 + $0x80] sm:$0xf]
        %v388 = vld [vmem:[%s1 + $0x84] sm:$0xf]
        %v389 = vld [vmem:[%s1 + $0x88] sm:$0xf]
        %v390 = vld [vmem:[%s1 + $0x8c] sm:$0xf]
        %v391 = vld [vmem:[%s1 + $0x90] sm:$0xf]
        %v392 = vld [vmem:[%s1 + $0x94] sm:$0xf]
        %v393 = vld [vmem:[%s1 + $0x98] sm:$0xf]
        %v394 = vld [vmem:[%s1 + $0x9c] sm:$0xf]
        %v395 = vld [vmem:[%s1 + $0xa0] sm:$0xf]
        %v396 = vld [vmem:[%s1 + $0xa4] sm:$0xf]
        %v397 = vld [vmem:[%s1 + $0xa8] sm:$0xf]
        %v398 = vld [vmem:[%s1 + $0xac] sm:$0xf]
        %v399 = vld [vmem:[%s1 + $0xb0] sm:$0xf]
        %v400 = vld [vmem:[%s1 + $0xb4] sm:$0xf]
        %v401 = vld [vmem:[%s1 + $0xb8] sm:$0xf]
        %v402 = vld [vmem:[%s1 + $0xbc] sm:$0xf]
        %v403 = vld [vmem:[%s1 + $0xc0] sm:$0xf]
        %v404 = vld [vmem:[%s1 + $0xc4] sm:$0xf]
        %v405 = vld [vmem:[%s1 + $0xc8] sm:$0xf]
        %v406 = vld [vmem:[%s1 + $0xcc] sm:$0xf]
        %v407 = vld [vmem:[%s1 + $0xd0] sm:$0xf]
        %v408 = vld [vmem:[%s1 + $0xd4] sm:$0xf]
        %v409 = vld [vmem:[%s1 + $0xd8] sm:$0xf]
        %v410 = vld [vmem:[%s1 + $0xdc] sm:$0xf]
        %v411 = vld [vmem:[%s1 + $0xe0] sm:$0xf]
        %v412 = vld [vmem:[%s1 + $0xe4] sm:$0xf]
        %v413 = vld [vmem:[%s1 + $0xe8] sm:$0xf]
        %v414 = vld [vmem:[%s1 + $0xec] sm:$0xf]
        %v415 = vld [vmem:[%s1 + $0xf0] sm:$0xf]
        %v416 = vld [vmem:[%s1 + $0xf4] sm:$0xf]
        %v417 = vld [vmem:[%s1 + $0xf8] sm:$0xf]
        %v418 = vld [vmem:[%s1 + $0xfc] sm:$0xf]
        %v419 = vld [vmem:[%s1 + $0x100] sm:$0xf]
        %v420 = vld [vmem:[%s1 + $0x104] sm:$0xf]
        %v421 = vld [vmem:[%s1 + $0x108] sm:$0xf]
        %v422 = vld [vmem:[%s1 + $0x10c] sm:$0xf]
        %v423 = vld [vmem:[%s1 + $0x110] sm:$0xf]
        %v424 = vld [vmem:[%s1 + $0x114] sm:$0xf]
        %v425 = vld [vmem:[%s1 + $0x118] sm:$0xf]
        %v426 = vld [vmem:[%s1 + $0x11c] sm:$0xf]
        %v427 = vld [vmem:[%s1 + $0x120] sm:$0xf]
        %v428 = vld [vmem:[%s1 + $0x124] sm:$0xf]
        %v429 = vld [vmem:[%s1 + $0x128] sm:$0xf]
        %v430 = vld [vmem:[%s1 + $0x12c] sm:$0xf]
        %v431 = vld [vmem:[%s1 + $0x130] sm:$0xf]
        %v432 = vld [vmem:[%s1 + $0x134] sm:$0xf]
        %v433 = vld [vmem:[%s1 + $0x138] sm:$0xf]
        %v434 = vld [vmem:[%s1 + $0x13c] sm:$0xf]
        %v435 = vld [vmem:[%s1 + $0x140] sm:$0xf]
        %v436 = vld [vmem:[%s1 + $0x144] sm:$0xf]
        %v437 = vld [vmem:[%s1 + $0x148] sm:$0xf]
        %v438 = vld [vmem:[%s1 + $0x14c] sm:$0xf]
        %v439 = vld [vmem:[%s1 + $0x150] sm:$0xf]
        %v440 = vld [vmem:[%s1 + $0x154] sm:$0xf]
        %v441 = vld [vmem:[%s1 + $0x158] sm:$0xf]
        %v442 = vld [vmem:[%s1 + $0x15c] sm:$0xf]
        %v443 = vld [vmem:[%s1 + $0x160] sm:$0xf]
        %v444 = vld [vmem:[%s1 + $0x164] sm:$0xf]
        %v445 = vld [vmem:[%s1 + $0x168] sm:$0xf]
        %v446 = vld [vmem:[%s1 + $0x16c] sm:$0xf]
        %v447 = vld [vmem:[%s1 + $0x170] sm:$0xf]
        %v448 = vld [vmem:[%s1 + $0x174] sm:$0xf]
        %v449 = vld [vmem:[%s1 + $0x178] sm:$0xf]
        %v450 = vld [vmem:[%s1 + $0x17c] sm:$0xf]
        %v451 = vld [vmem:[%s1 + $0x180] sm:$0xf]
        %v452 = vld [vmem:[%s1 + $0x184] sm:$0xf]
        %v453 = vld [vmem:[%s1 + $0x188] sm:$0xf]
        %v454 = vld [vmem:[%s1 + $0x18c] sm:$0xf]
        %v455 = vld [vmem:[%s1 + $0x190] sm:$0xf]
        %v456 = vld [vmem:[%s1 + $0x194] sm:$0xf]
        %v457 = vld [vmem:[%s1 + $0x198] sm:$0xf]
        %v458 = vld [vmem:[%s1 + $0x19c] sm:$0xf]
        %v459 = vld [vmem:[%s1 + $0x1a0] sm:$0xf]
        %v460 = vld [vmem:[%s1 + $0x1a4] sm:$0xf]
        %v461 = vld [vmem:[%s1 + $0x1a8] sm:$0xf]
        %v462 = vld [vmem:[%s1 + $0x1ac] sm:$0xf]
        %v463 = vld [vmem:[%s1 + $0x1b0] sm:$0xf]
        %v464 = vld [vmem:[%s1 + $0x1b4] sm:$0xf]
        %v465 = vld [vmem:[%s1 + $0x1b8] sm:$0xf]
        %v466 = vld [vmem:[%s1 + $0x1bc] sm:$0xf]
        %v467 = vld [vmem:[%s1 + $0x1c0] sm:$0xf]
        %v468 = vld [vmem:[%s1 + $0x1c4] sm:$0xf]
        %v469 = vld [vmem:[%s1 + $0x1c8] sm:$0xf]
        %v470 = vld [vmem:[%s1 + $0x1cc] sm:$0xf]
        %v471 = vld [vmem:[%s1 + $0x1d0] sm:$0xf]
        %v472 = vld [vmem:[%s1 + $0x1d4] sm:$0xf]
        %v473 = vld [vmem:[%s1 + $0x1d8] sm:$0xf]
        %v474 = vld [vmem:[%s1 + $0x1dc] sm:$0xf]
        %v475 = vld [vmem:[%s1 + $0x1e0] sm:$0xf]
        %v476 = vld [vmem:[%s1 + $0x1e4] sm:$0xf]
        %v477 = vld [vmem:[%s1 + $0x1e8] sm:$0xf]
        %v478 = vld [vmem:[%s1 + $0x1ec] sm:$0xf]
        %v479 = vld [vmem:[%s1 + $0x1f0] sm:$0xf]
        %v480 = vld [vmem:[%s1 + $0x1f4] sm:$0xf]
        %v481 = vld [vmem:[%s1 + $0x1f8] sm:$0xf]
        %v482 = vld [vmem:[%s1 + $0x1fc] sm:$0xf]
        %v483 = vld [vmem:[%s2] sm:$0x1]
        %v485 = vlaneseq
        %v486 = vshrl.u32 %v485, 7
        %v487 = vsub.s32 0, %v486
        %v488 = vrot.slane %v483, %v487
        %v618 = vunpack.c.l.b16 %v355
        %v619 = vunpack.c.l.b16 %v356
        %v620 = vunpack.c.l.b16 %v357
        %v621 = vunpack.c.l.b16 %v358
        %v622 = vunpack.c.l.b16 %v359
        %v623 = vunpack.c.l.b16 %v360
        %v624 = vunpack.c.l.b16 %v361
        %v625 = vunpack.c.l.b16 %v362
        %v626 = vunpack.c.l.b16 %v363
        %v627 = vunpack.c.l.b16 %v364
        %v628 = vunpack.c.l.b16 %v365
        %v629 = vunpack.c.l.b16 %v366
        %v630 = vunpack.c.l.b16 %v367
        %v631 = vunpack.c.l.b16 %v368
        %v632 = vunpack.c.l.b16 %v369
        %v633 = vunpack.c.l.b16 %v370
        %v634 = vunpack.c.l.b16 %v371
        %v635 = vunpack.c.l.b16 %v372
        %v636 = vunpack.c.l.b16 %v373
        %v637 = vunpack.c.l.b16 %v374
        %v638 = vunpack.c.l.b16 %v375
        %v639 = vunpack.c.l.b16 %v376
        %v640 = vunpack.c.l.b16 %v377
        %v641 = vunpack.c.l.b16 %v378
        %v642 = vunpack.c.l.b16 %v379
        %v643 = vunpack.c.l.b16 %v380
        %v644 = vunpack.c.l.b16 %v381
        %v645 = vunpack.c.l.b16 %v382
        %v646 = vunpack.c.l.b16 %v383
        %v647 = vunpack.c.l.b16 %v384
        %v648 = vunpack.c.l.b16 %v385
        %v649 = vunpack.c.l.b16 %v386
        %v650 = vunpack.c.l.b16 %v387
        %v651 = vunpack.c.l.b16 %v388
        %v652 = vunpack.c.l.b16 %v389
        %v653 = vunpack.c.l.b16 %v390
        %v654 = vunpack.c.l.b16 %v391
        %v655 = vunpack.c.l.b16 %v392
        %v656 = vunpack.c.l.b16 %v393
        %v657 = vunpack.c.l.b16 %v394
        %v658 = vunpack.c.l.b16 %v395
        %v659 = vunpack.c.l.b16 %v396
        %v660 = vunpack.c.l.b16 %v397
        %v661 = vunpack.c.l.b16 %v398
        %v662 = vunpack.c.l.b16 %v399
        %v663 = vunpack.c.l.b16 %v400
        %v664 = vunpack.c.l.b16 %v401
        %v665 = vunpack.c.l.b16 %v402
        %v666 = vunpack.c.l.b16 %v403
        %v667 = vunpack.c.l.b16 %v404
        %v668 = vunpack.c.l.b16 %v405
        %v669 = vunpack.c.l.b16 %v406
        %v670 = vunpack.c.l.b16 %v407
        %v671 = vunpack.c.l.b16 %v408
        %v672 = vunpack.c.l.b16 %v409
        %v673 = vunpack.c.l.b16 %v410
        %v674 = vunpack.c.l.b16 %v411
        %v675 = vunpack.c.l.b16 %v412
        %v676 = vunpack.c.l.b16 %v413
        %v677 = vunpack.c.l.b16 %v414
        %v678 = vunpack.c.l.b16 %v415
        %v679 = vunpack.c.l.b16 %v416
        %v680 = vunpack.c.l.b16 %v417
        %v681 = vunpack.c.l.b16 %v418
        %v682 = vunpack.c.l.b16 %v419
        %v683 = vunpack.c.l.b16 %v420
        %v684 = vunpack.c.l.b16 %v421
        %v685 = vunpack.c.l.b16 %v422
        %v686 = vunpack.c.l.b16 %v423
        %v687 = vunpack.c.l.b16 %v424
        %v688 = vunpack.c.l.b16 %v425
        %v689 = vunpack.c.l.b16 %v426
        %v690 = vunpack.c.l.b16 %v427
        %v691 = vunpack.c.l.b16 %v428
        %v692 = vunpack.c.l.b16 %v429
        %v693 = vunpack.c.l.b16 %v430
        %v694 = vunpack.c.l.b16 %v431
        %v695 = vunpack.c.l.b16 %v432
        %v696 = vunpack.c.l.b16 %v433
        %v697 = vunpack.c.l.b16 %v434
        %v698 = vunpack.c.l.b16 %v435
        %v699 = vunpack.c.l.b16 %v436
        %v700 = vunpack.c.l.b16 %v437
        %v701 = vunpack.c.l.b16 %v438
        %v702 = vunpack.c.l.b16 %v439
        %v703 = vunpack.c.l.b16 %v440
        %v704 = vunpack.c.l.b16 %v441
        %v705 = vunpack.c.l.b16 %v442
        %v706 = vunpack.c.l.b16 %v443
        %v707 = vunpack.c.l.b16 %v444
        %v708 = vunpack.c.l.b16 %v445
        %v709 = vunpack.c.l.b16 %v446
        %v710 = vunpack.c.l.b16 %v447
        %v711 = vunpack.c.l.b16 %v448
        %v712 = vunpack.c.l.b16 %v449
        %v713 = vunpack.c.l.b16 %v450
        %v714 = vunpack.c.l.b16 %v451
        %v715 = vunpack.c.l.b16 %v452
        %v716 = vunpack.c.l.b16 %v453
        %v717 = vunpack.c.l.b16 %v454
        %v718 = vunpack.c.l.b16 %v455
        %v719 = vunpack.c.l.b16 %v456
        %v720 = vunpack.c.l.b16 %v457
        %v721 = vunpack.c.l.b16 %v458
        %v722 = vunpack.c.l.b16 %v459
        %v723 = vunpack.c.l.b16 %v460
        %v724 = vunpack.c.l.b16 %v461
        %v725 = vunpack.c.l.b16 %v462
        %v726 = vunpack.c.l.b16 %v463
        %v727 = vunpack.c.l.b16 %v464
        %v728 = vunpack.c.l.b16 %v465
        %v729 = vunpack.c.l.b16 %v466
        %v730 = vunpack.c.l.b16 %v467
        %v731 = vunpack.c.l.b16 %v468
        %v732 = vunpack.c.l.b16 %v469
        %v733 = vunpack.c.l.b16 %v470
        %v734 = vunpack.c.l.b16 %v471
        %v735 = vunpack.c.l.b16 %v472
        %v736 = vunpack.c.l.b16 %v473
        %v737 = vunpack.c.l.b16 %v474
        %v738 = vunpack.c.l.b16 %v475
        %v739 = vunpack.c.l.b16 %v476
        %v740 = vunpack.c.l.b16 %v477
        %v741 = vunpack.c.l.b16 %v478
        %v742 = vunpack.c.l.b16 %v479
        %v743 = vunpack.c.l.b16 %v480
        %v744 = vunpack.c.l.b16 %v481
        %v745 = vunpack.c.l.b16 %v482
        %v746 = vpack.c.b16 %v619, %v618
        %v747 = vpack.c.b16 %v621, %v620
        %v748 = vpack.c.b16 %v623, %v622
        %v749 = vpack.c.b16 %v625, %v624
        %v750 = vpack.c.b16 %v627, %v626
        %v751 = vpack.c.b16 %v629, %v628
        %v752 = vpack.c.b16 %v631, %v630
        %v753 = vpack.c.b16 %v633, %v632
        %v754 = vpack.c.b16 %v635, %v634
        %v755 = vpack.c.b16 %v637, %v636
        %v756 = vpack.c.b16 %v639, %v638
        %v757 = vpack.c.b16 %v641, %v640
        %v758 = vpack.c.b16 %v643, %v642
        %v759 = vpack.c.b16 %v645, %v644
        %v760 = vpack.c.b16 %v647, %v646
        %v761 = vpack.c.b16 %v649, %v648
        %v762 = vpack.c.b16 %v651, %v650
        %v763 = vpack.c.b16 %v653, %v652
        %v764 = vpack.c.b16 %v655, %v654
        %v765 = vpack.c.b16 %v657, %v656
        %v766 = vpack.c.b16 %v659, %v658
        %v767 = vpack.c.b16 %v661, %v660
        %v768 = vpack.c.b16 %v663, %v662
        %v769 = vpack.c.b16 %v665, %v664
        %v770 = vpack.c.b16 %v667, %v666
        %v771 = vpack.c.b16 %v669, %v668
        %v772 = vpack.c.b16 %v671, %v670
        %v773 = vpack.c.b16 %v673, %v672
        %v774 = vpack.c.b16 %v675, %v674
        %v775 = vpack.c.b16 %v677, %v676
        %v776 = vpack.c.b16 %v679, %v678
        %v777 = vpack.c.b16 %v681, %v680
        %v778 = vpack.c.b16 %v683, %v682
        %v779 = vpack.c.b16 %v685, %v684
        %v780 = vpack.c.b16 %v687, %v686
        %v781 = vpack.c.b16 %v689, %v688
        %v782 = vpack.c.b16 %v691, %v690
        %v783 = vpack.c.b16 %v693, %v692
        %v784 = vpack.c.b16 %v695, %v694
        %v785 = vpack.c.b16 %v697, %v696
        %v786 = vpack.c.b16 %v699, %v698
        %v787 = vpack.c.b16 %v701, %v700
        %v788 = vpack.c.b16 %v703, %v702
        %v789 = vpack.c.b16 %v705, %v704
        %v790 = vpack.c.b16 %v707, %v706
        %v791 = vpack.c.b16 %v709, %v708
        %v792 = vpack.c.b16 %v711, %v710
        %v793 = vpack.c.b16 %v713, %v712
        %v794 = vpack.c.b16 %v715, %v714
        %v795 = vpack.c.b16 %v717, %v716
        %v796 = vpack.c.b16 %v719, %v718
        %v797 = vpack.c.b16 %v721, %v720
        %v798 = vpack.c.b16 %v723, %v722
        %v799 = vpack.c.b16 %v725, %v724
        %v800 = vpack.c.b16 %v727, %v726
        %v801 = vpack.c.b16 %v729, %v728
        %v802 = vpack.c.b16 %v731, %v730
        %v803 = vpack.c.b16 %v733, %v732
        %v804 = vpack.c.b16 %v735, %v734
        %v805 = vpack.c.b16 %v737, %v736
        %v806 = vpack.c.b16 %v739, %v738
        %v807 = vpack.c.b16 %v741, %v740
        %v808 = vpack.c.b16 %v743, %v742
        %v809 = vpack.c.b16 %v745, %v744
        %874 = vmatprep.subr.bf16.mxu0 0
        %875 = vmatpush1.bf16.msra.mxu0 %v753
        %876 = vmatprep.subr.bf16.mxu0 0
        %877 = vmatpush1.bf16.msra.mxu0 %v752
        %878 = vmatprep.subr.bf16.mxu0 0
        %879 = vmatpush1.bf16.msra.mxu0 %v751
        %880 = vmatprep.subr.bf16.mxu0 0
        %881 = vmatpush1.bf16.msra.mxu0 %v750
        %882 = vmatprep.subr.bf16.mxu0 0
        %883 = vmatpush1.bf16.msra.mxu0 %v749
        %884 = vmatprep.subr.bf16.mxu0 0
        %885 = vmatpush1.bf16.msra.mxu0 %v748
        %886 = vmatprep.subr.bf16.mxu0 0
        %887 = vmatpush1.bf16.msra.mxu0 %v747
        %888 = vmatprep.subr.bf16.mxu0 0
        %889 = vmatpush1.bf16.msra.mxu0 %v746
        %890 = vmatprep.subr.bf16.mxu0 0
        %891 = vmatpush2.bf16.msra.mxu0 %v761
        %892 = vmatprep.subr.bf16.mxu0 0
        %893 = vmatpush2.bf16.msra.mxu0 %v760
        %894 = vmatprep.subr.bf16.mxu0 0
        %895 = vmatpush2.bf16.msra.mxu0 %v759
        %896 = vmatprep.subr.bf16.mxu0 0
        %897 = vmatpush2.bf16.msra.mxu0 %v758
        %898 = vmatprep.subr.bf16.mxu0 0
        %899 = vmatpush2.bf16.msra.mxu0 %v757
        %900 = vmatprep.subr.bf16.mxu0 0
        %901 = vmatpush2.bf16.msra.mxu0 %v756
        %902 = vmatprep.subr.bf16.mxu0 0
        %903 = vmatpush2.bf16.msra.mxu0 %v755
        %904 = vmatprep.subr.bf16.mxu0 0
        %905 = vmatpush2.bf16.msra.mxu0 %v754
        %906 = vmatprep.mubr.bf16.mxu0 %v348
        %907 = vmatmul.mubr.bf16.gmra.mxu0 %v347
        %v908 = vpop.f32.mrf.mxu0
        %v909 = vadd.f32 %v488, %v908
        %v910 = vpop.f32.mrf.mxu0
        %v911 = vpop.f32.mrf.mxu0
        %v912 = vpop.f32.mrf.mxu0
        %913 = vdwg.mxu0
        %914 = vmatprep.subr.bf16.mxu0 0
        %915 = vmatpush1.bf16.msra.mxu0 %v769
        %916 = vmatprep.subr.bf16.mxu0 0
        %917 = vmatpush1.bf16.msra.mxu0 %v768
        %918 = vmatprep.subr.bf16.mxu0 0
        %919 = vmatpush1.bf16.msra.mxu0 %v767
        %920 = vmatprep.subr.bf16.mxu0 0
        %921 = vmatpush1.bf16.msra.mxu0 %v766
        %922 = vmatprep.subr.bf16.mxu0 0
        %923 = vmatpush1.bf16.msra.mxu0 %v765
        %924 = vmatprep.subr.bf16.mxu0 0
        %925 = vmatpush1.bf16.msra.mxu0 %v764
        %926 = vmatprep.subr.bf16.mxu0 0
        %927 = vmatpush1.bf16.msra.mxu0 %v763
        %928 = vmatprep.subr.bf16.mxu0 0
        %929 = vmatpush1.bf16.msra.mxu0 %v762
        %930 = vmatprep.subr.bf16.mxu0 0
        %931 = vmatpush2.bf16.msra.mxu0 %v777
        %932 = vmatprep.subr.bf16.mxu0 0
        %933 = vmatpush2.bf16.msra.mxu0 %v776
        %934 = vmatprep.subr.bf16.mxu0 0
        %935 = vmatpush2.bf16.msra.mxu0 %v775
        %936 = vmatprep.subr.bf16.mxu0 0
        %937 = vmatpush2.bf16.msra.mxu0 %v774
        %938 = vmatprep.subr.bf16.mxu0 0
        %939 = vmatpush2.bf16.msra.mxu0 %v773
        %940 = vmatprep.subr.bf16.mxu0 0
        %941 = vmatpush2.bf16.msra.mxu0 %v772
        %942 = vmatprep.subr.bf16.mxu0 0
        %943 = vmatpush2.bf16.msra.mxu0 %v771
        %944 = vmatprep.subr.bf16.mxu0 0
        %945 = vmatpush2.bf16.msra.mxu0 %v770
        %946 = vmatprep.mubr.bf16.mxu0 %v350
        %947 = vmatmul.mubr.bf16.gmra.mxu0 %v349
        %v948 = vpop.f32.mrf.mxu0
        %v949 = vadd.f32 %v909, %v948
        %v950 = vpop.f32.mrf.mxu0
        %v951 = vpop.f32.mrf.mxu0
        %v952 = vpop.f32.mrf.mxu0
        %953 = vdwg.mxu0
        %954 = vmatprep.subr.bf16.mxu0 0
        %955 = vmatpush1.bf16.msra.mxu0 %v785
        %956 = vmatprep.subr.bf16.mxu0 0
        %957 = vmatpush1.bf16.msra.mxu0 %v784
        %958 = vmatprep.subr.bf16.mxu0 0
        %959 = vmatpush1.bf16.msra.mxu0 %v783
        %960 = vmatprep.subr.bf16.mxu0 0
        %961 = vmatpush1.bf16.msra.mxu0 %v782
        %962 = vmatprep.subr.bf16.mxu0 0
        %963 = vmatpush1.bf16.msra.mxu0 %v781
        %964 = vmatprep.subr.bf16.mxu0 0
        %965 = vmatpush1.bf16.msra.mxu0 %v780
        %966 = vmatprep.subr.bf16.mxu0 0
        %967 = vmatpush1.bf16.msra.mxu0 %v779
        %968 = vmatprep.subr.bf16.mxu0 0
        %969 = vmatpush1.bf16.msra.mxu0 %v778
        %970 = vmatprep.subr.bf16.mxu0 0
        %971 = vmatpush2.bf16.msra.mxu0 %v793
        %972 = vmatprep.subr.bf16.mxu0 0
        %973 = vmatpush2.bf16.msra.mxu0 %v792
        %974 = vmatprep.subr.bf16.mxu0 0
        %975 = vmatpush2.bf16.msra.mxu0 %v791
        %976 = vmatprep.subr.bf16.mxu0 0
        %977 = vmatpush2.bf16.msra.mxu0 %v790
        %978 = vmatprep.subr.bf16.mxu0 0
        %979 = vmatpush2.bf16.msra.mxu0 %v789
        %980 = vmatprep.subr.bf16.mxu0 0
        %981 = vmatpush2.bf16.msra.mxu0 %v788
        %982 = vmatprep.subr.bf16.mxu0 0
        %983 = vmatpush2.bf16.msra.mxu0 %v787
        %984 = vmatprep.subr.bf16.mxu0 0
        %985 = vmatpush2.bf16.msra.mxu0 %v786
        %986 = vmatprep.mubr.bf16.mxu0 %v352
        %987 = vmatmul.mubr.bf16.gmra.mxu0 %v351
        %v988 = vpop.f32.mrf.mxu0
        %v989 = vadd.f32 %v949, %v988
        %v990 = vpop.f32.mrf.mxu0
        %v991 = vpop.f32.mrf.mxu0
        %v992 = vpop.f32.mrf.mxu0
        %993 = vdwg.mxu0
        %994 = vmatprep.subr.bf16.mxu0 0
        %995 = vmatpush1.bf16.msra.mxu0 %v801
        %996 = vmatprep.subr.bf16.mxu0 0
        %997 = vmatpush1.bf16.msra.mxu0 %v800
        %998 = vmatprep.subr.bf16.mxu0 0
        %999 = vmatpush1.bf16.msra.mxu0 %v799
        %1000 = vmatprep.subr.bf16.mxu0 0
        %1001 = vmatpush1.bf16.msra.mxu0 %v798
        %1002 = vmatprep.subr.bf16.mxu0 0
        %1003 = vmatpush1.bf16.msra.mxu0 %v797
        %1004 = vmatprep.subr.bf16.mxu0 0
        %1005 = vmatpush1.bf16.msra.mxu0 %v796
        %1006 = vmatprep.subr.bf16.mxu0 0
        %1007 = vmatpush1.bf16.msra.mxu0 %v795
        %1008 = vmatprep.subr.bf16.mxu0 0
        %1009 = vmatpush1.bf16.msra.mxu0 %v794
        %1010 = vmatprep.subr.bf16.mxu0 0
        %1011 = vmatpush2.bf16.msra.mxu0 %v809
        %1012 = vmatprep.subr.bf16.mxu0 0
        %1013 = vmatpush2.bf16.msra.mxu0 %v808
        %1014 = vmatprep.subr.bf16.mxu0 0
        %1015 = vmatpush2.bf16.msra.mxu0 %v807
        %1016 = vmatprep.subr.bf16.mxu0 0
        %1017 = vmatpush2.bf16.msra.mxu0 %v806
        %1018 = vmatprep.subr.bf16.mxu0 0
        %1019 = vmatpush2.bf16.msra.mxu0 %v805
        %1020 = vmatprep.subr.bf16.mxu0 0
        %1021 = vmatpush2.bf16.msra.mxu0 %v804
        %1022 = vmatprep.subr.bf16.mxu0 0
        %1023 = vmatpush2.bf16.msra.mxu0 %v803
        %1024 = vmatprep.subr.bf16.mxu0 0
        %1025 = vmatpush2.bf16.msra.mxu0 %v802
        %1026 = vmatprep.mubr.bf16.mxu0 %v354
        %1027 = vmatmul.mubr.bf16.gmra.mxu0 %v353
        %v1028 = vpop.f32.mrf.mxu0
        %v1029 = vadd.f32 %v989, %v1028
        %v1030 = vpop.f32.mrf.mxu0
        %v1031 = vpop.f32.mrf.mxu0
        %v1032 = vpop.f32.mrf.mxu0
        %1033 = vdwg.mxu0
        %v1034 = vmax.f32 %v1029, 0.0
        %v1035 = vpack.c.bf16 %v1034, %v1034
        %v1036 = vld [vmem:[%s279] sm:$0xff]
        %v1037 = vld [vmem:[%s279 + $0x8] sm:$0xff]
        %v1038 = vld [vmem:[%s279 + $0x10] sm:$0xff]
        %v1039 = vld [vmem:[%s279 + $0x18] sm:$0xff]
        %v1040 = vld [vmem:[%s279 + $0x20] sm:$0xff]
        %v1041 = vld [vmem:[%s279 + $0x28] sm:$0xff]
        %v1042 = vld [vmem:[%s279 + $0x30] sm:$0xff]
        %v1043 = vld [vmem:[%s279 + $0x38] sm:$0xff]
        %v1044 = vld [vmem:[%s279 + $0x40] sm:$0xff]
        %v1045 = vld [vmem:[%s279 + $0x48] sm:$0xff]
        %v1046 = vld [vmem:[%s279 + $0x50] sm:$0xff]
        %v1047 = vld [vmem:[%s279 + $0x58] sm:$0xff]
        %v1048 = vld [vmem:[%s279 + $0x60] sm:$0xff]
        %v1049 = vld [vmem:[%s279 + $0x68] sm:$0xff]
        %v1050 = vld [vmem:[%s279 + $0x70] sm:$0xff]
        %v1051 = vld [vmem:[%s279 + $0x78] sm:$0xff]
        %v1052 = vld [vmem:[%s326] sm:$0xf]
        %v1054 = vlaneseq
        %v1055 = vshrl.u32 %v1054, 7
        %v1056 = vsub.s32 0, %v1055
        %v1057 = vrot.slane %v1052, %v1056
        %v1058 = vlaneseq
        %v1059 = vshrl.u32 %v1058, 7
        %v1060 = vsub.s32 1, %v1059
        %v1061 = vrot.slane %v1052, %v1060
        %v1062 = vlaneseq
        %v1063 = vshrl.u32 %v1062, 7
        %v1064 = vsub.s32 2, %v1063
        %v1065 = vrot.slane %v1052, %v1064
        %v1066 = vlaneseq
        %v1067 = vshrl.u32 %v1066, 7
        %v1068 = vsub.s32 3, %v1067
        %v1069 = vrot.slane %v1052, %v1068
        %v1090 = vunpack.c.l.b16 %v1036
        %v1091 = vunpack.c.h.b16 %v1036
        %v1092 = vunpack.c.l.b16 %v1037
        %v1093 = vunpack.c.h.b16 %v1037
        %v1094 = vunpack.c.l.b16 %v1038
        %v1095 = vunpack.c.h.b16 %v1038
        %v1096 = vunpack.c.l.b16 %v1039
        %v1097 = vunpack.c.h.b16 %v1039
        %v1098 = vunpack.c.l.b16 %v1040
        %v1099 = vunpack.c.h.b16 %v1040
        %v1100 = vunpack.c.l.b16 %v1041
        %v1101 = vunpack.c.h.b16 %v1041
        %v1102 = vunpack.c.l.b16 %v1042
        %v1103 = vunpack.c.h.b16 %v1042
        %v1104 = vunpack.c.l.b16 %v1043
        %v1105 = vunpack.c.h.b16 %v1043
        %v1106 = vunpack.c.l.b16 %v1044
        %v1107 = vunpack.c.h.b16 %v1044
        %v1108 = vunpack.c.l.b16 %v1045
        %v1109 = vunpack.c.h.b16 %v1045
        %v1110 = vunpack.c.l.b16 %v1046
        %v1111 = vunpack.c.h.b16 %v1046
        %v1112 = vunpack.c.l.b16 %v1047
        %v1113 = vunpack.c.h.b16 %v1047
        %v1114 = vunpack.c.l.b16 %v1048
        %v1115 = vunpack.c.h.b16 %v1048
        %v1116 = vunpack.c.l.b16 %v1049
        %v1117 = vunpack.c.h.b16 %v1049
        %v1118 = vunpack.c.l.b16 %v1050
        %v1119 = vunpack.c.h.b16 %v1050
        %v1120 = vunpack.c.l.b16 %v1051
        %v1121 = vunpack.c.h.b16 %v1051
        %v1122 = vpack.c.b16 %v1094, %v1090
        %v1123 = vpack.c.b16 %v1095, %v1091
        %v1124 = vpack.c.b16 %v1096, %v1092
        %v1125 = vpack.c.b16 %v1097, %v1093
        %v1126 = vpack.c.b16 %v1102, %v1098
        %v1127 = vpack.c.b16 %v1103, %v1099
        %v1128 = vpack.c.b16 %v1104, %v1100
        %v1129 = vpack.c.b16 %v1105, %v1101
        %v1130 = vpack.c.b16 %v1110, %v1106
        %v1131 = vpack.c.b16 %v1111, %v1107
        %v1132 = vpack.c.b16 %v1112, %v1108
        %v1133 = vpack.c.b16 %v1113, %v1109
        %v1134 = vpack.c.b16 %v1118, %v1114
        %v1135 = vpack.c.b16 %v1119, %v1115
        %v1136 = vpack.c.b16 %v1120, %v1116
        %v1137 = vpack.c.b16 %v1121, %v1117
        %vm1154 = vcmask 523264
        %v1156 = vsel %vm1154, %v1035, 0
        %1158 = vmatprep.subr.bf16.mxu0 0
        %1159 = vmatpush1.bf16.msra.mxu0 0
        %1160 = vmatprep.subr.bf16.mxu0 0
        %1161 = vmatpush1.bf16.msra.mxu0 0
        %1162 = vmatprep.subr.bf16.mxu0 0
        %1163 = vmatpush1.bf16.msra.mxu0 0
        %1164 = vmatprep.subr.bf16.mxu0 0
        %1165 = vmatpush1.bf16.msra.mxu0 0
        %1166 = vmatprep.subr.bf16.mxu0 %v1135
        %1167 = vmatpush1.bf16.msra.mxu0 %v1134
        %1168 = vmatprep.subr.bf16.mxu0 %v1131
        %1169 = vmatpush1.bf16.msra.mxu0 %v1130
        %1170 = vmatprep.subr.bf16.mxu0 %v1127
        %1171 = vmatpush1.bf16.msra.mxu0 %v1126
        %1172 = vmatprep.subr.bf16.mxu0 %v1123
        %1173 = vmatpush1.bf16.msra.mxu0 %v1122
        %1174 = vmatprep.subr.bf16.mxu0 0
        %1175 = vmatpush2.bf16.msra.mxu0 0
        %1176 = vmatprep.subr.bf16.mxu0 0
        %1177 = vmatpush2.bf16.msra.mxu0 0
        %1178 = vmatprep.subr.bf16.mxu0 0
        %1179 = vmatpush2.bf16.msra.mxu0 0
        %1180 = vmatprep.subr.bf16.mxu0 0
        %1181 = vmatpush2.bf16.msra.mxu0 0
        %1182 = vmatprep.subr.bf16.mxu0 0
        %1183 = vmatpush2.bf16.msra.mxu0 0
        %1184 = vmatprep.subr.bf16.mxu0 0
        %1185 = vmatpush2.bf16.msra.mxu0 0
        %1186 = vmatprep.subr.bf16.mxu0 0
        %1187 = vmatpush2.bf16.msra.mxu0 0
        %1188 = vmatprep.subr.bf16.mxu0 0
        %1189 = vmatpush2.bf16.msra.mxu0 0
        %1190 = vmatprep.mubr.bf16.mxu0 0
        %1191 = vmatmul.mubr.bf16.gmra.mxu0 %v1156
        %v1192 = vpop.f32.mrf.mxu0
        %v1193 = vadd.f32 %v1057, %v1192
        %v1194 = vpop.f32.mrf.mxu0
        %v1195 = vadd.f32 %v1061, %v1194
        %v1196 = vpop.f32.mrf.mxu0
        %v1197 = vpop.f32.mrf.mxu0
        %1198 = vdwg.mxu0
        %1199 = vmatprep.subr.bf16.mxu0 0
        %1200 = vmatpush1.bf16.msra.mxu0 0
        %1201 = vmatprep.subr.bf16.mxu0 0
        %1202 = vmatpush1.bf16.msra.mxu0 0
        %1203 = vmatprep.subr.bf16.mxu0 0
        %1204 = vmatpush1.bf16.msra.mxu0 0
        %1205 = vmatprep.subr.bf16.mxu0 0
        %1206 = vmatpush1.bf16.msra.mxu0 0
        %1207 = vmatprep.subr.bf16.mxu0 %v1137
        %1208 = vmatpush1.bf16.msra.mxu0 %v1136
        %1209 = vmatprep.subr.bf16.mxu0 %v1133
        %1210 = vmatpush1.bf16.msra.mxu0 %v1132
        %1211 = vmatprep.subr.bf16.mxu0 %v1129
        %1212 = vmatpush1.bf16.msra.mxu0 %v1128
        %1213 = vmatprep.subr.bf16.mxu0 %v1125
        %1214 = vmatpush1.bf16.msra.mxu0 %v1124
        %1215 = vmatprep.subr.bf16.mxu0 0
        %1216 = vmatpush2.bf16.msra.mxu0 0
        %1217 = vmatprep.subr.bf16.mxu0 0
        %1218 = vmatpush2.bf16.msra.mxu0 0
        %1219 = vmatprep.subr.bf16.mxu0 0
        %1220 = vmatpush2.bf16.msra.mxu0 0
        %1221 = vmatprep.subr.bf16.mxu0 0
        %1222 = vmatpush2.bf16.msra.mxu0 0
        %1223 = vmatprep.subr.bf16.mxu0 0
        %1224 = vmatpush2.bf16.msra.mxu0 0
        %1225 = vmatprep.subr.bf16.mxu0 0
        %1226 = vmatpush2.bf16.msra.mxu0 0
        %1227 = vmatprep.subr.bf16.mxu0 0
        %1228 = vmatpush2.bf16.msra.mxu0 0
        %1229 = vmatprep.subr.bf16.mxu0 0
        %1230 = vmatpush2.bf16.msra.mxu0 0
        %1231 = vmatprep.mubr.bf16.mxu0 0
        %1232 = vmatmul.mubr.bf16.gmra.mxu0 %v1156
        %v1233 = vpop.f32.mrf.mxu0
        %v1234 = vadd.f32 %v1065, %v1233
        %v1235 = vpop.f32.mrf.mxu0
        %v1236 = vadd.f32 %v1069, %v1235
        %v1237 = vpop.f32.mrf.mxu0
        %v1238 = vpop.f32.mrf.mxu0
        %1239 = vdwg.mxu0
        %1240 = vst [vmem:[%s336] sm:$0xff] %v1193
        %1241 = vst [vmem:[%s336 + $0x8] sm:$0xff] %v1195
        %1242 = vst [vmem:[%s336 + $0x10] sm:$0xff] %v1234
        %1243 = vst [vmem:[%s336 + $0x18] sm:$0xff] %v1236
        %s1244 = smul.u32 4, %s21
        %p1245 = scmp.lt.s32.totalorder %s20, 0
        %s1246 = scalar_select %p1245, %s20, 0
        %p1247 = scmp.lt.s32.totalorder %s1244, 247
        %s1248 = scalar_select %p1247, %s1244, 247
        %s1249 = smul.addr %s1246, 248
        %s1250 = sadd.s32 %s1248, %s1249
        %s1251 = smul.addr %s1250, 8
        %s1252 = scalar_lea.vmem %s5, %s1251
        // Predicated region
        $region64: #{_lambda_.6} parent=58 // pred_check
          %p1253 = pneg %p168
        $region65: #{_lambda_.6} parent=58 // pred_check_branch
          %1255 = sbr.rel (%p1253) target = $region67
        $region66: #{_lambda_.6} parent=58 // pred_region
          %s1256 = smul.u32 4, %s21
        $region67: #{_lambda_.6} parent=58 // pred_fallthru
          _
      $region59: #{_lambda_.6} parent=5 // pred_fallthru
        _
      %p1257 = scmp.le.s32.totalorder 2, %s11
      // Predicated region
      $region68: #{_lambda_.6} parent=5 // pred_check
        %p1258 = pneg %p1257
      $region69: #{_lambda_.6} parent=5 // pred_check_branch
        %1260 = sbr.rel (%p1258) target = $region71
      $region70: #{_lambda_.6} parent=5 // pred_region
        %s1261 = ssub.s32 %s11, 2
        // Predicated region
        $region72: #{_lambda_.6} parent=70 // pred_check
          %p1262 = pneg %p174
        $region73: #{_lambda_.6} parent=70 // pred_check_branch
          %1264 = sbr.rel (%p1262) target = $region75
        $region74: #{_lambda_.6} parent=70 // pred_region
          %s1265 = smul.u32 4, %s23
          %p1266 = scmp.lt.s32.totalorder %s22, 0
          %s1267 = scalar_select %p1266, %s22, 0
          %p1268 = scmp.lt.s32.totalorder %s1265, 247
          %s1269 = scalar_select %p1268, %s1265, 247
          %s1270 = smul.addr %s1267, 248
          %s1271 = sadd.s32 %s1269, %s1270
          %s1272 = smul.addr %s1271, 8
          %s1273 = scalar_lea.vmem %s5, %s1272
        $region75: #{_lambda_.6} parent=70 // pred_fallthru
          _
      $region71: #{_lambda_.6} parent=5 // pred_fallthru
        _
    $region6: #{_lambda_.6} parent=1 // loop_footer
      %s15 = sadd.s32 1, %s11
    $region7: #{_lambda_.6} parent=1 // loop_footer_branch
      %10 = sbr.rel target = $region3
    $region8: #{_lambda_.6} parent=1 // loop_exit
      _

</llo_original>
